<compile_context>
chip_gen: v6e
topology: v6e:2x2x1
jax: 0.10.0
libtpu: 0.0.40
codegen_flags: <defaults>
</compile_context>

<pallas_src>
import functools
import math

import jax
import jax.numpy as jnp
from jax.experimental import pallas as pl
from jax.experimental.pallas import tpu as pltpu

# ------------------------- scaled-down BERT config -------------------------
VOCAB = 128
MAX_POS = 16
TYPE_VOCAB = 2
HIDDEN = 32
HEADS = 4
HEAD_DIM = HIDDEN // HEADS
INTER = 64
LAYERS = 2
LN_EPS = 1e-12
SEQ_LABEL, CANCER_LABEL, TRANSFER_LABEL, LY_TRANSFER = 1, 8, 2, 2
HEAD_PAD = 128  # fused head output padded to a full 128-lane vreg (lane-dense stores)

_VMEM = pl.BlockSpec(memory_space=pltpu.MemorySpace.VMEM)  # whole-array-in-VMEM spec


# ------------------------------- kernel helpers ------------------------------
def _layernorm(x, g, b):
    mu = jnp.mean(x, axis=-1, keepdims=True)
    var = jnp.mean((x - mu) ** 2, axis=-1, keepdims=True)
    return (x - mu) * jax.lax.rsqrt(var + LN_EPS) * g + b


def _gelu(x):
    # TODO(synk): HF BERT uses exact erf-GELU; tanh approximation used here.
    c = math.sqrt(2.0 / math.pi)
    return 0.5 * x * (1.0 + jnp.tanh(c * (x + 0.044715 * x * x * x)))


# ------------------------------ fused BERT kernel ----------------------------
def _word_bert_kernel(emb_ref, mask_ref,
                      emb_ln_g_ref, emb_ln_b_ref,
                      qkv_w_ref, qkv_b_ref,
                      o_w_ref, o_b_ref,
                      ln1_g_ref, ln1_b_ref,
                      i_w_ref, i_b_ref,
                      f_w_ref, f_b_ref,
                      ln2_g_ref, ln2_b_ref,
                      pooler_w_ref, pooler_b_ref,
                      heads_w_ref, heads_b_ref,
                      out_ref, *, batch, seq):
    H, Dh, NH = HIDDEN, HEAD_DIM, HEADS
    num_layers = qkv_w_ref.shape[0]

    # Embedding LayerNorm (no zero residual materialized).
    hidden = _layernorm(emb_ref[...], emb_ln_g_ref[...], emb_ln_b_ref[...])   # [B*S, H]
    mask = mask_ref[...]                                                      # [B*S, S]

    for l in range(num_layers):
        # Fused QKV projection (attention scale already folded into the Q slice).
        qkv = jnp.dot(hidden, qkv_w_ref[l],
                      preferred_element_type=jnp.float32) + qkv_b_ref[l]      # [B*S, 3H]
        o_w = o_w_ref[l]                                                      # [H, H]

        attn_rows = []
        for b in range(batch):
            r0 = b * seq
            mb = mask[r0:r0 + seq, :]                                         # [S, S]
            acc = None
            for h in range(NH):
                q = qkv[r0:r0 + seq, h * Dh:(h + 1) * Dh]                     # [S, Dh]
                k = qkv[r0:r0 + seq, H + h * Dh:H + (h + 1) * Dh]
                v = qkv[r0:r0 + seq, 2 * H + h * Dh:2 * H + (h + 1) * Dh]
                s = jnp.dot(q, k.T, preferred_element_type=jnp.float32) + mb  # [S, S]
                s = s - jnp.max(s, axis=-1, keepdims=True)
                p = jnp.exp(s)
                p = p * pl.reciprocal(jnp.sum(p, axis=-1, keepdims=True), approx=True)
                ctx_h = jnp.dot(p, v, preferred_element_type=jnp.float32)     # [S, Dh]
                # Merge heads by accumulating ctx_h @ Wo rows (sublane-aligned slice).
                part = jnp.dot(ctx_h, o_w[h * Dh:(h + 1) * Dh, :],
                               preferred_element_type=jnp.float32)            # [S, H]
                acc = part if acc is None else acc + part
            attn_rows.append(acc)
        attn_out = jnp.concatenate(attn_rows, axis=0) + o_b_ref[l]            # [B*S, H]

        hidden = _layernorm(attn_out + hidden, ln1_g_ref[l], ln1_b_ref[l])
        inter = _gelu(jnp.dot(hidden, i_w_ref[l],
                              preferred_element_type=jnp.float32) + i_b_ref[l])
        ffn = jnp.dot(inter, f_w_ref[l],
                      preferred_element_type=jnp.float32) + f_b_ref[l]
        hidden = _layernorm(ffn + hidden, ln2_g_ref[l], ln2_b_ref[l])

    # Pooler: select the CLS row of each batch with a tiny 0/1 selection matrix (MXU op,
    # avoids unaligned row gathers), then tanh(Linear(cls)).
    row = jax.lax.broadcasted_iota(jnp.int32, (batch, batch * seq), 0)
    col = jax.lax.broadcasted_iota(jnp.int32, (batch, batch * seq), 1)
    cls_sel = (col == row * seq).astype(jnp.float32)                          # [B, B*S]
    cls = jnp.dot(cls_sel, hidden, preferred_element_type=jnp.float32)        # [B, H]
    pool = jnp.tanh(jnp.dot(cls, pooler_w_ref[...],
                            preferred_element_type=jnp.float32) + pooler_b_ref[...])

    # Fused, 128-lane-padded classification heads (lane-dense output stores).
    hw, hb = heads_w_ref[...], heads_b_ref[...]
    out_ref[0:batch * seq, :] = jnp.dot(hidden, hw,
                                        preferred_element_type=jnp.float32) + hb
    out_ref[batch * seq:batch * seq + batch, :] = jnp.dot(
        pool, hw, preferred_element_type=jnp.float32) + hb


# ------------------------------ parameter init ------------------------------
def init_params(key):
    keys = iter(jax.random.split(key, 256))

    def dense(fi, fo):
        return {"w": jax.random.normal(next(keys), (fi, fo), jnp.float32) * 0.02,
                "b": jnp.zeros((fo,), jnp.float32)}

    p = {
        "word_emb": jax.random.normal(next(keys), (VOCAB, HIDDEN), jnp.float32) * 0.02,
        "pos_emb": jax.random.normal(next(keys), (MAX_POS, HIDDEN), jnp.float32) * 0.02,
        "type_emb": jax.random.normal(next(keys), (TYPE_VOCAB, HIDDEN), jnp.float32) * 0.02,
        "emb_ln_g": jnp.ones((HIDDEN,), jnp.float32),
        "emb_ln_b": jnp.zeros((HIDDEN,), jnp.float32),
        "layers": [],
        "pooler": dense(HIDDEN, HIDDEN),
        "out": dense(HIDDEN, SEQ_LABEL),
        "cancer": dense(HIDDEN, CANCER_LABEL),
        "transfer": dense(HIDDEN, TRANSFER_LABEL),
        "ly_transfer": dense(HIDDEN, LY_TRANSFER),
    }
    for _ in range(LAYERS):
        p["layers"].append({
            "q": dense(HIDDEN, HIDDEN), "k": dense(HIDDEN, HIDDEN), "v": dense(HIDDEN, HIDDEN),
            "o": dense(HIDDEN, HIDDEN),
            "ln1_g": jnp.ones((HIDDEN,), jnp.float32), "ln1_b": jnp.zeros((HIDDEN,), jnp.float32),
            "i": dense(HIDDEN, INTER), "f": dense(INTER, HIDDEN),
            "ln2_g": jnp.ones((HIDDEN,), jnp.float32), "ln2_b": jnp.zeros((HIDDEN,), jnp.float32),
        })
    return p


def prepare_fused(p):
    """Pack params into stacked, kernel-friendly arrays (done once, outside jit)."""
    scale = 1.0 / math.sqrt(HEAD_DIM)
    L = p["layers"]
    fused = {
        "word_emb": p["word_emb"], "pos_emb": p["pos_emb"], "type_emb": p["type_emb"],
        "emb_ln_g": p["emb_ln_g"][None, :], "emb_ln_b": p["emb_ln_b"][None, :],
        # Fused QKV; the 1/sqrt(Dh) attention scale is folded into the Q weights/bias.
        "qkv_w": jnp.stack([jnp.concatenate(
            [l["q"]["w"] * scale, l["k"]["w"], l["v"]["w"]], axis=1) for l in L]),
        "qkv_b": jnp.stack([jnp.concatenate(
            [l["q"]["b"] * scale, l["k"]["b"], l["v"]["b"]])[None, :] for l in L]),
        "o_w": jnp.stack([l["o"]["w"] for l in L]),
        "o_b": jnp.stack([l["o"]["b"][None, :] for l in L]),
        "ln1_g": jnp.stack([l["ln1_g"][None, :] for l in L]),
        "ln1_b": jnp.stack([l["ln1_b"][None, :] for l in L]),
        "i_w": jnp.stack([l["i"]["w"] for l in L]),
        "i_b": jnp.stack([l["i"]["b"][None, :] for l in L]),
        "f_w": jnp.stack([l["f"]["w"] for l in L]),
        "f_b": jnp.stack([l["f"]["b"][None, :] for l in L]),
        "ln2_g": jnp.stack([l["ln2_g"][None, :] for l in L]),
        "ln2_b": jnp.stack([l["ln2_b"][None, :] for l in L]),
        "pooler_w": p["pooler"]["w"], "pooler_b": p["pooler"]["b"][None, :],
    }
    # Fused classification heads, zero-padded to a full 128-lane output.
    hw = jnp.zeros((HIDDEN, HEAD_PAD), jnp.float32)
    hb = jnp.zeros((HEAD_PAD,), jnp.float32)
    off = 0
    for name, n in (("out", SEQ_LABEL), ("cancer", CANCER_LABEL),
                    ("transfer", TRANSFER_LABEL), ("ly_transfer", LY_TRANSFER)):
        hw = hw.at[:, off:off + n].set(p[name]["w"])
        hb = hb.at[off:off + n].set(p[name]["b"])
        off += n
    fused["heads_w"] = hw
    fused["heads_b"] = hb[None, :]
    return fused


# -------------------------------- forward pass -------------------------------
@jax.jit
def word_bert_forward(fused, word_input, masks):
    B, S = word_input.shape
    H = HIDDEN

    # Embedding gather (glue, plain JAX); token_type_ids == 0 everywhere.
    emb = (fused["word_emb"][word_input]
           + fused["pos_emb"][:S][None, :, :]
           + fused["type_emb"][0][None, None, :]).reshape(B * S, H)

    # Additive attention mask, pre-broadcast to [B*S, S] so the kernel slices aligned blocks.
    mask_add = (1.0 - masks.astype(jnp.float32)) * -1e9                       # [B, S]
    mask_bs = jnp.broadcast_to(mask_add[:, None, :], (B, S, S)).reshape(B * S, S)

    y = pl.pallas_call(
        functools.partial(_word_bert_kernel, batch=B, seq=S),
        out_shape=jax.ShapeDtypeStruct((B * S + B, HEAD_PAD), jnp.float32),
        in_specs=[_VMEM] * 20,
        out_specs=_VMEM,
    )(emb, mask_bs,
      fused["emb_ln_g"], fused["emb_ln_b"],
      fused["qkv_w"], fused["qkv_b"],
      fused["o_w"], fused["o_b"],
      fused["ln1_g"], fused["ln1_b"],
      fused["i_w"], fused["i_b"],
      fused["f_w"], fused["f_b"],
      fused["ln2_g"], fused["ln2_b"],
      fused["pooler_w"], fused["pooler_b"],
      fused["heads_w"], fused["heads_b"])

    # Slice the lane-padded logits back into the 4 heads (Dropout is identity in eval).
    tok = y[:B * S, :SEQ_LABEL].reshape(B, S, SEQ_LABEL)
    pooled = y[B * S:, :]
    c0 = SEQ_LABEL
    c1 = c0 + CANCER_LABEL
    c2 = c1 + TRANSFER_LABEL
    c3 = c2 + LY_TRANSFER
    return tok, pooled[:, c0:c1], pooled[:, c1:c2], pooled[:, c2:c3]


if __name__ == "__main__":
    key = jax.random.PRNGKey(0)
    pkey, dkey = jax.random.split(key)
    params = init_params(pkey)
    fused = prepare_fused(params)

    B, S = 2, 8
    word_input = jax.random.randint(dkey, (B, S), 0, VOCAB, dtype=jnp.int32)
    masks = jnp.ones((B, S), jnp.int32).at[:, 6:].set(0)   # last two tokens padded

    outs = word_bert_forward(fused, word_input, masks)
    jax.block_until_ready(outs)
    assert outs[0].shape == (B, S, SEQ_LABEL)
    assert outs[1].shape == (B, CANCER_LABEL)
    assert outs[2].shape == (B, TRANSFER_LABEL)
    assert outs[3].shape == (B, LY_TRANSFER)
    print("KERNEL_OK")
</pallas_src>

<mosaic_0001>
module attributes {stable_mosaic.version = 11 : i64} {
  func.func @_word_bert_kernel(%arg0: memref<16x32xf32, #tpu.memory_space<vmem>>, %arg1: memref<16x8xf32, #tpu.memory_space<vmem>>, %arg2: memref<1x32xf32, #tpu.memory_space<vmem>>, %arg3: memref<1x32xf32, #tpu.memory_space<vmem>>, %arg4: memref<2x32x96xf32, #tpu.memory_space<vmem>>, %arg5: memref<2x1x96xf32, #tpu.memory_space<vmem>>, %arg6: memref<2x32x32xf32, #tpu.memory_space<vmem>>, %arg7: memref<2x1x32xf32, #tpu.memory_space<vmem>>, %arg8: memref<2x1x32xf32, #tpu.memory_space<vmem>>, %arg9: memref<2x1x32xf32, #tpu.memory_space<vmem>>, %arg10: memref<2x32x64xf32, #tpu.memory_space<vmem>>, %arg11: memref<2x1x64xf32, #tpu.memory_space<vmem>>, %arg12: memref<2x64x32xf32, #tpu.memory_space<vmem>>, %arg13: memref<2x1x32xf32, #tpu.memory_space<vmem>>, %arg14: memref<2x1x32xf32, #tpu.memory_space<vmem>>, %arg15: memref<2x1x32xf32, #tpu.memory_space<vmem>>, %arg16: memref<32x32xf32, #tpu.memory_space<vmem>>, %arg17: memref<1x32xf32, #tpu.memory_space<vmem>>, %arg18: memref<32x128xf32, #tpu.memory_space<vmem>>, %arg19: memref<1x128xf32, #tpu.memory_space<vmem>>, %arg20: memref<18x128xf32, #tpu.memory_space<vmem>>) attributes {dimension_semantics = [], scalar_prefetch = 0 : i64, scratch_operands = 0 : i64, tpu.core_type = #tpu.core_type<tc>} {
    %c0 = arith.constant 0 : index
    %c0_0 = arith.constant 0 : index
    %0 = vector.load %arg0[%c0, %c0_0] : memref<16x32xf32, #tpu.memory_space<vmem>>, vector<16x32xf32>
    %c0_1 = arith.constant 0 : index
    %c0_2 = arith.constant 0 : index
    %1 = vector.load %arg2[%c0_1, %c0_2] : memref<1x32xf32, #tpu.memory_space<vmem>>, vector<1x32xf32>
    %c0_3 = arith.constant 0 : index
    %c0_4 = arith.constant 0 : index
    %2 = vector.load %arg3[%c0_3, %c0_4] : memref<1x32xf32, #tpu.memory_space<vmem>>, vector<1x32xf32>
    %cst = arith.constant dense<0.000000e+00> : vector<16xf32>
    %3 = vector.multi_reduction <add>, %0, %cst [1] : vector<16x32xf32> to vector<16xf32>
    %4 = vector.shape_cast %3 : vector<16xf32> to vector<16x1xf32>
    %cst_5 = arith.constant 3.200000e+01 : f32
    %5 = vector.broadcast %cst_5 : f32 to vector<16x1xf32>
    %6 = arith.divf %4, %5 : vector<16x1xf32>
    %7 = vector.broadcast %6 : vector<16x1xf32> to vector<16x32xf32>
    %8 = arith.subf %0, %7 : vector<16x32xf32>
    %9 = arith.mulf %8, %8 : vector<16x32xf32>
    %cst_6 = arith.constant dense<0.000000e+00> : vector<16xf32>
    %10 = vector.multi_reduction <add>, %9, %cst_6 [1] : vector<16x32xf32> to vector<16xf32>
    %11 = vector.shape_cast %10 : vector<16xf32> to vector<16x1xf32>
    %cst_7 = arith.constant 3.200000e+01 : f32
    %12 = vector.broadcast %cst_7 : f32 to vector<16x1xf32>
    %13 = arith.divf %11, %12 : vector<16x1xf32>
    %14 = vector.broadcast %6 : vector<16x1xf32> to vector<16x32xf32>
    %15 = arith.subf %0, %14 : vector<16x32xf32>
    %cst_8 = arith.constant 9.99999996E-13 : f32
    %16 = vector.broadcast %cst_8 : f32 to vector<16x1xf32>
    %17 = arith.addf %13, %16 : vector<16x1xf32>
    %18 = math.rsqrt %17 : vector<16x1xf32>
    %19 = vector.broadcast %18 : vector<16x1xf32> to vector<16x32xf32>
    %20 = arith.mulf %15, %19 : vector<16x32xf32>
    %21 = vector.broadcast %1 : vector<1x32xf32> to vector<16x32xf32>
    %22 = arith.mulf %20, %21 : vector<16x32xf32>
    %23 = vector.broadcast %2 : vector<1x32xf32> to vector<16x32xf32>
    %24 = arith.addf %22, %23 : vector<16x32xf32>
    %c0_9 = arith.constant 0 : index
    %c0_10 = arith.constant 0 : index
    %25 = vector.load %arg1[%c0_9, %c0_10] : memref<16x8xf32, #tpu.memory_space<vmem>>, vector<16x8xf32>
    %c0_11 = arith.constant 0 : index
    %c0_12 = arith.constant 0 : index
    %c0_13 = arith.constant 0 : index
    %26 = vector.load %arg4[%c0_11, %c0_12, %c0_13] : memref<2x32x96xf32, #tpu.memory_space<vmem>>, vector<1x32x96xf32>
    %27 = vector.shape_cast %26 : vector<1x32x96xf32> to vector<32x96xf32>
    %cst_14 = arith.constant dense<0.000000e+00> : vector<16x96xf32>
    %28 = tpu.matmul %24, %27, %cst_14 {dimension_numbers = #tpu.dot_dimension_numbers<[1], [0], [0], [1], [0, 0, 1, 1], [], []>} : vector<16x32xf32>, vector<32x96xf32>, vector<16x96xf32> -> vector<16x96xf32>
    %c0_15 = arith.constant 0 : index
    %c0_16 = arith.constant 0 : index
    %c0_17 = arith.constant 0 : index
    %29 = vector.load %arg5[%c0_15, %c0_16, %c0_17] : memref<2x1x96xf32, #tpu.memory_space<vmem>>, vector<1x1x96xf32>
    %30 = vector.shape_cast %29 : vector<1x1x96xf32> to vector<1x96xf32>
    %31 = vector.broadcast %30 : vector<1x96xf32> to vector<16x96xf32>
    %32 = arith.addf %28, %31 : vector<16x96xf32>
    %c0_18 = arith.constant 0 : index
    %c0_19 = arith.constant 0 : index
    %c0_20 = arith.constant 0 : index
    %33 = vector.load %arg6[%c0_18, %c0_19, %c0_20] : memref<2x32x32xf32, #tpu.memory_space<vmem>>, vector<1x32x32xf32>
    %34 = vector.shape_cast %33 : vector<1x32x32xf32> to vector<32x32xf32>
    %35 = vector.extract_strided_slice %25 {offsets = [0, 0], sizes = [8, 8], strides = [1, 1]} : vector<16x8xf32> to vector<8x8xf32>
    %36 = vector.extract_strided_slice %32 {offsets = [0, 0], sizes = [8, 8], strides = [1, 1]} : vector<16x96xf32> to vector<8x8xf32>
    %37 = vector.extract_strided_slice %32 {offsets = [0, 32], sizes = [8, 8], strides = [1, 1]} : vector<16x96xf32> to vector<8x8xf32>
    %38 = vector.extract_strided_slice %32 {offsets = [0, 64], sizes = [8, 8], strides = [1, 1]} : vector<16x96xf32> to vector<8x8xf32>
    %39 = tpu.transpose %37, [1, 0] : vector<8x8xf32> -> vector<8x8xf32>
    %cst_21 = arith.constant dense<0.000000e+00> : vector<8x8xf32>
    %40 = tpu.matmul %36, %39, %cst_21 {dimension_numbers = #tpu.dot_dimension_numbers<[1], [0], [0], [1], [0, 0, 1, 1], [], []>} : vector<8x8xf32>, vector<8x8xf32>, vector<8x8xf32> -> vector<8x8xf32>
    %41 = arith.addf %40, %35 : vector<8x8xf32>
    %cst_22 = arith.constant dense<0xFF800000> : vector<8xf32>
    %42 = vector.multi_reduction <maximumf>, %41, %cst_22 [1] : vector<8x8xf32> to vector<8xf32>
    %43 = vector.shape_cast %42 : vector<8xf32> to vector<8x1xf32>
    %44 = vector.broadcast %43 : vector<8x1xf32> to vector<8x8xf32>
    %45 = arith.subf %41, %44 : vector<8x8xf32>
    %46 = math.exp %45 : vector<8x8xf32>
    %cst_23 = arith.constant dense<0.000000e+00> : vector<8xf32>
    %47 = vector.multi_reduction <add>, %46, %cst_23 [1] : vector<8x8xf32> to vector<8xf32>
    %48 = vector.shape_cast %47 : vector<8xf32> to vector<8x1xf32>
    %49 = tpu.reciprocal %48 {approx = true} : vector<8x1xf32> -> vector<8x1xf32>
    %50 = vector.broadcast %49 : vector<8x1xf32> to vector<8x8xf32>
    %51 = arith.mulf %46, %50 : vector<8x8xf32>
    %cst_24 = arith.constant dense<0.000000e+00> : vector<8x8xf32>
    %52 = tpu.matmul %51, %38, %cst_24 {dimension_numbers = #tpu.dot_dimension_numbers<[1], [0], [0], [1], [0, 0, 1, 1], [], []>} : vector<8x8xf32>, vector<8x8xf32>, vector<8x8xf32> -> vector<8x8xf32>
    %53 = vector.extract_strided_slice %34 {offsets = [0, 0], sizes = [8, 32], strides = [1, 1]} : vector<32x32xf32> to vector<8x32xf32>
    %cst_25 = arith.constant dense<0.000000e+00> : vector<8x32xf32>
    %54 = tpu.matmul %52, %53, %cst_25 {dimension_numbers = #tpu.dot_dimension_numbers<[1], [0], [0], [1], [0, 0, 1, 1], [], []>} : vector<8x8xf32>, vector<8x32xf32>, vector<8x32xf32> -> vector<8x32xf32>
    %55 = vector.extract_strided_slice %32 {offsets = [0, 8], sizes = [8, 8], strides = [1, 1]} : vector<16x96xf32> to vector<8x8xf32>
    %56 = vector.extract_strided_slice %32 {offsets = [0, 40], sizes = [8, 8], strides = [1, 1]} : vector<16x96xf32> to vector<8x8xf32>
    %57 = vector.extract_strided_slice %32 {offsets = [0, 72], sizes = [8, 8], strides = [1, 1]} : vector<16x96xf32> to vector<8x8xf32>
    %58 = tpu.transpose %56, [1, 0] : vector<8x8xf32> -> vector<8x8xf32>
    %cst_26 = arith.constant dense<0.000000e+00> : vector<8x8xf32>
    %59 = tpu.matmul %55, %58, %cst_26 {dimension_numbers = #tpu.dot_dimension_numbers<[1], [0], [0], [1], [0, 0, 1, 1], [], []>} : vector<8x8xf32>, vector<8x8xf32>, vector<8x8xf32> -> vector<8x8xf32>
    %60 = arith.addf %59, %35 : vector<8x8xf32>
    %cst_27 = arith.constant dense<0xFF800000> : vector<8xf32>
    %61 = vector.multi_reduction <maximumf>, %60, %cst_27 [1] : vector<8x8xf32> to vector<8xf32>
    %62 = vector.shape_cast %61 : vector<8xf32> to vector<8x1xf32>
    %63 = vector.broadcast %62 : vector<8x1xf32> to vector<8x8xf32>
    %64 = arith.subf %60, %63 : vector<8x8xf32>
    %65 = math.exp %64 : vector<8x8xf32>
    %cst_28 = arith.constant dense<0.000000e+00> : vector<8xf32>
    %66 = vector.multi_reduction <add>, %65, %cst_28 [1] : vector<8x8xf32> to vector<8xf32>
    %67 = vector.shape_cast %66 : vector<8xf32> to vector<8x1xf32>
    %68 = tpu.reciprocal %67 {approx = true} : vector<8x1xf32> -> vector<8x1xf32>
    %69 = vector.broadcast %68 : vector<8x1xf32> to vector<8x8xf32>
    %70 = arith.mulf %65, %69 : vector<8x8xf32>
    %cst_29 = arith.constant dense<0.000000e+00> : vector<8x8xf32>
    %71 = tpu.matmul %70, %57, %cst_29 {dimension_numbers = #tpu.dot_dimension_numbers<[1], [0], [0], [1], [0, 0, 1, 1], [], []>} : vector<8x8xf32>, vector<8x8xf32>, vector<8x8xf32> -> vector<8x8xf32>
    %72 = vector.extract_strided_slice %34 {offsets = [8, 0], sizes = [8, 32], strides = [1, 1]} : vector<32x32xf32> to vector<8x32xf32>
    %cst_30 = arith.constant dense<0.000000e+00> : vector<8x32xf32>
    %73 = tpu.matmul %71, %72, %cst_30 {dimension_numbers = #tpu.dot_dimension_numbers<[1], [0], [0], [1], [0, 0, 1, 1], [], []>} : vector<8x8xf32>, vector<8x32xf32>, vector<8x32xf32> -> vector<8x32xf32>
    %74 = arith.addf %54, %73 : vector<8x32xf32>
    %75 = vector.extract_strided_slice %32 {offsets = [0, 16], sizes = [8, 8], strides = [1, 1]} : vector<16x96xf32> to vector<8x8xf32>
    %76 = vector.extract_strided_slice %32 {offsets = [0, 48], sizes = [8, 8], strides = [1, 1]} : vector<16x96xf32> to vector<8x8xf32>
    %77 = vector.extract_strided_slice %32 {offsets = [0, 80], sizes = [8, 8], strides = [1, 1]} : vector<16x96xf32> to vector<8x8xf32>
    %78 = tpu.transpose %76, [1, 0] : vector<8x8xf32> -> vector<8x8xf32>
    %cst_31 = arith.constant dense<0.000000e+00> : vector<8x8xf32>
    %79 = tpu.matmul %75, %78, %cst_31 {dimension_numbers = #tpu.dot_dimension_numbers<[1], [0], [0], [1], [0, 0, 1, 1], [], []>} : vector<8x8xf32>, vector<8x8xf32>, vector<8x8xf32> -> vector<8x8xf32>
    %80 = arith.addf %79, %35 : vector<8x8xf32>
    %cst_32 = arith.constant dense<0xFF800000> : vector<8xf32>
    %81 = vector.multi_reduction <maximumf>, %80, %cst_32 [1] : vector<8x8xf32> to vector<8xf32>
    %82 = vector.shape_cast %81 : vector<8xf32> to vector<8x1xf32>
    %83 = vector.broadcast %82 : vector<8x1xf32> to vector<8x8xf32>
    %84 = arith.subf %80, %83 : vector<8x8xf32>
    %85 = math.exp %84 : vector<8x8xf32>
    %cst_33 = arith.constant dense<0.000000e+00> : vector<8xf32>
    %86 = vector.multi_reduction <add>, %85, %cst_33 [1] : vector<8x8xf32> to vector<8xf32>
    %87 = vector.shape_cast %86 : vector<8xf32> to vector<8x1xf32>
    %88 = tpu.reciprocal %87 {approx = true} : vector<8x1xf32> -> vector<8x1xf32>
    %89 = vector.broadcast %88 : vector<8x1xf32> to vector<8x8xf32>
    %90 = arith.mulf %85, %89 : vector<8x8xf32>
    %cst_34 = arith.constant dense<0.000000e+00> : vector<8x8xf32>
    %91 = tpu.matmul %90, %77, %cst_34 {dimension_numbers = #tpu.dot_dimension_numbers<[1], [0], [0], [1], [0, 0, 1, 1], [], []>} : vector<8x8xf32>, vector<8x8xf32>, vector<8x8xf32> -> vector<8x8xf32>
    %92 = vector.extract_strided_slice %34 {offsets = [16, 0], sizes = [8, 32], strides = [1, 1]} : vector<32x32xf32> to vector<8x32xf32>
    %cst_35 = arith.constant dense<0.000000e+00> : vector<8x32xf32>
    %93 = tpu.matmul %91, %92, %cst_35 {dimension_numbers = #tpu.dot_dimension_numbers<[1], [0], [0], [1], [0, 0, 1, 1], [], []>} : vector<8x8xf32>, vector<8x32xf32>, vector<8x32xf32> -> vector<8x32xf32>
    %94 = arith.addf %74, %93 : vector<8x32xf32>
    %95 = vector.extract_strided_slice %32 {offsets = [0, 24], sizes = [8, 8], strides = [1, 1]} : vector<16x96xf32> to vector<8x8xf32>
    %96 = vector.extract_strided_slice %32 {offsets = [0, 56], sizes = [8, 8], strides = [1, 1]} : vector<16x96xf32> to vector<8x8xf32>
    %97 = vector.extract_strided_slice %32 {offsets = [0, 88], sizes = [8, 8], strides = [1, 1]} : vector<16x96xf32> to vector<8x8xf32>
    %98 = tpu.transpose %96, [1, 0] : vector<8x8xf32> -> vector<8x8xf32>
    %cst_36 = arith.constant dense<0.000000e+00> : vector<8x8xf32>
    %99 = tpu.matmul %95, %98, %cst_36 {dimension_numbers = #tpu.dot_dimension_numbers<[1], [0], [0], [1], [0, 0, 1, 1], [], []>} : vector<8x8xf32>, vector<8x8xf32>, vector<8x8xf32> -> vector<8x8xf32>
    %100 = arith.addf %99, %35 : vector<8x8xf32>
    %cst_37 = arith.constant dense<0xFF800000> : vector<8xf32>
    %101 = vector.multi_reduction <maximumf>, %100, %cst_37 [1] : vector<8x8xf32> to vector<8xf32>
    %102 = vector.shape_cast %101 : vector<8xf32> to vector<8x1xf32>
    %103 = vector.broadcast %102 : vector<8x1xf32> to vector<8x8xf32>
    %104 = arith.subf %100, %103 : vector<8x8xf32>
    %105 = math.exp %104 : vector<8x8xf32>
    %cst_38 = arith.constant dense<0.000000e+00> : vector<8xf32>
    %106 = vector.multi_reduction <add>, %105, %cst_38 [1] : vector<8x8xf32> to vector<8xf32>
    %107 = vector.shape_cast %106 : vector<8xf32> to vector<8x1xf32>
    %108 = tpu.reciprocal %107 {approx = true} : vector<8x1xf32> -> vector<8x1xf32>
    %109 = vector.broadcast %108 : vector<8x1xf32> to vector<8x8xf32>
    %110 = arith.mulf %105, %109 : vector<8x8xf32>
    %cst_39 = arith.constant dense<0.000000e+00> : vector<8x8xf32>
    %111 = tpu.matmul %110, %97, %cst_39 {dimension_numbers = #tpu.dot_dimension_numbers<[1], [0], [0], [1], [0, 0, 1, 1], [], []>} : vector<8x8xf32>, vector<8x8xf32>, vector<8x8xf32> -> vector<8x8xf32>
    %112 = vector.extract_strided_slice %34 {offsets = [24, 0], sizes = [8, 32], strides = [1, 1]} : vector<32x32xf32> to vector<8x32xf32>
    %cst_40 = arith.constant dense<0.000000e+00> : vector<8x32xf32>
    %113 = tpu.matmul %111, %112, %cst_40 {dimension_numbers = #tpu.dot_dimension_numbers<[1], [0], [0], [1], [0, 0, 1, 1], [], []>} : vector<8x8xf32>, vector<8x32xf32>, vector<8x32xf32> -> vector<8x32xf32>
    %114 = arith.addf %94, %113 : vector<8x32xf32>
    %115 = vector.extract_strided_slice %25 {offsets = [8, 0], sizes = [8, 8], strides = [1, 1]} : vector<16x8xf32> to vector<8x8xf32>
    %116 = vector.extract_strided_slice %32 {offsets = [8, 0], sizes = [8, 8], strides = [1, 1]} : vector<16x96xf32> to vector<8x8xf32>
    %117 = vector.extract_strided_slice %32 {offsets = [8, 32], sizes = [8, 8], strides = [1, 1]} : vector<16x96xf32> to vector<8x8xf32>
    %118 = vector.extract_strided_slice %32 {offsets = [8, 64], sizes = [8, 8], strides = [1, 1]} : vector<16x96xf32> to vector<8x8xf32>
    %119 = tpu.transpose %117, [1, 0] : vector<8x8xf32> -> vector<8x8xf32>
    %cst_41 = arith.constant dense<0.000000e+00> : vector<8x8xf32>
    %120 = tpu.matmul %116, %119, %cst_41 {dimension_numbers = #tpu.dot_dimension_numbers<[1], [0], [0], [1], [0, 0, 1, 1], [], []>} : vector<8x8xf32>, vector<8x8xf32>, vector<8x8xf32> -> vector<8x8xf32>
    %121 = arith.addf %120, %115 : vector<8x8xf32>
    %cst_42 = arith.constant dense<0xFF800000> : vector<8xf32>
    %122 = vector.multi_reduction <maximumf>, %121, %cst_42 [1] : vector<8x8xf32> to vector<8xf32>
    %123 = vector.shape_cast %122 : vector<8xf32> to vector<8x1xf32>
    %124 = vector.broadcast %123 : vector<8x1xf32> to vector<8x8xf32>
    %125 = arith.subf %121, %124 : vector<8x8xf32>
    %126 = math.exp %125 : vector<8x8xf32>
    %cst_43 = arith.constant dense<0.000000e+00> : vector<8xf32>
    %127 = vector.multi_reduction <add>, %126, %cst_43 [1] : vector<8x8xf32> to vector<8xf32>
    %128 = vector.shape_cast %127 : vector<8xf32> to vector<8x1xf32>
    %129 = tpu.reciprocal %128 {approx = true} : vector<8x1xf32> -> vector<8x1xf32>
    %130 = vector.broadcast %129 : vector<8x1xf32> to vector<8x8xf32>
    %131 = arith.mulf %126, %130 : vector<8x8xf32>
    %cst_44 = arith.constant dense<0.000000e+00> : vector<8x8xf32>
    %132 = tpu.matmul %131, %118, %cst_44 {dimension_numbers = #tpu.dot_dimension_numbers<[1], [0], [0], [1], [0, 0, 1, 1], [], []>} : vector<8x8xf32>, vector<8x8xf32>, vector<8x8xf32> -> vector<8x8xf32>
    %133 = vector.extract_strided_slice %34 {offsets = [0, 0], sizes = [8, 32], strides = [1, 1]} : vector<32x32xf32> to vector<8x32xf32>
    %cst_45 = arith.constant dense<0.000000e+00> : vector<8x32xf32>
    %134 = tpu.matmul %132, %133, %cst_45 {dimension_numbers = #tpu.dot_dimension_numbers<[1], [0], [0], [1], [0, 0, 1, 1], [], []>} : vector<8x8xf32>, vector<8x32xf32>, vector<8x32xf32> -> vector<8x32xf32>
    %135 = vector.extract_strided_slice %32 {offsets = [8, 8], sizes = [8, 8], strides = [1, 1]} : vector<16x96xf32> to vector<8x8xf32>
    %136 = vector.extract_strided_slice %32 {offsets = [8, 40], sizes = [8, 8], strides = [1, 1]} : vector<16x96xf32> to vector<8x8xf32>
    %137 = vector.extract_strided_slice %32 {offsets = [8, 72], sizes = [8, 8], strides = [1, 1]} : vector<16x96xf32> to vector<8x8xf32>
    %138 = tpu.transpose %136, [1, 0] : vector<8x8xf32> -> vector<8x8xf32>
    %cst_46 = arith.constant dense<0.000000e+00> : vector<8x8xf32>
    %139 = tpu.matmul %135, %138, %cst_46 {dimension_numbers = #tpu.dot_dimension_numbers<[1], [0], [0], [1], [0, 0, 1, 1], [], []>} : vector<8x8xf32>, vector<8x8xf32>, vector<8x8xf32> -> vector<8x8xf32>
    %140 = arith.addf %139, %115 : vector<8x8xf32>
    %cst_47 = arith.constant dense<0xFF800000> : vector<8xf32>
    %141 = vector.multi_reduction <maximumf>, %140, %cst_47 [1] : vector<8x8xf32> to vector<8xf32>
    %142 = vector.shape_cast %141 : vector<8xf32> to vector<8x1xf32>
    %143 = vector.broadcast %142 : vector<8x1xf32> to vector<8x8xf32>
    %144 = arith.subf %140, %143 : vector<8x8xf32>
    %145 = math.exp %144 : vector<8x8xf32>
    %cst_48 = arith.constant dense<0.000000e+00> : vector<8xf32>
    %146 = vector.multi_reduction <add>, %145, %cst_48 [1] : vector<8x8xf32> to vector<8xf32>
    %147 = vector.shape_cast %146 : vector<8xf32> to vector<8x1xf32>
    %148 = tpu.reciprocal %147 {approx = true} : vector<8x1xf32> -> vector<8x1xf32>
    %149 = vector.broadcast %148 : vector<8x1xf32> to vector<8x8xf32>
    %150 = arith.mulf %145, %149 : vector<8x8xf32>
    %cst_49 = arith.constant dense<0.000000e+00> : vector<8x8xf32>
    %151 = tpu.matmul %150, %137, %cst_49 {dimension_numbers = #tpu.dot_dimension_numbers<[1], [0], [0], [1], [0, 0, 1, 1], [], []>} : vector<8x8xf32>, vector<8x8xf32>, vector<8x8xf32> -> vector<8x8xf32>
    %152 = vector.extract_strided_slice %34 {offsets = [8, 0], sizes = [8, 32], strides = [1, 1]} : vector<32x32xf32> to vector<8x32xf32>
    %cst_50 = arith.constant dense<0.000000e+00> : vector<8x32xf32>
    %153 = tpu.matmul %151, %152, %cst_50 {dimension_numbers = #tpu.dot_dimension_numbers<[1], [0], [0], [1], [0, 0, 1, 1], [], []>} : vector<8x8xf32>, vector<8x32xf32>, vector<8x32xf32> -> vector<8x32xf32>
    %154 = arith.addf %134, %153 : vector<8x32xf32>
    %155 = vector.extract_strided_slice %32 {offsets = [8, 16], sizes = [8, 8], strides = [1, 1]} : vector<16x96xf32> to vector<8x8xf32>
    %156 = vector.extract_strided_slice %32 {offsets = [8, 48], sizes = [8, 8], strides = [1, 1]} : vector<16x96xf32> to vector<8x8xf32>
    %157 = vector.extract_strided_slice %32 {offsets = [8, 80], sizes = [8, 8], strides = [1, 1]} : vector<16x96xf32> to vector<8x8xf32>
    %158 = tpu.transpose %156, [1, 0] : vector<8x8xf32> -> vector<8x8xf32>
    %cst_51 = arith.constant dense<0.000000e+00> : vector<8x8xf32>
    %159 = tpu.matmul %155, %158, %cst_51 {dimension_numbers = #tpu.dot_dimension_numbers<[1], [0], [0], [1], [0, 0, 1, 1], [], []>} : vector<8x8xf32>, vector<8x8xf32>, vector<8x8xf32> -> vector<8x8xf32>
    %160 = arith.addf %159, %115 : vector<8x8xf32>
    %cst_52 = arith.constant dense<0xFF800000> : vector<8xf32>
    %161 = vector.multi_reduction <maximumf>, %160, %cst_52 [1] : vector<8x8xf32> to vector<8xf32>
    %162 = vector.shape_cast %161 : vector<8xf32> to vector<8x1xf32>
    %163 = vector.broadcast %162 : vector<8x1xf32> to vector<8x8xf32>
    %164 = arith.subf %160, %163 : vector<8x8xf32>
    %165 = math.exp %164 : vector<8x8xf32>
    %cst_53 = arith.constant dense<0.000000e+00> : vector<8xf32>
    %166 = vector.multi_reduction <add>, %165, %cst_53 [1] : vector<8x8xf32> to vector<8xf32>
    %167 = vector.shape_cast %166 : vector<8xf32> to vector<8x1xf32>
    %168 = tpu.reciprocal %167 {approx = true} : vector<8x1xf32> -> vector<8x1xf32>
    %169 = vector.broadcast %168 : vector<8x1xf32> to vector<8x8xf32>
    %170 = arith.mulf %165, %169 : vector<8x8xf32>
    %cst_54 = arith.constant dense<0.000000e+00> : vector<8x8xf32>
    %171 = tpu.matmul %170, %157, %cst_54 {dimension_numbers = #tpu.dot_dimension_numbers<[1], [0], [0], [1], [0, 0, 1, 1], [], []>} : vector<8x8xf32>, vector<8x8xf32>, vector<8x8xf32> -> vector<8x8xf32>
    %172 = vector.extract_strided_slice %34 {offsets = [16, 0], sizes = [8, 32], strides = [1, 1]} : vector<32x32xf32> to vector<8x32xf32>
    %cst_55 = arith.constant dense<0.000000e+00> : vector<8x32xf32>
    %173 = tpu.matmul %171, %172, %cst_55 {dimension_numbers = #tpu.dot_dimension_numbers<[1], [0], [0], [1], [0, 0, 1, 1], [], []>} : vector<8x8xf32>, vector<8x32xf32>, vector<8x32xf32> -> vector<8x32xf32>
    %174 = arith.addf %154, %173 : vector<8x32xf32>
    %175 = vector.extract_strided_slice %32 {offsets = [8, 24], sizes = [8, 8], strides = [1, 1]} : vector<16x96xf32> to vector<8x8xf32>
    %176 = vector.extract_strided_slice %32 {offsets = [8, 56], sizes = [8, 8], strides = [1, 1]} : vector<16x96xf32> to vector<8x8xf32>
    %177 = vector.extract_strided_slice %32 {offsets = [8, 88], sizes = [8, 8], strides = [1, 1]} : vector<16x96xf32> to vector<8x8xf32>
    %178 = tpu.transpose %176, [1, 0] : vector<8x8xf32> -> vector<8x8xf32>
    %cst_56 = arith.constant dense<0.000000e+00> : vector<8x8xf32>
    %179 = tpu.matmul %175, %178, %cst_56 {dimension_numbers = #tpu.dot_dimension_numbers<[1], [0], [0], [1], [0, 0, 1, 1], [], []>} : vector<8x8xf32>, vector<8x8xf32>, vector<8x8xf32> -> vector<8x8xf32>
    %180 = arith.addf %179, %115 : vector<8x8xf32>
    %cst_57 = arith.constant dense<0xFF800000> : vector<8xf32>
    %181 = vector.multi_reduction <maximumf>, %180, %cst_57 [1] : vector<8x8xf32> to vector<8xf32>
    %182 = vector.shape_cast %181 : vector<8xf32> to vector<8x1xf32>
    %183 = vector.broadcast %182 : vector<8x1xf32> to vector<8x8xf32>
    %184 = arith.subf %180, %183 : vector<8x8xf32>
    %185 = math.exp %184 : vector<8x8xf32>
    %cst_58 = arith.constant dense<0.000000e+00> : vector<8xf32>
    %186 = vector.multi_reduction <add>, %185, %cst_58 [1] : vector<8x8xf32> to vector<8xf32>
    %187 = vector.shape_cast %186 : vector<8xf32> to vector<8x1xf32>
    %188 = tpu.reciprocal %187 {approx = true} : vector<8x1xf32> -> vector<8x1xf32>
    %189 = vector.broadcast %188 : vector<8x1xf32> to vector<8x8xf32>
    %190 = arith.mulf %185, %189 : vector<8x8xf32>
    %cst_59 = arith.constant dense<0.000000e+00> : vector<8x8xf32>
    %191 = tpu.matmul %190, %177, %cst_59 {dimension_numbers = #tpu.dot_dimension_numbers<[1], [0], [0], [1], [0, 0, 1, 1], [], []>} : vector<8x8xf32>, vector<8x8xf32>, vector<8x8xf32> -> vector<8x8xf32>
    %192 = vector.extract_strided_slice %34 {offsets = [24, 0], sizes = [8, 32], strides = [1, 1]} : vector<32x32xf32> to vector<8x32xf32>
    %cst_60 = arith.constant dense<0.000000e+00> : vector<8x32xf32>
    %193 = tpu.matmul %191, %192, %cst_60 {dimension_numbers = #tpu.dot_dimension_numbers<[1], [0], [0], [1], [0, 0, 1, 1], [], []>} : vector<8x8xf32>, vector<8x32xf32>, vector<8x32xf32> -> vector<8x32xf32>
    %194 = arith.addf %174, %193 : vector<8x32xf32>
    %195 = tpu.concatenate %114, %194 in 0 : vector<8x32xf32>, vector<8x32xf32> -> vector<16x32xf32>
    %c0_61 = arith.constant 0 : index
    %c0_62 = arith.constant 0 : index
    %c0_63 = arith.constant 0 : index
    %196 = vector.load %arg7[%c0_61, %c0_62, %c0_63] : memref<2x1x32xf32, #tpu.memory_space<vmem>>, vector<1x1x32xf32>
    %197 = vector.shape_cast %196 : vector<1x1x32xf32> to vector<1x32xf32>
    %198 = vector.broadcast %197 : vector<1x32xf32> to vector<16x32xf32>
    %199 = arith.addf %195, %198 : vector<16x32xf32>
    %200 = arith.addf %199, %24 : vector<16x32xf32>
    %c0_64 = arith.constant 0 : index
    %c0_65 = arith.constant 0 : index
    %c0_66 = arith.constant 0 : index
    %201 = vector.load %arg8[%c0_64, %c0_65, %c0_66] : memref<2x1x32xf32, #tpu.memory_space<vmem>>, vector<1x1x32xf32>
    %202 = vector.shape_cast %201 : vector<1x1x32xf32> to vector<1x32xf32>
    %c0_67 = arith.constant 0 : index
    %c0_68 = arith.constant 0 : index
    %c0_69 = arith.constant 0 : index
    %203 = vector.load %arg9[%c0_67, %c0_68, %c0_69] : memref<2x1x32xf32, #tpu.memory_space<vmem>>, vector<1x1x32xf32>
    %204 = vector.shape_cast %203 : vector<1x1x32xf32> to vector<1x32xf32>
    %cst_70 = arith.constant dense<0.000000e+00> : vector<16xf32>
    %205 = vector.multi_reduction <add>, %200, %cst_70 [1] : vector<16x32xf32> to vector<16xf32>
    %206 = vector.shape_cast %205 : vector<16xf32> to vector<16x1xf32>
    %cst_71 = arith.constant 3.200000e+01 : f32
    %207 = vector.broadcast %cst_71 : f32 to vector<16x1xf32>
    %208 = arith.divf %206, %207 : vector<16x1xf32>
    %209 = vector.broadcast %208 : vector<16x1xf32> to vector<16x32xf32>
    %210 = arith.subf %200, %209 : vector<16x32xf32>
    %211 = arith.mulf %210, %210 : vector<16x32xf32>
    %cst_72 = arith.constant dense<0.000000e+00> : vector<16xf32>
    %212 = vector.multi_reduction <add>, %211, %cst_72 [1] : vector<16x32xf32> to vector<16xf32>
    %213 = vector.shape_cast %212 : vector<16xf32> to vector<16x1xf32>
    %cst_73 = arith.constant 3.200000e+01 : f32
    %214 = vector.broadcast %cst_73 : f32 to vector<16x1xf32>
    %215 = arith.divf %213, %214 : vector<16x1xf32>
    %216 = vector.broadcast %208 : vector<16x1xf32> to vector<16x32xf32>
    %217 = arith.subf %200, %216 : vector<16x32xf32>
    %cst_74 = arith.constant 9.99999996E-13 : f32
    %218 = vector.broadcast %cst_74 : f32 to vector<16x1xf32>
    %219 = arith.addf %215, %218 : vector<16x1xf32>
    %220 = math.rsqrt %219 : vector<16x1xf32>
    %221 = vector.broadcast %220 : vector<16x1xf32> to vector<16x32xf32>
    %222 = arith.mulf %217, %221 : vector<16x32xf32>
    %223 = vector.broadcast %202 : vector<1x32xf32> to vector<16x32xf32>
    %224 = arith.mulf %222, %223 : vector<16x32xf32>
    %225 = vector.broadcast %204 : vector<1x32xf32> to vector<16x32xf32>
    %226 = arith.addf %224, %225 : vector<16x32xf32>
    %c0_75 = arith.constant 0 : index
    %c0_76 = arith.constant 0 : index
    %c0_77 = arith.constant 0 : index
    %227 = vector.load %arg10[%c0_75, %c0_76, %c0_77] : memref<2x32x64xf32, #tpu.memory_space<vmem>>, vector<1x32x64xf32>
    %228 = vector.shape_cast %227 : vector<1x32x64xf32> to vector<32x64xf32>
    %cst_78 = arith.constant dense<0.000000e+00> : vector<16x64xf32>
    %229 = tpu.matmul %226, %228, %cst_78 {dimension_numbers = #tpu.dot_dimension_numbers<[1], [0], [0], [1], [0, 0, 1, 1], [], []>} : vector<16x32xf32>, vector<32x64xf32>, vector<16x64xf32> -> vector<16x64xf32>
    %c0_79 = arith.constant 0 : index
    %c0_80 = arith.constant 0 : index
    %c0_81 = arith.constant 0 : index
    %230 = vector.load %arg11[%c0_79, %c0_80, %c0_81] : memref<2x1x64xf32, #tpu.memory_space<vmem>>, vector<1x1x64xf32>
    %231 = vector.shape_cast %230 : vector<1x1x64xf32> to vector<1x64xf32>
    %232 = vector.broadcast %231 : vector<1x64xf32> to vector<16x64xf32>
    %233 = arith.addf %229, %232 : vector<16x64xf32>
    %cst_82 = arith.constant 5.000000e-01 : f32
    %234 = vector.broadcast %cst_82 : f32 to vector<16x64xf32>
    %235 = arith.mulf %234, %233 : vector<16x64xf32>
    %cst_83 = arith.constant 4.471500e-02 : f32
    %236 = vector.broadcast %cst_83 : f32 to vector<16x64xf32>
    %237 = arith.mulf %236, %233 : vector<16x64xf32>
    %238 = arith.mulf %237, %233 : vector<16x64xf32>
    %239 = arith.mulf %238, %233 : vector<16x64xf32>
    %240 = arith.addf %233, %239 : vector<16x64xf32>
    %cst_84 = arith.constant 0.797884583 : f32
    %241 = vector.broadcast %cst_84 : f32 to vector<16x64xf32>
    %242 = arith.mulf %241, %240 : vector<16x64xf32>
    %243 = math.tanh %242 : vector<16x64xf32>
    %cst_85 = arith.constant 1.000000e+00 : f32
    %244 = vector.broadcast %cst_85 : f32 to vector<16x64xf32>
    %245 = arith.addf %244, %243 : vector<16x64xf32>
    %246 = arith.mulf %235, %245 : vector<16x64xf32>
    %c0_86 = arith.constant 0 : index
    %c0_87 = arith.constant 0 : index
    %c0_88 = arith.constant 0 : index
    %247 = vector.load %arg12[%c0_86, %c0_87, %c0_88] : memref<2x64x32xf32, #tpu.memory_space<vmem>>, vector<1x64x32xf32>
    %248 = vector.shape_cast %247 : vector<1x64x32xf32> to vector<64x32xf32>
    %cst_89 = arith.constant dense<0.000000e+00> : vector<16x32xf32>
    %249 = tpu.matmul %246, %248, %cst_89 {dimension_numbers = #tpu.dot_dimension_numbers<[1], [0], [0], [1], [0, 0, 1, 1], [], []>} : vector<16x64xf32>, vector<64x32xf32>, vector<16x32xf32> -> vector<16x32xf32>
    %c0_90 = arith.constant 0 : index
    %c0_91 = arith.constant 0 : index
    %c0_92 = arith.constant 0 : index
    %250 = vector.load %arg13[%c0_90, %c0_91, %c0_92] : memref<2x1x32xf32, #tpu.memory_space<vmem>>, vector<1x1x32xf32>
    %251 = vector.shape_cast %250 : vector<1x1x32xf32> to vector<1x32xf32>
    %252 = vector.broadcast %251 : vector<1x32xf32> to vector<16x32xf32>
    %253 = arith.addf %249, %252 : vector<16x32xf32>
    %254 = arith.addf %253, %226 : vector<16x32xf32>
    %c0_93 = arith.constant 0 : index
    %c0_94 = arith.constant 0 : index
    %c0_95 = arith.constant 0 : index
    %255 = vector.load %arg14[%c0_93, %c0_94, %c0_95] : memref<2x1x32xf32, #tpu.memory_space<vmem>>, vector<1x1x32xf32>
    %256 = vector.shape_cast %255 : vector<1x1x32xf32> to vector<1x32xf32>
    %c0_96 = arith.constant 0 : index
    %c0_97 = arith.constant 0 : index
    %c0_98 = arith.constant 0 : index
    %257 = vector.load %arg15[%c0_96, %c0_97, %c0_98] : memref<2x1x32xf32, #tpu.memory_space<vmem>>, vector<1x1x32xf32>
    %258 = vector.shape_cast %257 : vector<1x1x32xf32> to vector<1x32xf32>
    %cst_99 = arith.constant dense<0.000000e+00> : vector<16xf32>
    %259 = vector.multi_reduction <add>, %254, %cst_99 [1] : vector<16x32xf32> to vector<16xf32>
    %260 = vector.shape_cast %259 : vector<16xf32> to vector<16x1xf32>
    %cst_100 = arith.constant 3.200000e+01 : f32
    %261 = vector.broadcast %cst_100 : f32 to vector<16x1xf32>
    %262 = arith.divf %260, %261 : vector<16x1xf32>
    %263 = vector.broadcast %262 : vector<16x1xf32> to vector<16x32xf32>
    %264 = arith.subf %254, %263 : vector<16x32xf32>
    %265 = arith.mulf %264, %264 : vector<16x32xf32>
    %cst_101 = arith.constant dense<0.000000e+00> : vector<16xf32>
    %266 = vector.multi_reduction <add>, %265, %cst_101 [1] : vector<16x32xf32> to vector<16xf32>
    %267 = vector.shape_cast %266 : vector<16xf32> to vector<16x1xf32>
    %cst_102 = arith.constant 3.200000e+01 : f32
    %268 = vector.broadcast %cst_102 : f32 to vector<16x1xf32>
    %269 = arith.divf %267, %268 : vector<16x1xf32>
    %270 = vector.broadcast %262 : vector<16x1xf32> to vector<16x32xf32>
    %271 = arith.subf %254, %270 : vector<16x32xf32>
    %cst_103 = arith.constant 9.99999996E-13 : f32
    %272 = vector.broadcast %cst_103 : f32 to vector<16x1xf32>
    %273 = arith.addf %269, %272 : vector<16x1xf32>
    %274 = math.rsqrt %273 : vector<16x1xf32>
    %275 = vector.broadcast %274 : vector<16x1xf32> to vector<16x32xf32>
    %276 = arith.mulf %271, %275 : vector<16x32xf32>
    %277 = vector.broadcast %256 : vector<1x32xf32> to vector<16x32xf32>
    %278 = arith.mulf %276, %277 : vector<16x32xf32>
    %279 = vector.broadcast %258 : vector<1x32xf32> to vector<16x32xf32>
    %280 = arith.addf %278, %279 : vector<16x32xf32>
    %c1 = arith.constant 1 : index
    %c0_104 = arith.constant 0 : index
    %c0_105 = arith.constant 0 : index
    %281 = vector.load %arg4[%c1, %c0_104, %c0_105] : memref<2x32x96xf32, #tpu.memory_space<vmem>>, vector<1x32x96xf32>
    %282 = vector.shape_cast %281 : vector<1x32x96xf32> to vector<32x96xf32>
    %cst_106 = arith.constant dense<0.000000e+00> : vector<16x96xf32>
    %283 = tpu.matmul %280, %282, %cst_106 {dimension_numbers = #tpu.dot_dimension_numbers<[1], [0], [0], [1], [0, 0, 1, 1], [], []>} : vector<16x32xf32>, vector<32x96xf32>, vector<16x96xf32> -> vector<16x96xf32>
    %c1_107 = arith.constant 1 : index
    %c0_108 = arith.constant 0 : index
    %c0_109 = arith.constant 0 : index
    %284 = vector.load %arg5[%c1_107, %c0_108, %c0_109] : memref<2x1x96xf32, #tpu.memory_space<vmem>>, vector<1x1x96xf32>
    %285 = vector.shape_cast %284 : vector<1x1x96xf32> to vector<1x96xf32>
    %286 = vector.broadcast %285 : vector<1x96xf32> to vector<16x96xf32>
    %287 = arith.addf %283, %286 : vector<16x96xf32>
    %c1_110 = arith.constant 1 : index
    %c0_111 = arith.constant 0 : index
    %c0_112 = arith.constant 0 : index
    %288 = vector.load %arg6[%c1_110, %c0_111, %c0_112] : memref<2x32x32xf32, #tpu.memory_space<vmem>>, vector<1x32x32xf32>
    %289 = vector.shape_cast %288 : vector<1x32x32xf32> to vector<32x32xf32>
    %290 = vector.extract_strided_slice %25 {offsets = [0, 0], sizes = [8, 8], strides = [1, 1]} : vector<16x8xf32> to vector<8x8xf32>
    %291 = vector.extract_strided_slice %287 {offsets = [0, 0], sizes = [8, 8], strides = [1, 1]} : vector<16x96xf32> to vector<8x8xf32>
    %292 = vector.extract_strided_slice %287 {offsets = [0, 32], sizes = [8, 8], strides = [1, 1]} : vector<16x96xf32> to vector<8x8xf32>
    %293 = vector.extract_strided_slice %287 {offsets = [0, 64], sizes = [8, 8], strides = [1, 1]} : vector<16x96xf32> to vector<8x8xf32>
    %294 = tpu.transpose %292, [1, 0] : vector<8x8xf32> -> vector<8x8xf32>
    %cst_113 = arith.constant dense<0.000000e+00> : vector<8x8xf32>
    %295 = tpu.matmul %291, %294, %cst_113 {dimension_numbers = #tpu.dot_dimension_numbers<[1], [0], [0], [1], [0, 0, 1, 1], [], []>} : vector<8x8xf32>, vector<8x8xf32>, vector<8x8xf32> -> vector<8x8xf32>
    %296 = arith.addf %295, %290 : vector<8x8xf32>
    %cst_114 = arith.constant dense<0xFF800000> : vector<8xf32>
    %297 = vector.multi_reduction <maximumf>, %296, %cst_114 [1] : vector<8x8xf32> to vector<8xf32>
    %298 = vector.shape_cast %297 : vector<8xf32> to vector<8x1xf32>
    %299 = vector.broadcast %298 : vector<8x1xf32> to vector<8x8xf32>
    %300 = arith.subf %296, %299 : vector<8x8xf32>
    %301 = math.exp %300 : vector<8x8xf32>
    %cst_115 = arith.constant dense<0.000000e+00> : vector<8xf32>
    %302 = vector.multi_reduction <add>, %301, %cst_115 [1] : vector<8x8xf32> to vector<8xf32>
    %303 = vector.shape_cast %302 : vector<8xf32> to vector<8x1xf32>
    %304 = tpu.reciprocal %303 {approx = true} : vector<8x1xf32> -> vector<8x1xf32>
    %305 = vector.broadcast %304 : vector<8x1xf32> to vector<8x8xf32>
    %306 = arith.mulf %301, %305 : vector<8x8xf32>
    %cst_116 = arith.constant dense<0.000000e+00> : vector<8x8xf32>
    %307 = tpu.matmul %306, %293, %cst_116 {dimension_numbers = #tpu.dot_dimension_numbers<[1], [0], [0], [1], [0, 0, 1, 1], [], []>} : vector<8x8xf32>, vector<8x8xf32>, vector<8x8xf32> -> vector<8x8xf32>
    %308 = vector.extract_strided_slice %289 {offsets = [0, 0], sizes = [8, 32], strides = [1, 1]} : vector<32x32xf32> to vector<8x32xf32>
    %cst_117 = arith.constant dense<0.000000e+00> : vector<8x32xf32>
    %309 = tpu.matmul %307, %308, %cst_117 {dimension_numbers = #tpu.dot_dimension_numbers<[1], [0], [0], [1], [0, 0, 1, 1], [], []>} : vector<8x8xf32>, vector<8x32xf32>, vector<8x32xf32> -> vector<8x32xf32>
    %310 = vector.extract_strided_slice %287 {offsets = [0, 8], sizes = [8, 8], strides = [1, 1]} : vector<16x96xf32> to vector<8x8xf32>
    %311 = vector.extract_strided_slice %287 {offsets = [0, 40], sizes = [8, 8], strides = [1, 1]} : vector<16x96xf32> to vector<8x8xf32>
    %312 = vector.extract_strided_slice %287 {offsets = [0, 72], sizes = [8, 8], strides = [1, 1]} : vector<16x96xf32> to vector<8x8xf32>
    %313 = tpu.transpose %311, [1, 0] : vector<8x8xf32> -> vector<8x8xf32>
    %cst_118 = arith.constant dense<0.000000e+00> : vector<8x8xf32>
    %314 = tpu.matmul %310, %313, %cst_118 {dimension_numbers = #tpu.dot_dimension_numbers<[1], [0], [0], [1], [0, 0, 1, 1], [], []>} : vector<8x8xf32>, vector<8x8xf32>, vector<8x8xf32> -> vector<8x8xf32>
    %315 = arith.addf %314, %290 : vector<8x8xf32>
    %cst_119 = arith.constant dense<0xFF800000> : vector<8xf32>
    %316 = vector.multi_reduction <maximumf>, %315, %cst_119 [1] : vector<8x8xf32> to vector<8xf32>
    %317 = vector.shape_cast %316 : vector<8xf32> to vector<8x1xf32>
    %318 = vector.broadcast %317 : vector<8x1xf32> to vector<8x8xf32>
    %319 = arith.subf %315, %318 : vector<8x8xf32>
    %320 = math.exp %319 : vector<8x8xf32>
    %cst_120 = arith.constant dense<0.000000e+00> : vector<8xf32>
    %321 = vector.multi_reduction <add>, %320, %cst_120 [1] : vector<8x8xf32> to vector<8xf32>
    %322 = vector.shape_cast %321 : vector<8xf32> to vector<8x1xf32>
    %323 = tpu.reciprocal %322 {approx = true} : vector<8x1xf32> -> vector<8x1xf32>
    %324 = vector.broadcast %323 : vector<8x1xf32> to vector<8x8xf32>
    %325 = arith.mulf %320, %324 : vector<8x8xf32>
    %cst_121 = arith.constant dense<0.000000e+00> : vector<8x8xf32>
    %326 = tpu.matmul %325, %312, %cst_121 {dimension_numbers = #tpu.dot_dimension_numbers<[1], [0], [0], [1], [0, 0, 1, 1], [], []>} : vector<8x8xf32>, vector<8x8xf32>, vector<8x8xf32> -> vector<8x8xf32>
    %327 = vector.extract_strided_slice %289 {offsets = [8, 0], sizes = [8, 32], strides = [1, 1]} : vector<32x32xf32> to vector<8x32xf32>
    %cst_122 = arith.constant dense<0.000000e+00> : vector<8x32xf32>
    %328 = tpu.matmul %326, %327, %cst_122 {dimension_numbers = #tpu.dot_dimension_numbers<[1], [0], [0], [1], [0, 0, 1, 1], [], []>} : vector<8x8xf32>, vector<8x32xf32>, vector<8x32xf32> -> vector<8x32xf32>
    %329 = arith.addf %309, %328 : vector<8x32xf32>
    %330 = vector.extract_strided_slice %287 {offsets = [0, 16], sizes = [8, 8], strides = [1, 1]} : vector<16x96xf32> to vector<8x8xf32>
    %331 = vector.extract_strided_slice %287 {offsets = [0, 48], sizes = [8, 8], strides = [1, 1]} : vector<16x96xf32> to vector<8x8xf32>
    %332 = vector.extract_strided_slice %287 {offsets = [0, 80], sizes = [8, 8], strides = [1, 1]} : vector<16x96xf32> to vector<8x8xf32>
    %333 = tpu.transpose %331, [1, 0] : vector<8x8xf32> -> vector<8x8xf32>
    %cst_123 = arith.constant dense<0.000000e+00> : vector<8x8xf32>
    %334 = tpu.matmul %330, %333, %cst_123 {dimension_numbers = #tpu.dot_dimension_numbers<[1], [0], [0], [1], [0, 0, 1, 1], [], []>} : vector<8x8xf32>, vector<8x8xf32>, vector<8x8xf32> -> vector<8x8xf32>
    %335 = arith.addf %334, %290 : vector<8x8xf32>
    %cst_124 = arith.constant dense<0xFF800000> : vector<8xf32>
    %336 = vector.multi_reduction <maximumf>, %335, %cst_124 [1] : vector<8x8xf32> to vector<8xf32>
    %337 = vector.shape_cast %336 : vector<8xf32> to vector<8x1xf32>
    %338 = vector.broadcast %337 : vector<8x1xf32> to vector<8x8xf32>
    %339 = arith.subf %335, %338 : vector<8x8xf32>
    %340 = math.exp %339 : vector<8x8xf32>
    %cst_125 = arith.constant dense<0.000000e+00> : vector<8xf32>
    %341 = vector.multi_reduction <add>, %340, %cst_125 [1] : vector<8x8xf32> to vector<8xf32>
    %342 = vector.shape_cast %341 : vector<8xf32> to vector<8x1xf32>
    %343 = tpu.reciprocal %342 {approx = true} : vector<8x1xf32> -> vector<8x1xf32>
    %344 = vector.broadcast %343 : vector<8x1xf32> to vector<8x8xf32>
    %345 = arith.mulf %340, %344 : vector<8x8xf32>
    %cst_126 = arith.constant dense<0.000000e+00> : vector<8x8xf32>
    %346 = tpu.matmul %345, %332, %cst_126 {dimension_numbers = #tpu.dot_dimension_numbers<[1], [0], [0], [1], [0, 0, 1, 1], [], []>} : vector<8x8xf32>, vector<8x8xf32>, vector<8x8xf32> -> vector<8x8xf32>
    %347 = vector.extract_strided_slice %289 {offsets = [16, 0], sizes = [8, 32], strides = [1, 1]} : vector<32x32xf32> to vector<8x32xf32>
    %cst_127 = arith.constant dense<0.000000e+00> : vector<8x32xf32>
    %348 = tpu.matmul %346, %347, %cst_127 {dimension_numbers = #tpu.dot_dimension_numbers<[1], [0], [0], [1], [0, 0, 1, 1], [], []>} : vector<8x8xf32>, vector<8x32xf32>, vector<8x32xf32> -> vector<8x32xf32>
    %349 = arith.addf %329, %348 : vector<8x32xf32>
    %350 = vector.extract_strided_slice %287 {offsets = [0, 24], sizes = [8, 8], strides = [1, 1]} : vector<16x96xf32> to vector<8x8xf32>
    %351 = vector.extract_strided_slice %287 {offsets = [0, 56], sizes = [8, 8], strides = [1, 1]} : vector<16x96xf32> to vector<8x8xf32>
    %352 = vector.extract_strided_slice %287 {offsets = [0, 88], sizes = [8, 8], strides = [1, 1]} : vector<16x96xf32> to vector<8x8xf32>
    %353 = tpu.transpose %351, [1, 0] : vector<8x8xf32> -> vector<8x8xf32>
    %cst_128 = arith.constant dense<0.000000e+00> : vector<8x8xf32>
    %354 = tpu.matmul %350, %353, %cst_128 {dimension_numbers = #tpu.dot_dimension_numbers<[1], [0], [0], [1], [0, 0, 1, 1], [], []>} : vector<8x8xf32>, vector<8x8xf32>, vector<8x8xf32> -> vector<8x8xf32>
    %355 = arith.addf %354, %290 : vector<8x8xf32>
    %cst_129 = arith.constant dense<0xFF800000> : vector<8xf32>
    %356 = vector.multi_reduction <maximumf>, %355, %cst_129 [1] : vector<8x8xf32> to vector<8xf32>
    %357 = vector.shape_cast %356 : vector<8xf32> to vector<8x1xf32>
    %358 = vector.broadcast %357 : vector<8x1xf32> to vector<8x8xf32>
    %359 = arith.subf %355, %358 : vector<8x8xf32>
    %360 = math.exp %359 : vector<8x8xf32>
    %cst_130 = arith.constant dense<0.000000e+00> : vector<8xf32>
    %361 = vector.multi_reduction <add>, %360, %cst_130 [1] : vector<8x8xf32> to vector<8xf32>
    %362 = vector.shape_cast %361 : vector<8xf32> to vector<8x1xf32>
    %363 = tpu.reciprocal %362 {approx = true} : vector<8x1xf32> -> vector<8x1xf32>
    %364 = vector.broadcast %363 : vector<8x1xf32> to vector<8x8xf32>
    %365 = arith.mulf %360, %364 : vector<8x8xf32>
    %cst_131 = arith.constant dense<0.000000e+00> : vector<8x8xf32>
    %366 = tpu.matmul %365, %352, %cst_131 {dimension_numbers = #tpu.dot_dimension_numbers<[1], [0], [0], [1], [0, 0, 1, 1], [], []>} : vector<8x8xf32>, vector<8x8xf32>, vector<8x8xf32> -> vector<8x8xf32>
    %367 = vector.extract_strided_slice %289 {offsets = [24, 0], sizes = [8, 32], strides = [1, 1]} : vector<32x32xf32> to vector<8x32xf32>
    %cst_132 = arith.constant dense<0.000000e+00> : vector<8x32xf32>
    %368 = tpu.matmul %366, %367, %cst_132 {dimension_numbers = #tpu.dot_dimension_numbers<[1], [0], [0], [1], [0, 0, 1, 1], [], []>} : vector<8x8xf32>, vector<8x32xf32>, vector<8x32xf32> -> vector<8x32xf32>
    %369 = arith.addf %349, %368 : vector<8x32xf32>
    %370 = vector.extract_strided_slice %25 {offsets = [8, 0], sizes = [8, 8], strides = [1, 1]} : vector<16x8xf32> to vector<8x8xf32>
    %371 = vector.extract_strided_slice %287 {offsets = [8, 0], sizes = [8, 8], strides = [1, 1]} : vector<16x96xf32> to vector<8x8xf32>
    %372 = vector.extract_strided_slice %287 {offsets = [8, 32], sizes = [8, 8], strides = [1, 1]} : vector<16x96xf32> to vector<8x8xf32>
    %373 = vector.extract_strided_slice %287 {offsets = [8, 64], sizes = [8, 8], strides = [1, 1]} : vector<16x96xf32> to vector<8x8xf32>
    %374 = tpu.transpose %372, [1, 0] : vector<8x8xf32> -> vector<8x8xf32>
    %cst_133 = arith.constant dense<0.000000e+00> : vector<8x8xf32>
    %375 = tpu.matmul %371, %374, %cst_133 {dimension_numbers = #tpu.dot_dimension_numbers<[1], [0], [0], [1], [0, 0, 1, 1], [], []>} : vector<8x8xf32>, vector<8x8xf32>, vector<8x8xf32> -> vector<8x8xf32>
    %376 = arith.addf %375, %370 : vector<8x8xf32>
    %cst_134 = arith.constant dense<0xFF800000> : vector<8xf32>
    %377 = vector.multi_reduction <maximumf>, %376, %cst_134 [1] : vector<8x8xf32> to vector<8xf32>
    %378 = vector.shape_cast %377 : vector<8xf32> to vector<8x1xf32>
    %379 = vector.broadcast %378 : vector<8x1xf32> to vector<8x8xf32>
    %380 = arith.subf %376, %379 : vector<8x8xf32>
    %381 = math.exp %380 : vector<8x8xf32>
    %cst_135 = arith.constant dense<0.000000e+00> : vector<8xf32>
    %382 = vector.multi_reduction <add>, %381, %cst_135 [1] : vector<8x8xf32> to vector<8xf32>
    %383 = vector.shape_cast %382 : vector<8xf32> to vector<8x1xf32>
    %384 = tpu.reciprocal %383 {approx = true} : vector<8x1xf32> -> vector<8x1xf32>
    %385 = vector.broadcast %384 : vector<8x1xf32> to vector<8x8xf32>
    %386 = arith.mulf %381, %385 : vector<8x8xf32>
    %cst_136 = arith.constant dense<0.000000e+00> : vector<8x8xf32>
    %387 = tpu.matmul %386, %373, %cst_136 {dimension_numbers = #tpu.dot_dimension_numbers<[1], [0], [0], [1], [0, 0, 1, 1], [], []>} : vector<8x8xf32>, vector<8x8xf32>, vector<8x8xf32> -> vector<8x8xf32>
    %388 = vector.extract_strided_slice %289 {offsets = [0, 0], sizes = [8, 32], strides = [1, 1]} : vector<32x32xf32> to vector<8x32xf32>
    %cst_137 = arith.constant dense<0.000000e+00> : vector<8x32xf32>
    %389 = tpu.matmul %387, %388, %cst_137 {dimension_numbers = #tpu.dot_dimension_numbers<[1], [0], [0], [1], [0, 0, 1, 1], [], []>} : vector<8x8xf32>, vector<8x32xf32>, vector<8x32xf32> -> vector<8x32xf32>
    %390 = vector.extract_strided_slice %287 {offsets = [8, 8], sizes = [8, 8], strides = [1, 1]} : vector<16x96xf32> to vector<8x8xf32>
    %391 = vector.extract_strided_slice %287 {offsets = [8, 40], sizes = [8, 8], strides = [1, 1]} : vector<16x96xf32> to vector<8x8xf32>
    %392 = vector.extract_strided_slice %287 {offsets = [8, 72], sizes = [8, 8], strides = [1, 1]} : vector<16x96xf32> to vector<8x8xf32>
    %393 = tpu.transpose %391, [1, 0] : vector<8x8xf32> -> vector<8x8xf32>
    %cst_138 = arith.constant dense<0.000000e+00> : vector<8x8xf32>
    %394 = tpu.matmul %390, %393, %cst_138 {dimension_numbers = #tpu.dot_dimension_numbers<[1], [0], [0], [1], [0, 0, 1, 1], [], []>} : vector<8x8xf32>, vector<8x8xf32>, vector<8x8xf32> -> vector<8x8xf32>
    %395 = arith.addf %394, %370 : vector<8x8xf32>
    %cst_139 = arith.constant dense<0xFF800000> : vector<8xf32>
    %396 = vector.multi_reduction <maximumf>, %395, %cst_139 [1] : vector<8x8xf32> to vector<8xf32>
    %397 = vector.shape_cast %396 : vector<8xf32> to vector<8x1xf32>
    %398 = vector.broadcast %397 : vector<8x1xf32> to vector<8x8xf32>
    %399 = arith.subf %395, %398 : vector<8x8xf32>
    %400 = math.exp %399 : vector<8x8xf32>
    %cst_140 = arith.constant dense<0.000000e+00> : vector<8xf32>
    %401 = vector.multi_reduction <add>, %400, %cst_140 [1] : vector<8x8xf32> to vector<8xf32>
    %402 = vector.shape_cast %401 : vector<8xf32> to vector<8x1xf32>
    %403 = tpu.reciprocal %402 {approx = true} : vector<8x1xf32> -> vector<8x1xf32>
    %404 = vector.broadcast %403 : vector<8x1xf32> to vector<8x8xf32>
    %405 = arith.mulf %400, %404 : vector<8x8xf32>
    %cst_141 = arith.constant dense<0.000000e+00> : vector<8x8xf32>
    %406 = tpu.matmul %405, %392, %cst_141 {dimension_numbers = #tpu.dot_dimension_numbers<[1], [0], [0], [1], [0, 0, 1, 1], [], []>} : vector<8x8xf32>, vector<8x8xf32>, vector<8x8xf32> -> vector<8x8xf32>
    %407 = vector.extract_strided_slice %289 {offsets = [8, 0], sizes = [8, 32], strides = [1, 1]} : vector<32x32xf32> to vector<8x32xf32>
    %cst_142 = arith.constant dense<0.000000e+00> : vector<8x32xf32>
    %408 = tpu.matmul %406, %407, %cst_142 {dimension_numbers = #tpu.dot_dimension_numbers<[1], [0], [0], [1], [0, 0, 1, 1], [], []>} : vector<8x8xf32>, vector<8x32xf32>, vector<8x32xf32> -> vector<8x32xf32>
    %409 = arith.addf %389, %408 : vector<8x32xf32>
    %410 = vector.extract_strided_slice %287 {offsets = [8, 16], sizes = [8, 8], strides = [1, 1]} : vector<16x96xf32> to vector<8x8xf32>
    %411 = vector.extract_strided_slice %287 {offsets = [8, 48], sizes = [8, 8], strides = [1, 1]} : vector<16x96xf32> to vector<8x8xf32>
    %412 = vector.extract_strided_slice %287 {offsets = [8, 80], sizes = [8, 8], strides = [1, 1]} : vector<16x96xf32> to vector<8x8xf32>
    %413 = tpu.transpose %411, [1, 0] : vector<8x8xf32> -> vector<8x8xf32>
    %cst_143 = arith.constant dense<0.000000e+00> : vector<8x8xf32>
    %414 = tpu.matmul %410, %413, %cst_143 {dimension_numbers = #tpu.dot_dimension_numbers<[1], [0], [0], [1], [0, 0, 1, 1], [], []>} : vector<8x8xf32>, vector<8x8xf32>, vector<8x8xf32> -> vector<8x8xf32>
    %415 = arith.addf %414, %370 : vector<8x8xf32>
    %cst_144 = arith.constant dense<0xFF800000> : vector<8xf32>
    %416 = vector.multi_reduction <maximumf>, %415, %cst_144 [1] : vector<8x8xf32> to vector<8xf32>
    %417 = vector.shape_cast %416 : vector<8xf32> to vector<8x1xf32>
    %418 = vector.broadcast %417 : vector<8x1xf32> to vector<8x8xf32>
    %419 = arith.subf %415, %418 : vector<8x8xf32>
    %420 = math.exp %419 : vector<8x8xf32>
    %cst_145 = arith.constant dense<0.000000e+00> : vector<8xf32>
    %421 = vector.multi_reduction <add>, %420, %cst_145 [1] : vector<8x8xf32> to vector<8xf32>
    %422 = vector.shape_cast %421 : vector<8xf32> to vector<8x1xf32>
    %423 = tpu.reciprocal %422 {approx = true} : vector<8x1xf32> -> vector<8x1xf32>
    %424 = vector.broadcast %423 : vector<8x1xf32> to vector<8x8xf32>
    %425 = arith.mulf %420, %424 : vector<8x8xf32>
    %cst_146 = arith.constant dense<0.000000e+00> : vector<8x8xf32>
    %426 = tpu.matmul %425, %412, %cst_146 {dimension_numbers = #tpu.dot_dimension_numbers<[1], [0], [0], [1], [0, 0, 1, 1], [], []>} : vector<8x8xf32>, vector<8x8xf32>, vector<8x8xf32> -> vector<8x8xf32>
    %427 = vector.extract_strided_slice %289 {offsets = [16, 0], sizes = [8, 32], strides = [1, 1]} : vector<32x32xf32> to vector<8x32xf32>
    %cst_147 = arith.constant dense<0.000000e+00> : vector<8x32xf32>
    %428 = tpu.matmul %426, %427, %cst_147 {dimension_numbers = #tpu.dot_dimension_numbers<[1], [0], [0], [1], [0, 0, 1, 1], [], []>} : vector<8x8xf32>, vector<8x32xf32>, vector<8x32xf32> -> vector<8x32xf32>
    %429 = arith.addf %409, %428 : vector<8x32xf32>
    %430 = vector.extract_strided_slice %287 {offsets = [8, 24], sizes = [8, 8], strides = [1, 1]} : vector<16x96xf32> to vector<8x8xf32>
    %431 = vector.extract_strided_slice %287 {offsets = [8, 56], sizes = [8, 8], strides = [1, 1]} : vector<16x96xf32> to vector<8x8xf32>
    %432 = vector.extract_strided_slice %287 {offsets = [8, 88], sizes = [8, 8], strides = [1, 1]} : vector<16x96xf32> to vector<8x8xf32>
    %433 = tpu.transpose %431, [1, 0] : vector<8x8xf32> -> vector<8x8xf32>
    %cst_148 = arith.constant dense<0.000000e+00> : vector<8x8xf32>
    %434 = tpu.matmul %430, %433, %cst_148 {dimension_numbers = #tpu.dot_dimension_numbers<[1], [0], [0], [1], [0, 0, 1, 1], [], []>} : vector<8x8xf32>, vector<8x8xf32>, vector<8x8xf32> -> vector<8x8xf32>
    %435 = arith.addf %434, %370 : vector<8x8xf32>
    %cst_149 = arith.constant dense<0xFF800000> : vector<8xf32>
    %436 = vector.multi_reduction <maximumf>, %435, %cst_149 [1] : vector<8x8xf32> to vector<8xf32>
    %437 = vector.shape_cast %436 : vector<8xf32> to vector<8x1xf32>
    %438 = vector.broadcast %437 : vector<8x1xf32> to vector<8x8xf32>
    %439 = arith.subf %435, %438 : vector<8x8xf32>
    %440 = math.exp %439 : vector<8x8xf32>
    %cst_150 = arith.constant dense<0.000000e+00> : vector<8xf32>
    %441 = vector.multi_reduction <add>, %440, %cst_150 [1] : vector<8x8xf32> to vector<8xf32>
    %442 = vector.shape_cast %441 : vector<8xf32> to vector<8x1xf32>
    %443 = tpu.reciprocal %442 {approx = true} : vector<8x1xf32> -> vector<8x1xf32>
    %444 = vector.broadcast %443 : vector<8x1xf32> to vector<8x8xf32>
    %445 = arith.mulf %440, %444 : vector<8x8xf32>
    %cst_151 = arith.constant dense<0.000000e+00> : vector<8x8xf32>
    %446 = tpu.matmul %445, %432, %cst_151 {dimension_numbers = #tpu.dot_dimension_numbers<[1], [0], [0], [1], [0, 0, 1, 1], [], []>} : vector<8x8xf32>, vector<8x8xf32>, vector<8x8xf32> -> vector<8x8xf32>
    %447 = vector.extract_strided_slice %289 {offsets = [24, 0], sizes = [8, 32], strides = [1, 1]} : vector<32x32xf32> to vector<8x32xf32>
    %cst_152 = arith.constant dense<0.000000e+00> : vector<8x32xf32>
    %448 = tpu.matmul %446, %447, %cst_152 {dimension_numbers = #tpu.dot_dimension_numbers<[1], [0], [0], [1], [0, 0, 1, 1], [], []>} : vector<8x8xf32>, vector<8x32xf32>, vector<8x32xf32> -> vector<8x32xf32>
    %449 = arith.addf %429, %448 : vector<8x32xf32>
    %450 = tpu.concatenate %369, %449 in 0 : vector<8x32xf32>, vector<8x32xf32> -> vector<16x32xf32>
    %c1_153 = arith.constant 1 : index
    %c0_154 = arith.constant 0 : index
    %c0_155 = arith.constant 0 : index
    %451 = vector.load %arg7[%c1_153, %c0_154, %c0_155] : memref<2x1x32xf32, #tpu.memory_space<vmem>>, vector<1x1x32xf32>
    %452 = vector.shape_cast %451 : vector<1x1x32xf32> to vector<1x32xf32>
    %453 = vector.broadcast %452 : vector<1x32xf32> to vector<16x32xf32>
    %454 = arith.addf %450, %453 : vector<16x32xf32>
    %455 = arith.addf %454, %280 : vector<16x32xf32>
    %c1_156 = arith.constant 1 : index
    %c0_157 = arith.constant 0 : index
    %c0_158 = arith.constant 0 : index
    %456 = vector.load %arg8[%c1_156, %c0_157, %c0_158] : memref<2x1x32xf32, #tpu.memory_space<vmem>>, vector<1x1x32xf32>
    %457 = vector.shape_cast %456 : vector<1x1x32xf32> to vector<1x32xf32>
    %c1_159 = arith.constant 1 : index
    %c0_160 = arith.constant 0 : index
    %c0_161 = arith.constant 0 : index
    %458 = vector.load %arg9[%c1_159, %c0_160, %c0_161] : memref<2x1x32xf32, #tpu.memory_space<vmem>>, vector<1x1x32xf32>
    %459 = vector.shape_cast %458 : vector<1x1x32xf32> to vector<1x32xf32>
    %cst_162 = arith.constant dense<0.000000e+00> : vector<16xf32>
    %460 = vector.multi_reduction <add>, %455, %cst_162 [1] : vector<16x32xf32> to vector<16xf32>
    %461 = vector.shape_cast %460 : vector<16xf32> to vector<16x1xf32>
    %cst_163 = arith.constant 3.200000e+01 : f32
    %462 = vector.broadcast %cst_163 : f32 to vector<16x1xf32>
    %463 = arith.divf %461, %462 : vector<16x1xf32>
    %464 = vector.broadcast %463 : vector<16x1xf32> to vector<16x32xf32>
    %465 = arith.subf %455, %464 : vector<16x32xf32>
    %466 = arith.mulf %465, %465 : vector<16x32xf32>
    %cst_164 = arith.constant dense<0.000000e+00> : vector<16xf32>
    %467 = vector.multi_reduction <add>, %466, %cst_164 [1] : vector<16x32xf32> to vector<16xf32>
    %468 = vector.shape_cast %467 : vector<16xf32> to vector<16x1xf32>
    %cst_165 = arith.constant 3.200000e+01 : f32
    %469 = vector.broadcast %cst_165 : f32 to vector<16x1xf32>
    %470 = arith.divf %468, %469 : vector<16x1xf32>
    %471 = vector.broadcast %463 : vector<16x1xf32> to vector<16x32xf32>
    %472 = arith.subf %455, %471 : vector<16x32xf32>
    %cst_166 = arith.constant 9.99999996E-13 : f32
    %473 = vector.broadcast %cst_166 : f32 to vector<16x1xf32>
    %474 = arith.addf %470, %473 : vector<16x1xf32>
    %475 = math.rsqrt %474 : vector<16x1xf32>
    %476 = vector.broadcast %475 : vector<16x1xf32> to vector<16x32xf32>
    %477 = arith.mulf %472, %476 : vector<16x32xf32>
    %478 = vector.broadcast %457 : vector<1x32xf32> to vector<16x32xf32>
    %479 = arith.mulf %477, %478 : vector<16x32xf32>
    %480 = vector.broadcast %459 : vector<1x32xf32> to vector<16x32xf32>
    %481 = arith.addf %479, %480 : vector<16x32xf32>
    %c1_167 = arith.constant 1 : index
    %c0_168 = arith.constant 0 : index
    %c0_169 = arith.constant 0 : index
    %482 = vector.load %arg10[%c1_167, %c0_168, %c0_169] : memref<2x32x64xf32, #tpu.memory_space<vmem>>, vector<1x32x64xf32>
    %483 = vector.shape_cast %482 : vector<1x32x64xf32> to vector<32x64xf32>
    %cst_170 = arith.constant dense<0.000000e+00> : vector<16x64xf32>
    %484 = tpu.matmul %481, %483, %cst_170 {dimension_numbers = #tpu.dot_dimension_numbers<[1], [0], [0], [1], [0, 0, 1, 1], [], []>} : vector<16x32xf32>, vector<32x64xf32>, vector<16x64xf32> -> vector<16x64xf32>
    %c1_171 = arith.constant 1 : index
    %c0_172 = arith.constant 0 : index
    %c0_173 = arith.constant 0 : index
    %485 = vector.load %arg11[%c1_171, %c0_172, %c0_173] : memref<2x1x64xf32, #tpu.memory_space<vmem>>, vector<1x1x64xf32>
    %486 = vector.shape_cast %485 : vector<1x1x64xf32> to vector<1x64xf32>
    %487 = vector.broadcast %486 : vector<1x64xf32> to vector<16x64xf32>
    %488 = arith.addf %484, %487 : vector<16x64xf32>
    %cst_174 = arith.constant 5.000000e-01 : f32
    %489 = vector.broadcast %cst_174 : f32 to vector<16x64xf32>
    %490 = arith.mulf %489, %488 : vector<16x64xf32>
    %cst_175 = arith.constant 4.471500e-02 : f32
    %491 = vector.broadcast %cst_175 : f32 to vector<16x64xf32>
    %492 = arith.mulf %491, %488 : vector<16x64xf32>
    %493 = arith.mulf %492, %488 : vector<16x64xf32>
    %494 = arith.mulf %493, %488 : vector<16x64xf32>
    %495 = arith.addf %488, %494 : vector<16x64xf32>
    %cst_176 = arith.constant 0.797884583 : f32
    %496 = vector.broadcast %cst_176 : f32 to vector<16x64xf32>
    %497 = arith.mulf %496, %495 : vector<16x64xf32>
    %498 = math.tanh %497 : vector<16x64xf32>
    %cst_177 = arith.constant 1.000000e+00 : f32
    %499 = vector.broadcast %cst_177 : f32 to vector<16x64xf32>
    %500 = arith.addf %499, %498 : vector<16x64xf32>
    %501 = arith.mulf %490, %500 : vector<16x64xf32>
    %c1_178 = arith.constant 1 : index
    %c0_179 = arith.constant 0 : index
    %c0_180 = arith.constant 0 : index
    %502 = vector.load %arg12[%c1_178, %c0_179, %c0_180] : memref<2x64x32xf32, #tpu.memory_space<vmem>>, vector<1x64x32xf32>
    %503 = vector.shape_cast %502 : vector<1x64x32xf32> to vector<64x32xf32>
    %cst_181 = arith.constant dense<0.000000e+00> : vector<16x32xf32>
    %504 = tpu.matmul %501, %503, %cst_181 {dimension_numbers = #tpu.dot_dimension_numbers<[1], [0], [0], [1], [0, 0, 1, 1], [], []>} : vector<16x64xf32>, vector<64x32xf32>, vector<16x32xf32> -> vector<16x32xf32>
    %c1_182 = arith.constant 1 : index
    %c0_183 = arith.constant 0 : index
    %c0_184 = arith.constant 0 : index
    %505 = vector.load %arg13[%c1_182, %c0_183, %c0_184] : memref<2x1x32xf32, #tpu.memory_space<vmem>>, vector<1x1x32xf32>
    %506 = vector.shape_cast %505 : vector<1x1x32xf32> to vector<1x32xf32>
    %507 = vector.broadcast %506 : vector<1x32xf32> to vector<16x32xf32>
    %508 = arith.addf %504, %507 : vector<16x32xf32>
    %509 = arith.addf %508, %481 : vector<16x32xf32>
    %c1_185 = arith.constant 1 : index
    %c0_186 = arith.constant 0 : index
    %c0_187 = arith.constant 0 : index
    %510 = vector.load %arg14[%c1_185, %c0_186, %c0_187] : memref<2x1x32xf32, #tpu.memory_space<vmem>>, vector<1x1x32xf32>
    %511 = vector.shape_cast %510 : vector<1x1x32xf32> to vector<1x32xf32>
    %c1_188 = arith.constant 1 : index
    %c0_189 = arith.constant 0 : index
    %c0_190 = arith.constant 0 : index
    %512 = vector.load %arg15[%c1_188, %c0_189, %c0_190] : memref<2x1x32xf32, #tpu.memory_space<vmem>>, vector<1x1x32xf32>
    %513 = vector.shape_cast %512 : vector<1x1x32xf32> to vector<1x32xf32>
    %cst_191 = arith.constant dense<0.000000e+00> : vector<16xf32>
    %514 = vector.multi_reduction <add>, %509, %cst_191 [1] : vector<16x32xf32> to vector<16xf32>
    %515 = vector.shape_cast %514 : vector<16xf32> to vector<16x1xf32>
    %cst_192 = arith.constant 3.200000e+01 : f32
    %516 = vector.broadcast %cst_192 : f32 to vector<16x1xf32>
    %517 = arith.divf %515, %516 : vector<16x1xf32>
    %518 = vector.broadcast %517 : vector<16x1xf32> to vector<16x32xf32>
    %519 = arith.subf %509, %518 : vector<16x32xf32>
    %520 = arith.mulf %519, %519 : vector<16x32xf32>
    %cst_193 = arith.constant dense<0.000000e+00> : vector<16xf32>
    %521 = vector.multi_reduction <add>, %520, %cst_193 [1] : vector<16x32xf32> to vector<16xf32>
    %522 = vector.shape_cast %521 : vector<16xf32> to vector<16x1xf32>
    %cst_194 = arith.constant 3.200000e+01 : f32
    %523 = vector.broadcast %cst_194 : f32 to vector<16x1xf32>
    %524 = arith.divf %522, %523 : vector<16x1xf32>
    %525 = vector.broadcast %517 : vector<16x1xf32> to vector<16x32xf32>
    %526 = arith.subf %509, %525 : vector<16x32xf32>
    %cst_195 = arith.constant 9.99999996E-13 : f32
    %527 = vector.broadcast %cst_195 : f32 to vector<16x1xf32>
    %528 = arith.addf %524, %527 : vector<16x1xf32>
    %529 = math.rsqrt %528 : vector<16x1xf32>
    %530 = vector.broadcast %529 : vector<16x1xf32> to vector<16x32xf32>
    %531 = arith.mulf %526, %530 : vector<16x32xf32>
    %532 = vector.broadcast %511 : vector<1x32xf32> to vector<16x32xf32>
    %533 = arith.mulf %531, %532 : vector<16x32xf32>
    %534 = vector.broadcast %513 : vector<1x32xf32> to vector<16x32xf32>
    %535 = arith.addf %533, %534 : vector<16x32xf32>
    %536 = tpu.iota {dimensions = array<i32: 0>} : vector<2x16xi32>
    %537 = tpu.iota {dimensions = array<i32: 1>} : vector<2x16xi32>
    %c8_i32 = arith.constant 8 : i32
    %538 = vector.broadcast %c8_i32 : i32 to vector<2x16xi32>
    %539 = arith.muli %536, %538 : vector<2x16xi32>
    %540 = arith.cmpi eq, %537, %539 : vector<2x16xi32>
    %541 = arith.extui %540 : vector<2x16xi1> to vector<2x16xi32>
    %542 = arith.sitofp %541 : vector<2x16xi32> to vector<2x16xf32>
    %cst_196 = arith.constant dense<0.000000e+00> : vector<2x32xf32>
    %543 = tpu.matmul %542, %535, %cst_196 {dimension_numbers = #tpu.dot_dimension_numbers<[1], [0], [0], [1], [0, 0, 1, 1], [], []>} : vector<2x16xf32>, vector<16x32xf32>, vector<2x32xf32> -> vector<2x32xf32>
    %c0_197 = arith.constant 0 : index
    %c0_198 = arith.constant 0 : index
    %544 = vector.load %arg16[%c0_197, %c0_198] : memref<32x32xf32, #tpu.memory_space<vmem>>, vector<32x32xf32>
    %cst_199 = arith.constant dense<0.000000e+00> : vector<2x32xf32>
    %545 = tpu.matmul %543, %544, %cst_199 {dimension_numbers = #tpu.dot_dimension_numbers<[1], [0], [0], [1], [0, 0, 1, 1], [], []>} : vector<2x32xf32>, vector<32x32xf32>, vector<2x32xf32> -> vector<2x32xf32>
    %c0_200 = arith.constant 0 : index
    %c0_201 = arith.constant 0 : index
    %546 = vector.load %arg17[%c0_200, %c0_201] : memref<1x32xf32, #tpu.memory_space<vmem>>, vector<1x32xf32>
    %547 = vector.broadcast %546 : vector<1x32xf32> to vector<2x32xf32>
    %548 = arith.addf %545, %547 : vector<2x32xf32>
    %549 = math.tanh %548 : vector<2x32xf32>
    %c0_202 = arith.constant 0 : index
    %c0_203 = arith.constant 0 : index
    %550 = vector.load %arg18[%c0_202, %c0_203] : memref<32x128xf32, #tpu.memory_space<vmem>>, vector<32x128xf32>
    %c0_204 = arith.constant 0 : index
    %c0_205 = arith.constant 0 : index
    %551 = vector.load %arg19[%c0_204, %c0_205] : memref<1x128xf32, #tpu.memory_space<vmem>>, vector<1x128xf32>
    %cst_206 = arith.constant dense<0.000000e+00> : vector<16x128xf32>
    %552 = tpu.matmul %535, %550, %cst_206 {dimension_numbers = #tpu.dot_dimension_numbers<[1], [0], [0], [1], [0, 0, 1, 1], [], []>} : vector<16x32xf32>, vector<32x128xf32>, vector<16x128xf32> -> vector<16x128xf32>
    %553 = vector.broadcast %551 : vector<1x128xf32> to vector<16x128xf32>
    %554 = arith.addf %552, %553 : vector<16x128xf32>
    %c0_207 = arith.constant 0 : index
    %c0_208 = arith.constant 0 : index
    %555 = vector.load %arg20[%c0_207, %c0_208] : memref<18x128xf32, #tpu.memory_space<vmem>>, vector<16x128xf32>
    tpu.vector_store %arg20[%c0_207, %c0_208], %554 {strides = array<i32>} : memref<18x128xf32, #tpu.memory_space<vmem>>, vector<16x128xf32>,
    %cst_209 = arith.constant dense<0.000000e+00> : vector<2x128xf32>
    %556 = tpu.matmul %549, %550, %cst_209 {dimension_numbers = #tpu.dot_dimension_numbers<[1], [0], [0], [1], [0, 0, 1, 1], [], []>} : vector<2x32xf32>, vector<32x128xf32>, vector<2x128xf32> -> vector<2x128xf32>
    %557 = vector.broadcast %551 : vector<1x128xf32> to vector<2x128xf32>
    %558 = arith.addf %556, %557 : vector<2x128xf32>
    %c16 = arith.constant 16 : index
    %c0_210 = arith.constant 0 : index
    %559 = vector.load %arg20[%c16, %c0_210] : memref<18x128xf32, #tpu.memory_space<vmem>>, vector<2x128xf32>
    tpu.vector_store %arg20[%c16, %c0_210], %558 {strides = array<i32>} : memref<18x128xf32, #tpu.memory_space<vmem>>, vector<2x128xf32>,
    return
  }
}

</mosaic_0001>

<llo_original>
// kernel: word_bert_forward.1
$region0: #{word_bert_forward.1}
  #allocation0 [shape = 'u32[]', space=smem, size = 0x4, offset = 0x4, fixed_abs, tag = 'smem constant byte address 0x4 - core index']
  #allocation1 [shape = 'u32[144,128]{1,0:T(1,128)}', space=vmem, size = 0x12000, scoped, tag = 'internal scratch']
  %s0 = inlined_call_operand.vmem [shape: f32[16,32], index: 0, kind: input, shape index: {}]
  %s1 = inlined_call_operand.vmem [shape: f32[16,8], index: 1, kind: input, shape index: {}]
  %s2 = inlined_call_operand.vmem [shape: f32[1,32], index: 2, kind: input, shape index: {}]
  %s3 = inlined_call_operand.vmem [shape: f32[1,32], index: 3, kind: input, shape index: {}]
  %s4 = inlined_call_operand.vmem [shape: f32[2,32,96], index: 4, kind: input, shape index: {}]
  %s5 = inlined_call_operand.vmem [shape: f32[2,1,96], index: 5, kind: input, shape index: {}]
  %s6 = inlined_call_operand.vmem [shape: f32[2,32,32], index: 6, kind: input, shape index: {}]
  %s7 = inlined_call_operand.vmem [shape: f32[2,1,32], index: 7, kind: input, shape index: {}]
  %s8 = inlined_call_operand.vmem [shape: f32[2,1,32], index: 8, kind: input, shape index: {}]
  %s9 = inlined_call_operand.vmem [shape: f32[2,1,32], index: 9, kind: input, shape index: {}]
  %s10 = inlined_call_operand.vmem [shape: f32[2,32,64], index: 10, kind: input, shape index: {}]
  %s11 = inlined_call_operand.vmem [shape: f32[2,1,64], index: 11, kind: input, shape index: {}]
  %s12 = inlined_call_operand.vmem [shape: f32[2,64,32], index: 12, kind: input, shape index: {}]
  %s13 = inlined_call_operand.vmem [shape: f32[2,1,32], index: 13, kind: input, shape index: {}]
  %s14 = inlined_call_operand.vmem [shape: f32[2,1,32], index: 14, kind: input, shape index: {}]
  %s15 = inlined_call_operand.vmem [shape: f32[2,1,32], index: 15, kind: input, shape index: {}]
  %s16 = inlined_call_operand.vmem [shape: f32[32,32], index: 16, kind: input, shape index: {}]
  %s17 = inlined_call_operand.vmem [shape: f32[1,32], index: 17, kind: input, shape index: {}]
  %s18 = inlined_call_operand.vmem [shape: f32[32,128], index: 18, kind: input, shape index: {}]
  %s19 = inlined_call_operand.vmem [shape: f32[1,128], index: 19, kind: input, shape index: {}]
  %s20 = inlined_call_operand.vmem [shape: f32[18,128], index: 20, kind: output, shape index: {}]
  %s21 = sld [smem:[#allocation0]]
  $region90: #{word_bert_forward.1} parent=0
    _
  %s23 = ssub.s32 1, %s21
  %s24 = scalar_select 0, %s23, %s21
  // Predicated region
  $region2: #{word_bert_forward.1} parent=0 // pred_check
    _
  $region3: #{word_bert_forward.1} parent=0 // pred_check_branch
    %26 = sbr.rel (0) target = $region5
  $region4: #{word_bert_forward.1} parent=0 // pred_region
    _
  $region5: #{word_bert_forward.1} parent=0 // pred_fallthru
    _
  // Predicated region
  $region6: #{word_bert_forward.1} parent=0 // pred_check
    _
  $region7: #{word_bert_forward.1} parent=0 // pred_check_branch
    %28 = sbr.rel (0) target = $region9
  $region8: #{word_bert_forward.1} parent=0 // pred_region
    _
  $region9: #{word_bert_forward.1} parent=0 // pred_fallthru
    _
  // Predicated region
  $region10: #{word_bert_forward.1} parent=0 // pred_check
    _
  $region11: #{word_bert_forward.1} parent=0 // pred_check_branch
    %30 = sbr.rel (0) target = $region13
  $region12: #{word_bert_forward.1} parent=0 // pred_region
    _
  $region13: #{word_bert_forward.1} parent=0 // pred_fallthru
    _
  // Predicated region
  $region14: #{word_bert_forward.1} parent=0 // pred_check
    _
  $region15: #{word_bert_forward.1} parent=0 // pred_check_branch
    %32 = sbr.rel (0) target = $region17
  $region16: #{word_bert_forward.1} parent=0 // pred_region
    _
  $region17: #{word_bert_forward.1} parent=0 // pred_fallthru
    _
  // Predicated region
  $region18: #{word_bert_forward.1} parent=0 // pred_check
    _
  $region19: #{word_bert_forward.1} parent=0 // pred_check_branch
    %34 = sbr.rel (0) target = $region21
  $region20: #{word_bert_forward.1} parent=0 // pred_region
    _
  $region21: #{word_bert_forward.1} parent=0 // pred_fallthru
    _
  // Predicated region
  $region22: #{word_bert_forward.1} parent=0 // pred_check
    _
  $region23: #{word_bert_forward.1} parent=0 // pred_check_branch
    %36 = sbr.rel (0) target = $region25
  $region24: #{word_bert_forward.1} parent=0 // pred_region
    _
  $region25: #{word_bert_forward.1} parent=0 // pred_fallthru
    _
  // Predicated region
  $region26: #{word_bert_forward.1} parent=0 // pred_check
    _
  $region27: #{word_bert_forward.1} parent=0 // pred_check_branch
    %38 = sbr.rel (0) target = $region29
  $region28: #{word_bert_forward.1} parent=0 // pred_region
    _
  $region29: #{word_bert_forward.1} parent=0 // pred_fallthru
    _
  // Predicated region
  $region30: #{word_bert_forward.1} parent=0 // pred_check
    _
  $region31: #{word_bert_forward.1} parent=0 // pred_check_branch
    %40 = sbr.rel (0) target = $region33
  $region32: #{word_bert_forward.1} parent=0 // pred_region
    _
  $region33: #{word_bert_forward.1} parent=0 // pred_fallthru
    _
  // Predicated region
  $region34: #{word_bert_forward.1} parent=0 // pred_check
    _
  $region35: #{word_bert_forward.1} parent=0 // pred_check_branch
    %42 = sbr.rel (0) target = $region37
  $region36: #{word_bert_forward.1} parent=0 // pred_region
    _
  $region37: #{word_bert_forward.1} parent=0 // pred_fallthru
    _
  // Predicated region
  $region38: #{word_bert_forward.1} parent=0 // pred_check
    _
  $region39: #{word_bert_forward.1} parent=0 // pred_check_branch
    %44 = sbr.rel (0) target = $region41
  $region40: #{word_bert_forward.1} parent=0 // pred_region
    _
  $region41: #{word_bert_forward.1} parent=0 // pred_fallthru
    _
  // Predicated region
  $region42: #{word_bert_forward.1} parent=0 // pred_check
    _
  $region43: #{word_bert_forward.1} parent=0 // pred_check_branch
    %46 = sbr.rel (0) target = $region45
  $region44: #{word_bert_forward.1} parent=0 // pred_region
    _
  $region45: #{word_bert_forward.1} parent=0 // pred_fallthru
    _
  // Predicated region
  $region46: #{word_bert_forward.1} parent=0 // pred_check
    _
  $region47: #{word_bert_forward.1} parent=0 // pred_check_branch
    %48 = sbr.rel (0) target = $region49
  $region48: #{word_bert_forward.1} parent=0 // pred_region
    _
  $region49: #{word_bert_forward.1} parent=0 // pred_fallthru
    _
  // Predicated region
  $region50: #{word_bert_forward.1} parent=0 // pred_check
    _
  $region51: #{word_bert_forward.1} parent=0 // pred_check_branch
    %50 = sbr.rel (0) target = $region53
  $region52: #{word_bert_forward.1} parent=0 // pred_region
    _
  $region53: #{word_bert_forward.1} parent=0 // pred_fallthru
    _
  // Predicated region
  $region54: #{word_bert_forward.1} parent=0 // pred_check
    _
  $region55: #{word_bert_forward.1} parent=0 // pred_check_branch
    %52 = sbr.rel (0) target = $region57
  $region56: #{word_bert_forward.1} parent=0 // pred_region
    _
  $region57: #{word_bert_forward.1} parent=0 // pred_fallthru
    _
  // Predicated region
  $region58: #{word_bert_forward.1} parent=0 // pred_check
    _
  $region59: #{word_bert_forward.1} parent=0 // pred_check_branch
    %54 = sbr.rel (0) target = $region61
  $region60: #{word_bert_forward.1} parent=0 // pred_region
    _
  $region61: #{word_bert_forward.1} parent=0 // pred_fallthru
    _
  // Predicated region
  $region62: #{word_bert_forward.1} parent=0 // pred_check
    _
  $region63: #{word_bert_forward.1} parent=0 // pred_check_branch
    %56 = sbr.rel (0) target = $region65
  $region64: #{word_bert_forward.1} parent=0 // pred_region
    _
  $region65: #{word_bert_forward.1} parent=0 // pred_fallthru
    _
  // Predicated region
  $region66: #{word_bert_forward.1} parent=0 // pred_check
    _
  $region67: #{word_bert_forward.1} parent=0 // pred_check_branch
    %58 = sbr.rel (0) target = $region69
  $region68: #{word_bert_forward.1} parent=0 // pred_region
    _
  $region69: #{word_bert_forward.1} parent=0 // pred_fallthru
    _
  // Predicated region
  $region70: #{word_bert_forward.1} parent=0 // pred_check
    _
  $region71: #{word_bert_forward.1} parent=0 // pred_check_branch
    %60 = sbr.rel (0) target = $region73
  $region72: #{word_bert_forward.1} parent=0 // pred_region
    _
  $region73: #{word_bert_forward.1} parent=0 // pred_fallthru
    _
  // Predicated region
  $region74: #{word_bert_forward.1} parent=0 // pred_check
    _
  $region75: #{word_bert_forward.1} parent=0 // pred_check_branch
    %62 = sbr.rel (0) target = $region77
  $region76: #{word_bert_forward.1} parent=0 // pred_region
    _
  $region77: #{word_bert_forward.1} parent=0 // pred_fallthru
    _
  // Predicated region
  $region78: #{word_bert_forward.1} parent=0 // pred_check
    _
  $region79: #{word_bert_forward.1} parent=0 // pred_check_branch
    %64 = sbr.rel (0) target = $region81
  $region80: #{word_bert_forward.1} parent=0 // pred_region
    _
  $region81: #{word_bert_forward.1} parent=0 // pred_fallthru
    _
  %v65 = vld [vmem:[%s0] sm:$0xff]
  %v66 = vld [vmem:[%s0 + $0x8] sm:$0xff]
  %v67 = vld [vmem:[%s2] sm:$0x1]
  %v68 = vld [vmem:[%s3] sm:$0x1]
  %vm69 = vcmask 261120
  %v70 = vsel %vm69, %v65, 0.0
  %71 = vadd.xlane.f32.xlu0 %v70
  %v72 = vpop.xlane.xlu0 %71
  %v73 = vsel %vm69, %v66, 0.0
  %74 = vadd.xlane.f32.xlu0 %v73
  %v75 = vpop.xlane.xlu0 %74
  %v76 = vrcp.pop 32.0
  %v77 = vmul.f32 %v72, %v76
  %v78 = vmul.f32 %v75, %v76
  %v79 = vsub.f32 %v65, %v77
  %v80 = vsub.f32 %v66, %v78
  %v81 = vmul.f32 %v79, %v79
  %v82 = vmul.f32 %v80, %v80
  %v83 = vsel %vm69, %v81, 0.0
  %84 = vadd.xlane.f32.xlu0 %v83
  %v85 = vpop.xlane.xlu0 %84
  %v86 = vsel %vm69, %v82, 0.0
  %87 = vadd.xlane.f32.xlu0 %v86
  %v88 = vpop.xlane.xlu0 %87
  %v89 = vmul.f32 %v85, %v76
  %v90 = vmul.f32 %v88, %v76
  %v91 = vadd.f32 %v89, 1e-12
  %v92 = vadd.f32 %v90, 1e-12
  %v93 = vrsqrt.pop %v91
  %v94 = vrsqrt.pop %v92
  %v95 = vmul.f32 %v79, %v93
  %v96 = vmul.f32 %v80, %v94
  %v98 = vlaneseq
  %v99 = vshrl.u32 %v98, 7
  %v100 = vsub.s32 0, %v99
  %v101 = vrot.slane %v67, %v100
  %v103 = vmul.f32 %v95, %v101
  %v104 = vmul.f32 %v96, %v101
  %v106 = vlaneseq
  %v107 = vshrl.u32 %v106, 7
  %v108 = vsub.s32 0, %v107
  %v109 = vrot.slane %v68, %v108
  %v111 = vadd.f32 %v103, %v109
  %v112 = vadd.f32 %v104, %v109
  %v113 = vld [vmem:[%s1] sm:$0xff]
  %v114 = vld [vmem:[%s1 + $0x8] sm:$0xff]
  %v115 = vld [vmem:[%s4] sm:$0xff]
  %v116 = vld [vmem:[%s4 + $0x8] sm:$0xff]
  %v117 = vld [vmem:[%s4 + $0x10] sm:$0xff]
  %v118 = vld [vmem:[%s4 + $0x18] sm:$0xff]
  %v119 = vld [vmem:[%s5] sm:$0x1]
  %v121 = vlaneseq
  %v122 = vshrl.u32 %v121, 7
  %v123 = vsub.s32 0, %v122
  %v124 = vrot.slane %v119, %v123
  %v127 = vsel %vm69, %v111, 0
  %v130 = vsel %vm69, %v112, 0
  %132 = vmatprep.subr.mxu0 0.0
  %133 = vmatpush1.msra.mxu0 0.0
  %134 = vmatprep.subr.mxu0 0.0
  %135 = vmatpush1.msra.mxu0 0.0
  %136 = vmatprep.subr.mxu0 0.0
  %137 = vmatpush1.msra.mxu0 0.0
  %138 = vmatprep.subr.mxu0 0.0
  %139 = vmatpush1.msra.mxu0 0.0
  %140 = vmatprep.subr.mxu0 0.0
  %141 = vmatpush1.msra.mxu0 0.0
  %142 = vmatprep.subr.mxu0 0.0
  %143 = vmatpush1.msra.mxu0 0.0
  %144 = vmatprep.subr.mxu0 0.0
  %145 = vmatpush1.msra.mxu0 0.0
  %146 = vmatprep.subr.mxu0 0.0
  %147 = vmatpush1.msra.mxu0 0.0
  %148 = vmatprep.subr.mxu0 0.0
  %149 = vmatpush1.msra.mxu0 0.0
  %150 = vmatprep.subr.mxu0 0.0
  %151 = vmatpush1.msra.mxu0 0.0
  %152 = vmatprep.subr.mxu0 0.0
  %153 = vmatpush1.msra.mxu0 0.0
  %154 = vmatprep.subr.mxu0 0.0
  %155 = vmatpush1.msra.mxu0 0.0
  %156 = vmatprep.subr.mxu0 0.0
  %157 = vmatpush1.msra.mxu0 %v118
  %158 = vmatprep.subr.mxu0 0.0
  %159 = vmatpush1.msra.mxu0 %v117
  %160 = vmatprep.subr.mxu0 0.0
  %161 = vmatpush1.msra.mxu0 %v116
  %162 = vmatprep.subr.mxu0 0.0
  %163 = vmatpush1.msra.mxu0 %v115
  %164 = vmatprep.subr.mxu0 0.0
  %165 = vmatpush2.msra.mxu0 0.0
  %166 = vmatprep.subr.mxu0 0.0
  %167 = vmatpush2.msra.mxu0 0.0
  %168 = vmatprep.subr.mxu0 0.0
  %169 = vmatpush2.msra.mxu0 0.0
  %170 = vmatprep.subr.mxu0 0.0
  %171 = vmatpush2.msra.mxu0 0.0
  %172 = vmatprep.subr.mxu0 0.0
  %173 = vmatpush2.msra.mxu0 0.0
  %174 = vmatprep.subr.mxu0 0.0
  %175 = vmatpush2.msra.mxu0 0.0
  %176 = vmatprep.subr.mxu0 0.0
  %177 = vmatpush2.msra.mxu0 0.0
  %178 = vmatprep.subr.mxu0 0.0
  %179 = vmatpush2.msra.mxu0 0.0
  %180 = vmatprep.subr.mxu0 0.0
  %181 = vmatpush2.msra.mxu0 0.0
  %182 = vmatprep.subr.mxu0 0.0
  %183 = vmatpush2.msra.mxu0 0.0
  %184 = vmatprep.subr.mxu0 0.0
  %185 = vmatpush2.msra.mxu0 0.0
  %186 = vmatprep.subr.mxu0 0.0
  %187 = vmatpush2.msra.mxu0 0.0
  %188 = vmatprep.subr.mxu0 0.0
  %189 = vmatpush2.msra.mxu0 0.0
  %190 = vmatprep.subr.mxu0 0.0
  %191 = vmatpush2.msra.mxu0 0.0
  %192 = vmatprep.subr.mxu0 0.0
  %193 = vmatpush2.msra.mxu0 0.0
  %194 = vmatprep.subr.mxu0 0.0
  %195 = vmatpush2.msra.mxu0 0.0
  %196 = vmatprep.mubr.f32.mxu0 0.0
  %197 = vmatmul.mubr.f32.gmra.mxu0 %v127
  %v198 = vpop.f32.mrf.mxu0
  %v199 = vadd.f32 %v124, %v198
  %v200 = vpop.f32.mrf.mxu0
  %201 = vmatprep.mubr.f32.mxu0 0.0
  %202 = vmatmul.mubr.f32.gmra.mxu0 %v130
  %v203 = vpop.f32.mrf.mxu0
  %v204 = vadd.f32 %v124, %v203
  %v205 = vpop.f32.mrf.mxu0
  %206 = vdwg.mxu0
  %v207 = vld [vmem:[%s6] sm:$0xff]
  %v208 = vld [vmem:[%s6 + $0x8] sm:$0xff]
  %v209 = vld [vmem:[%s6 + $0x10] sm:$0xff]
  %v210 = vld [vmem:[%s6 + $0x18] sm:$0xff]
  %212 = vrot.lane.b32.xlu0 %v199, 96
  %v213 = vpop.permute.xlu0 %212
  %vm214 = vcmask 64512
  %v215 = vsel %vm214, %v199, 0
  %v217 = vsel %vm214, %v213, 0
  %219 = vmatprep.subr.mxu0 0.0
  %220 = vmatpush1.xpose.msra.mxu0 0.0
  %221 = vmatprep.subr.mxu0 0.0
  %222 = vmatpush1.xpose.msra.mxu0 0.0
  %223 = vmatprep.subr.mxu0 0.0
  %224 = vmatpush1.xpose.msra.mxu0 0.0
  %225 = vmatprep.subr.mxu0 0.0
  %226 = vmatpush1.xpose.msra.mxu0 0.0
  %227 = vmatprep.subr.mxu0 0.0
  %228 = vmatpush1.xpose.msra.mxu0 0.0
  %229 = vmatprep.subr.mxu0 0.0
  %230 = vmatpush1.xpose.msra.mxu0 0.0
  %231 = vmatprep.subr.mxu0 0.0
  %232 = vmatpush1.xpose.msra.mxu0 0.0
  %233 = vmatprep.subr.mxu0 0.0
  %234 = vmatpush1.xpose.msra.mxu0 0.0
  %235 = vmatprep.subr.mxu0 0.0
  %236 = vmatpush1.xpose.msra.mxu0 0.0
  %237 = vmatprep.subr.mxu0 0.0
  %238 = vmatpush1.xpose.msra.mxu0 0.0
  %239 = vmatprep.subr.mxu0 0.0
  %240 = vmatpush1.xpose.msra.mxu0 0.0
  %241 = vmatprep.subr.mxu0 0.0
  %242 = vmatpush1.xpose.msra.mxu0 0.0
  %243 = vmatprep.subr.mxu0 0.0
  %244 = vmatpush1.xpose.msra.mxu0 0.0
  %245 = vmatprep.subr.mxu0 0.0
  %246 = vmatpush1.xpose.msra.mxu0 0.0
  %247 = vmatprep.subr.mxu0 0.0
  %248 = vmatpush1.xpose.msra.mxu0 0.0
  %249 = vmatprep.subr.mxu0 0.0
  %250 = vmatpush1.xpose.msra.mxu0 %v217
  %251 = vmatprep.subr.mxu0 0.0
  %252 = vmatpush2.xpose.msra.mxu0 0.0
  %253 = vmatprep.subr.mxu0 0.0
  %254 = vmatpush2.xpose.msra.mxu0 0.0
  %255 = vmatprep.subr.mxu0 0.0
  %256 = vmatpush2.xpose.msra.mxu0 0.0
  %257 = vmatprep.subr.mxu0 0.0
  %258 = vmatpush2.xpose.msra.mxu0 0.0
  %259 = vmatprep.subr.mxu0 0.0
  %260 = vmatpush2.xpose.msra.mxu0 0.0
  %261 = vmatprep.subr.mxu0 0.0
  %262 = vmatpush2.xpose.msra.mxu0 0.0
  %263 = vmatprep.subr.mxu0 0.0
  %264 = vmatpush2.xpose.msra.mxu0 0.0
  %265 = vmatprep.subr.mxu0 0.0
  %266 = vmatpush2.xpose.msra.mxu0 0.0
  %267 = vmatprep.subr.mxu0 0.0
  %268 = vmatpush2.xpose.msra.mxu0 0.0
  %269 = vmatprep.subr.mxu0 0.0
  %270 = vmatpush2.xpose.msra.mxu0 0.0
  %271 = vmatprep.subr.mxu0 0.0
  %272 = vmatpush2.xpose.msra.mxu0 0.0
  %273 = vmatprep.subr.mxu0 0.0
  %274 = vmatpush2.xpose.msra.mxu0 0.0
  %275 = vmatprep.subr.mxu0 0.0
  %276 = vmatpush2.xpose.msra.mxu0 0.0
  %277 = vmatprep.subr.mxu0 0.0
  %278 = vmatpush2.xpose.msra.mxu0 0.0
  %279 = vmatprep.subr.mxu0 0.0
  %280 = vmatpush2.xpose.msra.mxu0 0.0
  %281 = vmatprep.subr.mxu0 0.0
  %282 = vmatpush2.xpose.msra.mxu0 0.0
  %283 = vmatprep.mubr.f32.mxu0 0.0
  %284 = vmatmul.mubr.f32.gmra.mxu0 %v215
  %v285 = vpop.f32.mrf.mxu0
  %v286 = vadd.f32 %v113, %v285
  %v287 = vpop.f32.mrf.mxu0
  %288 = vdwg.mxu0
  %v289 = vsel %vm214, %v286, -inf
  %290 = vmax.xlane.f32.xlu0 %v289
  %v291 = vpop.xlane.xlu0 %290
  %v292 = vsub.f32 %v286, %v291
  %v293 = vmul.f32 %v292, 1.442695
  %v294 = vpow.pop %v293
  %v295 = vsel %vm214, %v294, 0.0
  %296 = vadd.xlane.f32.xlu0 %v295
  %v297 = vpop.xlane.xlu0 %296
  %v298 = vrcp.pop %v297
  %v299 = vmul.f32 %v294, %v298
  %300 = vrot.lane.b32.xlu0 %v199, 64
  %v301 = vpop.permute.xlu0 %300
  %v304 = vsel %vm214, %v299, 0
  %306 = vmatprep.subr.mxu0 0.0
  %307 = vmatpush1.msra.mxu0 0.0
  %308 = vmatprep.subr.mxu0 0.0
  %309 = vmatpush1.msra.mxu0 0.0
  %310 = vmatprep.subr.mxu0 0.0
  %311 = vmatpush1.msra.mxu0 0.0
  %312 = vmatprep.subr.mxu0 0.0
  %313 = vmatpush1.msra.mxu0 0.0
  %314 = vmatprep.subr.mxu0 0.0
  %315 = vmatpush1.msra.mxu0 0.0
  %316 = vmatprep.subr.mxu0 0.0
  %317 = vmatpush1.msra.mxu0 0.0
  %318 = vmatprep.subr.mxu0 0.0
  %319 = vmatpush1.msra.mxu0 0.0
  %320 = vmatprep.subr.mxu0 0.0
  %321 = vmatpush1.msra.mxu0 0.0
  %322 = vmatprep.subr.mxu0 0.0
  %323 = vmatpush1.msra.mxu0 0.0
  %324 = vmatprep.subr.mxu0 0.0
  %325 = vmatpush1.msra.mxu0 0.0
  %326 = vmatprep.subr.mxu0 0.0
  %327 = vmatpush1.msra.mxu0 0.0
  %328 = vmatprep.subr.mxu0 0.0
  %329 = vmatpush1.msra.mxu0 0.0
  %330 = vmatprep.subr.mxu0 0.0
  %331 = vmatpush1.msra.mxu0 0.0
  %332 = vmatprep.subr.mxu0 0.0
  %333 = vmatpush1.msra.mxu0 0.0
  %334 = vmatprep.subr.mxu0 0.0
  %335 = vmatpush1.msra.mxu0 0.0
  %336 = vmatprep.subr.mxu0 0.0
  %337 = vmatpush1.msra.mxu0 %v301
  %338 = vmatprep.subr.mxu0 0.0
  %339 = vmatpush2.msra.mxu0 0.0
  %340 = vmatprep.subr.mxu0 0.0
  %341 = vmatpush2.msra.mxu0 0.0
  %342 = vmatprep.subr.mxu0 0.0
  %343 = vmatpush2.msra.mxu0 0.0
  %344 = vmatprep.subr.mxu0 0.0
  %345 = vmatpush2.msra.mxu0 0.0
  %346 = vmatprep.subr.mxu0 0.0
  %347 = vmatpush2.msra.mxu0 0.0
  %348 = vmatprep.subr.mxu0 0.0
  %349 = vmatpush2.msra.mxu0 0.0
  %350 = vmatprep.subr.mxu0 0.0
  %351 = vmatpush2.msra.mxu0 0.0
  %352 = vmatprep.subr.mxu0 0.0
  %353 = vmatpush2.msra.mxu0 0.0
  %354 = vmatprep.subr.mxu0 0.0
  %355 = vmatpush2.msra.mxu0 0.0
  %356 = vmatprep.subr.mxu0 0.0
  %357 = vmatpush2.msra.mxu0 0.0
  %358 = vmatprep.subr.mxu0 0.0
  %359 = vmatpush2.msra.mxu0 0.0
  %360 = vmatprep.subr.mxu0 0.0
  %361 = vmatpush2.msra.mxu0 0.0
  %362 = vmatprep.subr.mxu0 0.0
  %363 = vmatpush2.msra.mxu0 0.0
  %364 = vmatprep.subr.mxu0 0.0
  %365 = vmatpush2.msra.mxu0 0.0
  %366 = vmatprep.subr.mxu0 0.0
  %367 = vmatpush2.msra.mxu0 0.0
  %368 = vmatprep.subr.mxu0 0.0
  %369 = vmatpush2.msra.mxu0 0.0
  %370 = vmatprep.mubr.f32.mxu0 0.0
  %371 = vmatmul.mubr.f32.gmra.mxu0 %v304
  %v372 = vpop.f32.mrf.mxu0
  %v373 = vadd.f32 0.0, %v372
  %v374 = vpop.f32.mrf.mxu0
  %375 = vdwg.mxu0
  %376 = vrot.lane.b32.xlu0 %v199, 120
  %v377 = vpop.permute.xlu0 %376
  %378 = vrot.lane.b32.xlu0 %v199, 88
  %v379 = vpop.permute.xlu0 %378
  %v380 = vsel %vm214, %v377, 0
  %v382 = vsel %vm214, %v379, 0
  %384 = vmatprep.subr.mxu0 0.0
  %385 = vmatpush1.xpose.msra.mxu0 0.0
  %386 = vmatprep.subr.mxu0 0.0
  %387 = vmatpush1.xpose.msra.mxu0 0.0
  %388 = vmatprep.subr.mxu0 0.0
  %389 = vmatpush1.xpose.msra.mxu0 0.0
  %390 = vmatprep.subr.mxu0 0.0
  %391 = vmatpush1.xpose.msra.mxu0 0.0
  %392 = vmatprep.subr.mxu0 0.0
  %393 = vmatpush1.xpose.msra.mxu0 0.0
  %394 = vmatprep.subr.mxu0 0.0
  %395 = vmatpush1.xpose.msra.mxu0 0.0
  %396 = vmatprep.subr.mxu0 0.0
  %397 = vmatpush1.xpose.msra.mxu0 0.0
  %398 = vmatprep.subr.mxu0 0.0
  %399 = vmatpush1.xpose.msra.mxu0 0.0
  %400 = vmatprep.subr.mxu0 0.0
  %401 = vmatpush1.xpose.msra.mxu0 0.0
  %402 = vmatprep.subr.mxu0 0.0
  %403 = vmatpush1.xpose.msra.mxu0 0.0
  %404 = vmatprep.subr.mxu0 0.0
  %405 = vmatpush1.xpose.msra.mxu0 0.0
  %406 = vmatprep.subr.mxu0 0.0
  %407 = vmatpush1.xpose.msra.mxu0 0.0
  %408 = vmatprep.subr.mxu0 0.0
  %409 = vmatpush1.xpose.msra.mxu0 0.0
  %410 = vmatprep.subr.mxu0 0.0
  %411 = vmatpush1.xpose.msra.mxu0 0.0
  %412 = vmatprep.subr.mxu0 0.0
  %413 = vmatpush1.xpose.msra.mxu0 0.0
  %414 = vmatprep.subr.mxu0 0.0
  %415 = vmatpush1.xpose.msra.mxu0 %v382
  %416 = vmatprep.subr.mxu0 0.0
  %417 = vmatpush2.xpose.msra.mxu0 0.0
  %418 = vmatprep.subr.mxu0 0.0
  %419 = vmatpush2.xpose.msra.mxu0 0.0
  %420 = vmatprep.subr.mxu0 0.0
  %421 = vmatpush2.xpose.msra.mxu0 0.0
  %422 = vmatprep.subr.mxu0 0.0
  %423 = vmatpush2.xpose.msra.mxu0 0.0
  %424 = vmatprep.subr.mxu0 0.0
  %425 = vmatpush2.xpose.msra.mxu0 0.0
  %426 = vmatprep.subr.mxu0 0.0
  %427 = vmatpush2.xpose.msra.mxu0 0.0
  %428 = vmatprep.subr.mxu0 0.0
  %429 = vmatpush2.xpose.msra.mxu0 0.0
  %430 = vmatprep.subr.mxu0 0.0
  %431 = vmatpush2.xpose.msra.mxu0 0.0
  %432 = vmatprep.subr.mxu0 0.0
  %433 = vmatpush2.xpose.msra.mxu0 0.0
  %434 = vmatprep.subr.mxu0 0.0
  %435 = vmatpush2.xpose.msra.mxu0 0.0
  %436 = vmatprep.subr.mxu0 0.0
  %437 = vmatpush2.xpose.msra.mxu0 0.0
  %438 = vmatprep.subr.mxu0 0.0
  %439 = vmatpush2.xpose.msra.mxu0 0.0
  %440 = vmatprep.subr.mxu0 0.0
  %441 = vmatpush2.xpose.msra.mxu0 0.0
  %442 = vmatprep.subr.mxu0 0.0
  %443 = vmatpush2.xpose.msra.mxu0 0.0
  %444 = vmatprep.subr.mxu0 0.0
  %445 = vmatpush2.xpose.msra.mxu0 0.0
  %446 = vmatprep.subr.mxu0 0.0
  %447 = vmatpush2.xpose.msra.mxu0 0.0
  %448 = vmatprep.mubr.f32.mxu0 0.0
  %449 = vmatmul.mubr.f32.gmra.mxu0 %v380
  %v450 = vpop.f32.mrf.mxu0
  %v451 = vadd.f32 %v113, %v450
  %v452 = vpop.f32.mrf.mxu0
  %453 = vdwg.mxu0
  %v454 = vsel %vm214, %v451, -inf
  %455 = vmax.xlane.f32.xlu0 %v454
  %v456 = vpop.xlane.xlu0 %455
  %v457 = vsub.f32 %v451, %v456
  %v458 = vmul.f32 %v457, 1.442695
  %v459 = vpow.pop %v458
  %v460 = vsel %vm214, %v459, 0.0
  %461 = vadd.xlane.f32.xlu0 %v460
  %v462 = vpop.xlane.xlu0 %461
  %v463 = vrcp.pop %v462
  %v464 = vmul.f32 %v459, %v463
  %465 = vrot.lane.b32.xlu0 %v199, 56
  %v466 = vpop.permute.xlu0 %465
  %v469 = vsel %vm214, %v464, 0
  %471 = vmatprep.subr.mxu0 0.0
  %472 = vmatpush1.msra.mxu0 0.0
  %473 = vmatprep.subr.mxu0 0.0
  %474 = vmatpush1.msra.mxu0 0.0
  %475 = vmatprep.subr.mxu0 0.0
  %476 = vmatpush1.msra.mxu0 0.0
  %477 = vmatprep.subr.mxu0 0.0
  %478 = vmatpush1.msra.mxu0 0.0
  %479 = vmatprep.subr.mxu0 0.0
  %480 = vmatpush1.msra.mxu0 0.0
  %481 = vmatprep.subr.mxu0 0.0
  %482 = vmatpush1.msra.mxu0 0.0
  %483 = vmatprep.subr.mxu0 0.0
  %484 = vmatpush1.msra.mxu0 0.0
  %485 = vmatprep.subr.mxu0 0.0
  %486 = vmatpush1.msra.mxu0 0.0
  %487 = vmatprep.subr.mxu0 0.0
  %488 = vmatpush1.msra.mxu0 0.0
  %489 = vmatprep.subr.mxu0 0.0
  %490 = vmatpush1.msra.mxu0 0.0
  %491 = vmatprep.subr.mxu0 0.0
  %492 = vmatpush1.msra.mxu0 0.0
  %493 = vmatprep.subr.mxu0 0.0
  %494 = vmatpush1.msra.mxu0 0.0
  %495 = vmatprep.subr.mxu0 0.0
  %496 = vmatpush1.msra.mxu0 0.0
  %497 = vmatprep.subr.mxu0 0.0
  %498 = vmatpush1.msra.mxu0 0.0
  %499 = vmatprep.subr.mxu0 0.0
  %500 = vmatpush1.msra.mxu0 0.0
  %501 = vmatprep.subr.mxu0 0.0
  %502 = vmatpush1.msra.mxu0 %v466
  %503 = vmatprep.subr.mxu0 0.0
  %504 = vmatpush2.msra.mxu0 0.0
  %505 = vmatprep.subr.mxu0 0.0
  %506 = vmatpush2.msra.mxu0 0.0
  %507 = vmatprep.subr.mxu0 0.0
  %508 = vmatpush2.msra.mxu0 0.0
  %509 = vmatprep.subr.mxu0 0.0
  %510 = vmatpush2.msra.mxu0 0.0
  %511 = vmatprep.subr.mxu0 0.0
  %512 = vmatpush2.msra.mxu0 0.0
  %513 = vmatprep.subr.mxu0 0.0
  %514 = vmatpush2.msra.mxu0 0.0
  %515 = vmatprep.subr.mxu0 0.0
  %516 = vmatpush2.msra.mxu0 0.0
  %517 = vmatprep.subr.mxu0 0.0
  %518 = vmatpush2.msra.mxu0 0.0
  %519 = vmatprep.subr.mxu0 0.0
  %520 = vmatpush2.msra.mxu0 0.0
  %521 = vmatprep.subr.mxu0 0.0
  %522 = vmatpush2.msra.mxu0 0.0
  %523 = vmatprep.subr.mxu0 0.0
  %524 = vmatpush2.msra.mxu0 0.0
  %525 = vmatprep.subr.mxu0 0.0
  %526 = vmatpush2.msra.mxu0 0.0
  %527 = vmatprep.subr.mxu0 0.0
  %528 = vmatpush2.msra.mxu0 0.0
  %529 = vmatprep.subr.mxu0 0.0
  %530 = vmatpush2.msra.mxu0 0.0
  %531 = vmatprep.subr.mxu0 0.0
  %532 = vmatpush2.msra.mxu0 0.0
  %533 = vmatprep.subr.mxu0 0.0
  %534 = vmatpush2.msra.mxu0 0.0
  %535 = vmatprep.mubr.f32.mxu0 0.0
  %536 = vmatmul.mubr.f32.gmra.mxu0 %v469
  %v537 = vpop.f32.mrf.mxu0
  %v538 = vadd.f32 0.0, %v537
  %v539 = vpop.f32.mrf.mxu0
  %540 = vdwg.mxu0
  %v542 = vsel %vm214, %v538, 0
  %544 = vmatprep.subr.mxu0 0.0
  %545 = vmatpush1.msra.mxu0 0.0
  %546 = vmatprep.subr.mxu0 0.0
  %547 = vmatpush1.msra.mxu0 0.0
  %548 = vmatprep.subr.mxu0 0.0
  %549 = vmatpush1.msra.mxu0 0.0
  %550 = vmatprep.subr.mxu0 0.0
  %551 = vmatpush1.msra.mxu0 0.0
  %552 = vmatprep.subr.mxu0 0.0
  %553 = vmatpush1.msra.mxu0 0.0
  %554 = vmatprep.subr.mxu0 0.0
  %555 = vmatpush1.msra.mxu0 0.0
  %556 = vmatprep.subr.mxu0 0.0
  %557 = vmatpush1.msra.mxu0 0.0
  %558 = vmatprep.subr.mxu0 0.0
  %559 = vmatpush1.msra.mxu0 0.0
  %560 = vmatprep.subr.mxu0 0.0
  %561 = vmatpush1.msra.mxu0 0.0
  %562 = vmatprep.subr.mxu0 0.0
  %563 = vmatpush1.msra.mxu0 0.0
  %564 = vmatprep.subr.mxu0 0.0
  %565 = vmatpush1.msra.mxu0 0.0
  %566 = vmatprep.subr.mxu0 0.0
  %567 = vmatpush1.msra.mxu0 0.0
  %568 = vmatprep.subr.mxu0 0.0
  %569 = vmatpush1.msra.mxu0 0.0
  %570 = vmatprep.subr.mxu0 0.0
  %571 = vmatpush1.msra.mxu0 0.0
  %572 = vmatprep.subr.mxu0 0.0
  %573 = vmatpush1.msra.mxu0 0.0
  %574 = vmatprep.subr.mxu0 0.0
  %575 = vmatpush1.msra.mxu0 %v208
  %576 = vmatprep.subr.mxu0 0.0
  %577 = vmatpush2.msra.mxu0 0.0
  %578 = vmatprep.subr.mxu0 0.0
  %579 = vmatpush2.msra.mxu0 0.0
  %580 = vmatprep.subr.mxu0 0.0
  %581 = vmatpush2.msra.mxu0 0.0
  %582 = vmatprep.subr.mxu0 0.0
  %583 = vmatpush2.msra.mxu0 0.0
  %584 = vmatprep.subr.mxu0 0.0
  %585 = vmatpush2.msra.mxu0 0.0
  %586 = vmatprep.subr.mxu0 0.0
  %587 = vmatpush2.msra.mxu0 0.0
  %588 = vmatprep.subr.mxu0 0.0
  %589 = vmatpush2.msra.mxu0 0.0
  %590 = vmatprep.subr.mxu0 0.0
  %591 = vmatpush2.msra.mxu0 0.0
  %592 = vmatprep.subr.mxu0 0.0
  %593 = vmatpush2.msra.mxu0 0.0
  %594 = vmatprep.subr.mxu0 0.0
  %595 = vmatpush2.msra.mxu0 0.0
  %596 = vmatprep.subr.mxu0 0.0
  %597 = vmatpush2.msra.mxu0 0.0
  %598 = vmatprep.subr.mxu0 0.0
  %599 = vmatpush2.msra.mxu0 0.0
  %600 = vmatprep.subr.mxu0 0.0
  %601 = vmatpush2.msra.mxu0 0.0
  %602 = vmatprep.subr.mxu0 0.0
  %603 = vmatpush2.msra.mxu0 0.0
  %604 = vmatprep.subr.mxu0 0.0
  %605 = vmatpush2.msra.mxu0 0.0
  %606 = vmatprep.subr.mxu0 0.0
  %607 = vmatpush2.msra.mxu0 0.0
  %608 = vmatprep.mubr.f32.mxu0 0.0
  %609 = vmatmul.mubr.f32.gmra.mxu0 %v542
  %v610 = vpop.f32.mrf.mxu0
  %v611 = vadd.f32 0.0, %v610
  %v612 = vpop.f32.mrf.mxu0
  %613 = vdwg.mxu0
  %v615 = vsel %vm214, %v373, 0
  %617 = vmatprep.subr.mxu0 0.0
  %618 = vmatpush1.msra.mxu0 0.0
  %619 = vmatprep.subr.mxu0 0.0
  %620 = vmatpush1.msra.mxu0 0.0
  %621 = vmatprep.subr.mxu0 0.0
  %622 = vmatpush1.msra.mxu0 0.0
  %623 = vmatprep.subr.mxu0 0.0
  %624 = vmatpush1.msra.mxu0 0.0
  %625 = vmatprep.subr.mxu0 0.0
  %626 = vmatpush1.msra.mxu0 0.0
  %627 = vmatprep.subr.mxu0 0.0
  %628 = vmatpush1.msra.mxu0 0.0
  %629 = vmatprep.subr.mxu0 0.0
  %630 = vmatpush1.msra.mxu0 0.0
  %631 = vmatprep.subr.mxu0 0.0
  %632 = vmatpush1.msra.mxu0 0.0
  %633 = vmatprep.subr.mxu0 0.0
  %634 = vmatpush1.msra.mxu0 0.0
  %635 = vmatprep.subr.mxu0 0.0
  %636 = vmatpush1.msra.mxu0 0.0
  %637 = vmatprep.subr.mxu0 0.0
  %638 = vmatpush1.msra.mxu0 0.0
  %639 = vmatprep.subr.mxu0 0.0
  %640 = vmatpush1.msra.mxu0 0.0
  %641 = vmatprep.subr.mxu0 0.0
  %642 = vmatpush1.msra.mxu0 0.0
  %643 = vmatprep.subr.mxu0 0.0
  %644 = vmatpush1.msra.mxu0 0.0
  %645 = vmatprep.subr.mxu0 0.0
  %646 = vmatpush1.msra.mxu0 0.0
  %647 = vmatprep.subr.mxu0 0.0
  %648 = vmatpush1.msra.mxu0 %v207
  %649 = vmatprep.subr.mxu0 0.0
  %650 = vmatpush2.msra.mxu0 0.0
  %651 = vmatprep.subr.mxu0 0.0
  %652 = vmatpush2.msra.mxu0 0.0
  %653 = vmatprep.subr.mxu0 0.0
  %654 = vmatpush2.msra.mxu0 0.0
  %655 = vmatprep.subr.mxu0 0.0
  %656 = vmatpush2.msra.mxu0 0.0
  %657 = vmatprep.subr.mxu0 0.0
  %658 = vmatpush2.msra.mxu0 0.0
  %659 = vmatprep.subr.mxu0 0.0
  %660 = vmatpush2.msra.mxu0 0.0
  %661 = vmatprep.subr.mxu0 0.0
  %662 = vmatpush2.msra.mxu0 0.0
  %663 = vmatprep.subr.mxu0 0.0
  %664 = vmatpush2.msra.mxu0 0.0
  %665 = vmatprep.subr.mxu0 0.0
  %666 = vmatpush2.msra.mxu0 0.0
  %667 = vmatprep.subr.mxu0 0.0
  %668 = vmatpush2.msra.mxu0 0.0
  %669 = vmatprep.subr.mxu0 0.0
  %670 = vmatpush2.msra.mxu0 0.0
  %671 = vmatprep.subr.mxu0 0.0
  %672 = vmatpush2.msra.mxu0 0.0
  %673 = vmatprep.subr.mxu0 0.0
  %674 = vmatpush2.msra.mxu0 0.0
  %675 = vmatprep.subr.mxu0 0.0
  %676 = vmatpush2.msra.mxu0 0.0
  %677 = vmatprep.subr.mxu0 0.0
  %678 = vmatpush2.msra.mxu0 0.0
  %679 = vmatprep.subr.mxu0 0.0
  %680 = vmatpush2.msra.mxu0 0.0
  %681 = vmatprep.mubr.f32.mxu0 0.0
  %682 = vmatmul.mubr.f32.gmra.mxu0 %v615
  %v683 = vpop.f32.mrf.mxu0
  %v684 = vadd.f32 %v611, %v683
  %v685 = vpop.f32.mrf.mxu0
  %686 = vdwg.mxu0
  %687 = vrot.lane.b32.xlu0 %v199, 112
  %v688 = vpop.permute.xlu0 %687
  %689 = vrot.lane.b32.xlu0 %v199, 80
  %v690 = vpop.permute.xlu0 %689
  %v691 = vsel %vm214, %v688, 0
  %v693 = vsel %vm214, %v690, 0
  %695 = vmatprep.subr.mxu0 0.0
  %696 = vmatpush1.xpose.msra.mxu0 0.0
  %697 = vmatprep.subr.mxu0 0.0
  %698 = vmatpush1.xpose.msra.mxu0 0.0
  %699 = vmatprep.subr.mxu0 0.0
  %700 = vmatpush1.xpose.msra.mxu0 0.0
  %701 = vmatprep.subr.mxu0 0.0
  %702 = vmatpush1.xpose.msra.mxu0 0.0
  %703 = vmatprep.subr.mxu0 0.0
  %704 = vmatpush1.xpose.msra.mxu0 0.0
  %705 = vmatprep.subr.mxu0 0.0
  %706 = vmatpush1.xpose.msra.mxu0 0.0
  %707 = vmatprep.subr.mxu0 0.0
  %708 = vmatpush1.xpose.msra.mxu0 0.0
  %709 = vmatprep.subr.mxu0 0.0
  %710 = vmatpush1.xpose.msra.mxu0 0.0
  %711 = vmatprep.subr.mxu0 0.0
  %712 = vmatpush1.xpose.msra.mxu0 0.0
  %713 = vmatprep.subr.mxu0 0.0
  %714 = vmatpush1.xpose.msra.mxu0 0.0
  %715 = vmatprep.subr.mxu0 0.0
  %716 = vmatpush1.xpose.msra.mxu0 0.0
  %717 = vmatprep.subr.mxu0 0.0
  %718 = vmatpush1.xpose.msra.mxu0 0.0
  %719 = vmatprep.subr.mxu0 0.0
  %720 = vmatpush1.xpose.msra.mxu0 0.0
  %721 = vmatprep.subr.mxu0 0.0
  %722 = vmatpush1.xpose.msra.mxu0 0.0
  %723 = vmatprep.subr.mxu0 0.0
  %724 = vmatpush1.xpose.msra.mxu0 0.0
  %725 = vmatprep.subr.mxu0 0.0
  %726 = vmatpush1.xpose.msra.mxu0 %v693
  %727 = vmatprep.subr.mxu0 0.0
  %728 = vmatpush2.xpose.msra.mxu0 0.0
  %729 = vmatprep.subr.mxu0 0.0
  %730 = vmatpush2.xpose.msra.mxu0 0.0
  %731 = vmatprep.subr.mxu0 0.0
  %732 = vmatpush2.xpose.msra.mxu0 0.0
  %733 = vmatprep.subr.mxu0 0.0
  %734 = vmatpush2.xpose.msra.mxu0 0.0
  %735 = vmatprep.subr.mxu0 0.0
  %736 = vmatpush2.xpose.msra.mxu0 0.0
  %737 = vmatprep.subr.mxu0 0.0
  %738 = vmatpush2.xpose.msra.mxu0 0.0
  %739 = vmatprep.subr.mxu0 0.0
  %740 = vmatpush2.xpose.msra.mxu0 0.0
  %741 = vmatprep.subr.mxu0 0.0
  %742 = vmatpush2.xpose.msra.mxu0 0.0
  %743 = vmatprep.subr.mxu0 0.0
  %744 = vmatpush2.xpose.msra.mxu0 0.0
  %745 = vmatprep.subr.mxu0 0.0
  %746 = vmatpush2.xpose.msra.mxu0 0.0
  %747 = vmatprep.subr.mxu0 0.0
  %748 = vmatpush2.xpose.msra.mxu0 0.0
  %749 = vmatprep.subr.mxu0 0.0
  %750 = vmatpush2.xpose.msra.mxu0 0.0
  %751 = vmatprep.subr.mxu0 0.0
  %752 = vmatpush2.xpose.msra.mxu0 0.0
  %753 = vmatprep.subr.mxu0 0.0
  %754 = vmatpush2.xpose.msra.mxu0 0.0
  %755 = vmatprep.subr.mxu0 0.0
  %756 = vmatpush2.xpose.msra.mxu0 0.0
  %757 = vmatprep.subr.mxu0 0.0
  %758 = vmatpush2.xpose.msra.mxu0 0.0
  %759 = vmatprep.mubr.f32.mxu0 0.0
  %760 = vmatmul.mubr.f32.gmra.mxu0 %v691
  %v761 = vpop.f32.mrf.mxu0
  %v762 = vadd.f32 %v113, %v761
  %v763 = vpop.f32.mrf.mxu0
  %764 = vdwg.mxu0
  %v765 = vsel %vm214, %v762, -inf
  %766 = vmax.xlane.f32.xlu0 %v765
  %v767 = vpop.xlane.xlu0 %766
  %v768 = vsub.f32 %v762, %v767
  %v769 = vmul.f32 %v768, 1.442695
  %v770 = vpow.pop %v769
  %v771 = vsel %vm214, %v770, 0.0
  %772 = vadd.xlane.f32.xlu0 %v771
  %v773 = vpop.xlane.xlu0 %772
  %v774 = vrcp.pop %v773
  %v775 = vmul.f32 %v770, %v774
  %776 = vrot.lane.b32.xlu0 %v199, 48
  %v777 = vpop.permute.xlu0 %776
  %v780 = vsel %vm214, %v775, 0
  %782 = vmatprep.subr.mxu0 0.0
  %783 = vmatpush1.msra.mxu0 0.0
  %784 = vmatprep.subr.mxu0 0.0
  %785 = vmatpush1.msra.mxu0 0.0
  %786 = vmatprep.subr.mxu0 0.0
  %787 = vmatpush1.msra.mxu0 0.0
  %788 = vmatprep.subr.mxu0 0.0
  %789 = vmatpush1.msra.mxu0 0.0
  %790 = vmatprep.subr.mxu0 0.0
  %791 = vmatpush1.msra.mxu0 0.0
  %792 = vmatprep.subr.mxu0 0.0
  %793 = vmatpush1.msra.mxu0 0.0
  %794 = vmatprep.subr.mxu0 0.0
  %795 = vmatpush1.msra.mxu0 0.0
  %796 = vmatprep.subr.mxu0 0.0
  %797 = vmatpush1.msra.mxu0 0.0
  %798 = vmatprep.subr.mxu0 0.0
  %799 = vmatpush1.msra.mxu0 0.0
  %800 = vmatprep.subr.mxu0 0.0
  %801 = vmatpush1.msra.mxu0 0.0
  %802 = vmatprep.subr.mxu0 0.0
  %803 = vmatpush1.msra.mxu0 0.0
  %804 = vmatprep.subr.mxu0 0.0
  %805 = vmatpush1.msra.mxu0 0.0
  %806 = vmatprep.subr.mxu0 0.0
  %807 = vmatpush1.msra.mxu0 0.0
  %808 = vmatprep.subr.mxu0 0.0
  %809 = vmatpush1.msra.mxu0 0.0
  %810 = vmatprep.subr.mxu0 0.0
  %811 = vmatpush1.msra.mxu0 0.0
  %812 = vmatprep.subr.mxu0 0.0
  %813 = vmatpush1.msra.mxu0 %v777
  %814 = vmatprep.subr.mxu0 0.0
  %815 = vmatpush2.msra.mxu0 0.0
  %816 = vmatprep.subr.mxu0 0.0
  %817 = vmatpush2.msra.mxu0 0.0
  %818 = vmatprep.subr.mxu0 0.0
  %819 = vmatpush2.msra.mxu0 0.0
  %820 = vmatprep.subr.mxu0 0.0
  %821 = vmatpush2.msra.mxu0 0.0
  %822 = vmatprep.subr.mxu0 0.0
  %823 = vmatpush2.msra.mxu0 0.0
  %824 = vmatprep.subr.mxu0 0.0
  %825 = vmatpush2.msra.mxu0 0.0
  %826 = vmatprep.subr.mxu0 0.0
  %827 = vmatpush2.msra.mxu0 0.0
  %828 = vmatprep.subr.mxu0 0.0
  %829 = vmatpush2.msra.mxu0 0.0
  %830 = vmatprep.subr.mxu0 0.0
  %831 = vmatpush2.msra.mxu0 0.0
  %832 = vmatprep.subr.mxu0 0.0
  %833 = vmatpush2.msra.mxu0 0.0
  %834 = vmatprep.subr.mxu0 0.0
  %835 = vmatpush2.msra.mxu0 0.0
  %836 = vmatprep.subr.mxu0 0.0
  %837 = vmatpush2.msra.mxu0 0.0
  %838 = vmatprep.subr.mxu0 0.0
  %839 = vmatpush2.msra.mxu0 0.0
  %840 = vmatprep.subr.mxu0 0.0
  %841 = vmatpush2.msra.mxu0 0.0
  %842 = vmatprep.subr.mxu0 0.0
  %843 = vmatpush2.msra.mxu0 0.0
  %844 = vmatprep.subr.mxu0 0.0
  %845 = vmatpush2.msra.mxu0 0.0
  %846 = vmatprep.mubr.f32.mxu0 0.0
  %847 = vmatmul.mubr.f32.gmra.mxu0 %v780
  %v848 = vpop.f32.mrf.mxu0
  %v849 = vadd.f32 0.0, %v848
  %v850 = vpop.f32.mrf.mxu0
  %851 = vdwg.mxu0
  %v853 = vsel %vm214, %v849, 0
  %855 = vmatprep.subr.mxu0 0.0
  %856 = vmatpush1.msra.mxu0 0.0
  %857 = vmatprep.subr.mxu0 0.0
  %858 = vmatpush1.msra.mxu0 0.0
  %859 = vmatprep.subr.mxu0 0.0
  %860 = vmatpush1.msra.mxu0 0.0
  %861 = vmatprep.subr.mxu0 0.0
  %862 = vmatpush1.msra.mxu0 0.0
  %863 = vmatprep.subr.mxu0 0.0
  %864 = vmatpush1.msra.mxu0 0.0
  %865 = vmatprep.subr.mxu0 0.0
  %866 = vmatpush1.msra.mxu0 0.0
  %867 = vmatprep.subr.mxu0 0.0
  %868 = vmatpush1.msra.mxu0 0.0
  %869 = vmatprep.subr.mxu0 0.0
  %870 = vmatpush1.msra.mxu0 0.0
  %871 = vmatprep.subr.mxu0 0.0
  %872 = vmatpush1.msra.mxu0 0.0
  %873 = vmatprep.subr.mxu0 0.0
  %874 = vmatpush1.msra.mxu0 0.0
  %875 = vmatprep.subr.mxu0 0.0
  %876 = vmatpush1.msra.mxu0 0.0
  %877 = vmatprep.subr.mxu0 0.0
  %878 = vmatpush1.msra.mxu0 0.0
  %879 = vmatprep.subr.mxu0 0.0
  %880 = vmatpush1.msra.mxu0 0.0
  %881 = vmatprep.subr.mxu0 0.0
  %882 = vmatpush1.msra.mxu0 0.0
  %883 = vmatprep.subr.mxu0 0.0
  %884 = vmatpush1.msra.mxu0 0.0
  %885 = vmatprep.subr.mxu0 0.0
  %886 = vmatpush1.msra.mxu0 %v209
  %887 = vmatprep.subr.mxu0 0.0
  %888 = vmatpush2.msra.mxu0 0.0
  %889 = vmatprep.subr.mxu0 0.0
  %890 = vmatpush2.msra.mxu0 0.0
  %891 = vmatprep.subr.mxu0 0.0
  %892 = vmatpush2.msra.mxu0 0.0
  %893 = vmatprep.subr.mxu0 0.0
  %894 = vmatpush2.msra.mxu0 0.0
  %895 = vmatprep.subr.mxu0 0.0
  %896 = vmatpush2.msra.mxu0 0.0
  %897 = vmatprep.subr.mxu0 0.0
  %898 = vmatpush2.msra.mxu0 0.0
  %899 = vmatprep.subr.mxu0 0.0
  %900 = vmatpush2.msra.mxu0 0.0
  %901 = vmatprep.subr.mxu0 0.0
  %902 = vmatpush2.msra.mxu0 0.0
  %903 = vmatprep.subr.mxu0 0.0
  %904 = vmatpush2.msra.mxu0 0.0
  %905 = vmatprep.subr.mxu0 0.0
  %906 = vmatpush2.msra.mxu0 0.0
  %907 = vmatprep.subr.mxu0 0.0
  %908 = vmatpush2.msra.mxu0 0.0
  %909 = vmatprep.subr.mxu0 0.0
  %910 = vmatpush2.msra.mxu0 0.0
  %911 = vmatprep.subr.mxu0 0.0
  %912 = vmatpush2.msra.mxu0 0.0
  %913 = vmatprep.subr.mxu0 0.0
  %914 = vmatpush2.msra.mxu0 0.0
  %915 = vmatprep.subr.mxu0 0.0
  %916 = vmatpush2.msra.mxu0 0.0
  %917 = vmatprep.subr.mxu0 0.0
  %918 = vmatpush2.msra.mxu0 0.0
  %919 = vmatprep.mubr.f32.mxu0 0.0
  %920 = vmatmul.mubr.f32.gmra.mxu0 %v853
  %v921 = vpop.f32.mrf.mxu0
  %v922 = vadd.f32 0.0, %v921
  %v923 = vpop.f32.mrf.mxu0
  %924 = vdwg.mxu0
  %v925 = vadd.f32 %v684, %v922
  %926 = vrot.lane.b32.xlu0 %v199, 104
  %v927 = vpop.permute.xlu0 %926
  %928 = vrot.lane.b32.xlu0 %v199, 72
  %v929 = vpop.permute.xlu0 %928
  %v930 = vsel %vm214, %v927, 0
  %v932 = vsel %vm214, %v929, 0
  %934 = vmatprep.subr.mxu0 0.0
  %935 = vmatpush1.xpose.msra.mxu0 0.0
  %936 = vmatprep.subr.mxu0 0.0
  %937 = vmatpush1.xpose.msra.mxu0 0.0
  %938 = vmatprep.subr.mxu0 0.0
  %939 = vmatpush1.xpose.msra.mxu0 0.0
  %940 = vmatprep.subr.mxu0 0.0
  %941 = vmatpush1.xpose.msra.mxu0 0.0
  %942 = vmatprep.subr.mxu0 0.0
  %943 = vmatpush1.xpose.msra.mxu0 0.0
  %944 = vmatprep.subr.mxu0 0.0
  %945 = vmatpush1.xpose.msra.mxu0 0.0
  %946 = vmatprep.subr.mxu0 0.0
  %947 = vmatpush1.xpose.msra.mxu0 0.0
  %948 = vmatprep.subr.mxu0 0.0
  %949 = vmatpush1.xpose.msra.mxu0 0.0
  %950 = vmatprep.subr.mxu0 0.0
  %951 = vmatpush1.xpose.msra.mxu0 0.0
  %952 = vmatprep.subr.mxu0 0.0
  %953 = vmatpush1.xpose.msra.mxu0 0.0
  %954 = vmatprep.subr.mxu0 0.0
  %955 = vmatpush1.xpose.msra.mxu0 0.0
  %956 = vmatprep.subr.mxu0 0.0
  %957 = vmatpush1.xpose.msra.mxu0 0.0
  %958 = vmatprep.subr.mxu0 0.0
  %959 = vmatpush1.xpose.msra.mxu0 0.0
  %960 = vmatprep.subr.mxu0 0.0
  %961 = vmatpush1.xpose.msra.mxu0 0.0
  %962 = vmatprep.subr.mxu0 0.0
  %963 = vmatpush1.xpose.msra.mxu0 0.0
  %964 = vmatprep.subr.mxu0 0.0
  %965 = vmatpush1.xpose.msra.mxu0 %v932
  %966 = vmatprep.subr.mxu0 0.0
  %967 = vmatpush2.xpose.msra.mxu0 0.0
  %968 = vmatprep.subr.mxu0 0.0
  %969 = vmatpush2.xpose.msra.mxu0 0.0
  %970 = vmatprep.subr.mxu0 0.0
  %971 = vmatpush2.xpose.msra.mxu0 0.0
  %972 = vmatprep.subr.mxu0 0.0
  %973 = vmatpush2.xpose.msra.mxu0 0.0
  %974 = vmatprep.subr.mxu0 0.0
  %975 = vmatpush2.xpose.msra.mxu0 0.0
  %976 = vmatprep.subr.mxu0 0.0
  %977 = vmatpush2.xpose.msra.mxu0 0.0
  %978 = vmatprep.subr.mxu0 0.0
  %979 = vmatpush2.xpose.msra.mxu0 0.0
  %980 = vmatprep.subr.mxu0 0.0
  %981 = vmatpush2.xpose.msra.mxu0 0.0
  %982 = vmatprep.subr.mxu0 0.0
  %983 = vmatpush2.xpose.msra.mxu0 0.0
  %984 = vmatprep.subr.mxu0 0.0
  %985 = vmatpush2.xpose.msra.mxu0 0.0
  %986 = vmatprep.subr.mxu0 0.0
  %987 = vmatpush2.xpose.msra.mxu0 0.0
  %988 = vmatprep.subr.mxu0 0.0
  %989 = vmatpush2.xpose.msra.mxu0 0.0
  %990 = vmatprep.subr.mxu0 0.0
  %991 = vmatpush2.xpose.msra.mxu0 0.0
  %992 = vmatprep.subr.mxu0 0.0
  %993 = vmatpush2.xpose.msra.mxu0 0.0
  %994 = vmatprep.subr.mxu0 0.0
  %995 = vmatpush2.xpose.msra.mxu0 0.0
  %996 = vmatprep.subr.mxu0 0.0
  %997 = vmatpush2.xpose.msra.mxu0 0.0
  %998 = vmatprep.mubr.f32.mxu0 0.0
  %999 = vmatmul.mubr.f32.gmra.mxu0 %v930
  %v1000 = vpop.f32.mrf.mxu0
  %v1001 = vadd.f32 %v113, %v1000
  %v1002 = vpop.f32.mrf.mxu0
  %1003 = vdwg.mxu0
  %v1004 = vsel %vm214, %v1001, -inf
  %1005 = vmax.xlane.f32.xlu0 %v1004
  %v1006 = vpop.xlane.xlu0 %1005
  %v1007 = vsub.f32 %v1001, %v1006
  %v1008 = vmul.f32 %v1007, 1.442695
  %v1009 = vpow.pop %v1008
  %v1010 = vsel %vm214, %v1009, 0.0
  %1011 = vadd.xlane.f32.xlu0 %v1010
  %v1012 = vpop.xlane.xlu0 %1011
  %v1013 = vrcp.pop %v1012
  %v1014 = vmul.f32 %v1009, %v1013
  %1015 = vrot.lane.b32.xlu0 %v199, 40
  %v1016 = vpop.permute.xlu0 %1015
  %v1019 = vsel %vm214, %v1014, 0
  %1021 = vmatprep.subr.mxu0 0.0
  %1022 = vmatpush1.msra.mxu0 0.0
  %1023 = vmatprep.subr.mxu0 0.0
  %1024 = vmatpush1.msra.mxu0 0.0
  %1025 = vmatprep.subr.mxu0 0.0
  %1026 = vmatpush1.msra.mxu0 0.0
  %1027 = vmatprep.subr.mxu0 0.0
  %1028 = vmatpush1.msra.mxu0 0.0
  %1029 = vmatprep.subr.mxu0 0.0
  %1030 = vmatpush1.msra.mxu0 0.0
  %1031 = vmatprep.subr.mxu0 0.0
  %1032 = vmatpush1.msra.mxu0 0.0
  %1033 = vmatprep.subr.mxu0 0.0
  %1034 = vmatpush1.msra.mxu0 0.0
  %1035 = vmatprep.subr.mxu0 0.0
  %1036 = vmatpush1.msra.mxu0 0.0
  %1037 = vmatprep.subr.mxu0 0.0
  %1038 = vmatpush1.msra.mxu0 0.0
  %1039 = vmatprep.subr.mxu0 0.0
  %1040 = vmatpush1.msra.mxu0 0.0
  %1041 = vmatprep.subr.mxu0 0.0
  %1042 = vmatpush1.msra.mxu0 0.0
  %1043 = vmatprep.subr.mxu0 0.0
  %1044 = vmatpush1.msra.mxu0 0.0
  %1045 = vmatprep.subr.mxu0 0.0
  %1046 = vmatpush1.msra.mxu0 0.0
  %1047 = vmatprep.subr.mxu0 0.0
  %1048 = vmatpush1.msra.mxu0 0.0
  %1049 = vmatprep.subr.mxu0 0.0
  %1050 = vmatpush1.msra.mxu0 0.0
  %1051 = vmatprep.subr.mxu0 0.0
  %1052 = vmatpush1.msra.mxu0 %v1016
  %1053 = vmatprep.subr.mxu0 0.0
  %1054 = vmatpush2.msra.mxu0 0.0
  %1055 = vmatprep.subr.mxu0 0.0
  %1056 = vmatpush2.msra.mxu0 0.0
  %1057 = vmatprep.subr.mxu0 0.0
  %1058 = vmatpush2.msra.mxu0 0.0
  %1059 = vmatprep.subr.mxu0 0.0
  %1060 = vmatpush2.msra.mxu0 0.0
  %1061 = vmatprep.subr.mxu0 0.0
  %1062 = vmatpush2.msra.mxu0 0.0
  %1063 = vmatprep.subr.mxu0 0.0
  %1064 = vmatpush2.msra.mxu0 0.0
  %1065 = vmatprep.subr.mxu0 0.0
  %1066 = vmatpush2.msra.mxu0 0.0
  %1067 = vmatprep.subr.mxu0 0.0
  %1068 = vmatpush2.msra.mxu0 0.0
  %1069 = vmatprep.subr.mxu0 0.0
  %1070 = vmatpush2.msra.mxu0 0.0
  %1071 = vmatprep.subr.mxu0 0.0
  %1072 = vmatpush2.msra.mxu0 0.0
  %1073 = vmatprep.subr.mxu0 0.0
  %1074 = vmatpush2.msra.mxu0 0.0
  %1075 = vmatprep.subr.mxu0 0.0
  %1076 = vmatpush2.msra.mxu0 0.0
  %1077 = vmatprep.subr.mxu0 0.0
  %1078 = vmatpush2.msra.mxu0 0.0
  %1079 = vmatprep.subr.mxu0 0.0
  %1080 = vmatpush2.msra.mxu0 0.0
  %1081 = vmatprep.subr.mxu0 0.0
  %1082 = vmatpush2.msra.mxu0 0.0
  %1083 = vmatprep.subr.mxu0 0.0
  %1084 = vmatpush2.msra.mxu0 0.0
  %1085 = vmatprep.mubr.f32.mxu0 0.0
  %1086 = vmatmul.mubr.f32.gmra.mxu0 %v1019
  %v1087 = vpop.f32.mrf.mxu0
  %v1088 = vadd.f32 0.0, %v1087
  %v1089 = vpop.f32.mrf.mxu0
  %1090 = vdwg.mxu0
  %v1092 = vsel %vm214, %v1088, 0
  %1094 = vmatprep.subr.mxu0 0.0
  %1095 = vmatpush1.msra.mxu0 0.0
  %1096 = vmatprep.subr.mxu0 0.0
  %1097 = vmatpush1.msra.mxu0 0.0
  %1098 = vmatprep.subr.mxu0 0.0
  %1099 = vmatpush1.msra.mxu0 0.0
  %1100 = vmatprep.subr.mxu0 0.0
  %1101 = vmatpush1.msra.mxu0 0.0
  %1102 = vmatprep.subr.mxu0 0.0
  %1103 = vmatpush1.msra.mxu0 0.0
  %1104 = vmatprep.subr.mxu0 0.0
  %1105 = vmatpush1.msra.mxu0 0.0
  %1106 = vmatprep.subr.mxu0 0.0
  %1107 = vmatpush1.msra.mxu0 0.0
  %1108 = vmatprep.subr.mxu0 0.0
  %1109 = vmatpush1.msra.mxu0 0.0
  %1110 = vmatprep.subr.mxu0 0.0
  %1111 = vmatpush1.msra.mxu0 0.0
  %1112 = vmatprep.subr.mxu0 0.0
  %1113 = vmatpush1.msra.mxu0 0.0
  %1114 = vmatprep.subr.mxu0 0.0
  %1115 = vmatpush1.msra.mxu0 0.0
  %1116 = vmatprep.subr.mxu0 0.0
  %1117 = vmatpush1.msra.mxu0 0.0
  %1118 = vmatprep.subr.mxu0 0.0
  %1119 = vmatpush1.msra.mxu0 0.0
  %1120 = vmatprep.subr.mxu0 0.0
  %1121 = vmatpush1.msra.mxu0 0.0
  %1122 = vmatprep.subr.mxu0 0.0
  %1123 = vmatpush1.msra.mxu0 0.0
  %1124 = vmatprep.subr.mxu0 0.0
  %1125 = vmatpush1.msra.mxu0 %v210
  %1126 = vmatprep.subr.mxu0 0.0
  %1127 = vmatpush2.msra.mxu0 0.0
  %1128 = vmatprep.subr.mxu0 0.0
  %1129 = vmatpush2.msra.mxu0 0.0
  %1130 = vmatprep.subr.mxu0 0.0
  %1131 = vmatpush2.msra.mxu0 0.0
  %1132 = vmatprep.subr.mxu0 0.0
  %1133 = vmatpush2.msra.mxu0 0.0
  %1134 = vmatprep.subr.mxu0 0.0
  %1135 = vmatpush2.msra.mxu0 0.0
  %1136 = vmatprep.subr.mxu0 0.0
  %1137 = vmatpush2.msra.mxu0 0.0
  %1138 = vmatprep.subr.mxu0 0.0
  %1139 = vmatpush2.msra.mxu0 0.0
  %1140 = vmatprep.subr.mxu0 0.0
  %1141 = vmatpush2.msra.mxu0 0.0
  %1142 = vmatprep.subr.mxu0 0.0
  %1143 = vmatpush2.msra.mxu0 0.0
  %1144 = vmatprep.subr.mxu0 0.0
  %1145 = vmatpush2.msra.mxu0 0.0
  %1146 = vmatprep.subr.mxu0 0.0
  %1147 = vmatpush2.msra.mxu0 0.0
  %1148 = vmatprep.subr.mxu0 0.0
  %1149 = vmatpush2.msra.mxu0 0.0
  %1150 = vmatprep.subr.mxu0 0.0
  %1151 = vmatpush2.msra.mxu0 0.0
  %1152 = vmatprep.subr.mxu0 0.0
  %1153 = vmatpush2.msra.mxu0 0.0
  %1154 = vmatprep.subr.mxu0 0.0
  %1155 = vmatpush2.msra.mxu0 0.0
  %1156 = vmatprep.subr.mxu0 0.0
  %1157 = vmatpush2.msra.mxu0 0.0
  %1158 = vmatprep.mubr.f32.mxu0 0.0
  %1159 = vmatmul.mubr.f32.gmra.mxu0 %v1092
  %v1160 = vpop.f32.mrf.mxu0
  %v1161 = vadd.f32 0.0, %v1160
  %v1162 = vpop.f32.mrf.mxu0
  %1163 = vdwg.mxu0
  %v1164 = vadd.f32 %v925, %v1161
  %1166 = vrot.lane.b32.xlu0 %v204, 96
  %v1167 = vpop.permute.xlu0 %1166
  %v1168 = vsel %vm214, %v204, 0
  %v1170 = vsel %vm214, %v1167, 0
  %1172 = vmatprep.subr.mxu0 0.0
  %1173 = vmatpush1.xpose.msra.mxu0 0.0
  %1174 = vmatprep.subr.mxu0 0.0
  %1175 = vmatpush1.xpose.msra.mxu0 0.0
  %1176 = vmatprep.subr.mxu0 0.0
  %1177 = vmatpush1.xpose.msra.mxu0 0.0
  %1178 = vmatprep.subr.mxu0 0.0
  %1179 = vmatpush1.xpose.msra.mxu0 0.0
  %1180 = vmatprep.subr.mxu0 0.0
  %1181 = vmatpush1.xpose.msra.mxu0 0.0
  %1182 = vmatprep.subr.mxu0 0.0
  %1183 = vmatpush1.xpose.msra.mxu0 0.0
  %1184 = vmatprep.subr.mxu0 0.0
  %1185 = vmatpush1.xpose.msra.mxu0 0.0
  %1186 = vmatprep.subr.mxu0 0.0
  %1187 = vmatpush1.xpose.msra.mxu0 0.0
  %1188 = vmatprep.subr.mxu0 0.0
  %1189 = vmatpush1.xpose.msra.mxu0 0.0
  %1190 = vmatprep.subr.mxu0 0.0
  %1191 = vmatpush1.xpose.msra.mxu0 0.0
  %1192 = vmatprep.subr.mxu0 0.0
  %1193 = vmatpush1.xpose.msra.mxu0 0.0
  %1194 = vmatprep.subr.mxu0 0.0
  %1195 = vmatpush1.xpose.msra.mxu0 0.0
  %1196 = vmatprep.subr.mxu0 0.0
  %1197 = vmatpush1.xpose.msra.mxu0 0.0
  %1198 = vmatprep.subr.mxu0 0.0
  %1199 = vmatpush1.xpose.msra.mxu0 0.0
  %1200 = vmatprep.subr.mxu0 0.0
  %1201 = vmatpush1.xpose.msra.mxu0 0.0
  %1202 = vmatprep.subr.mxu0 0.0
  %1203 = vmatpush1.xpose.msra.mxu0 %v1170
  %1204 = vmatprep.subr.mxu0 0.0
  %1205 = vmatpush2.xpose.msra.mxu0 0.0
  %1206 = vmatprep.subr.mxu0 0.0
  %1207 = vmatpush2.xpose.msra.mxu0 0.0
  %1208 = vmatprep.subr.mxu0 0.0
  %1209 = vmatpush2.xpose.msra.mxu0 0.0
  %1210 = vmatprep.subr.mxu0 0.0
  %1211 = vmatpush2.xpose.msra.mxu0 0.0
  %1212 = vmatprep.subr.mxu0 0.0
  %1213 = vmatpush2.xpose.msra.mxu0 0.0
  %1214 = vmatprep.subr.mxu0 0.0
  %1215 = vmatpush2.xpose.msra.mxu0 0.0
  %1216 = vmatprep.subr.mxu0 0.0
  %1217 = vmatpush2.xpose.msra.mxu0 0.0
  %1218 = vmatprep.subr.mxu0 0.0
  %1219 = vmatpush2.xpose.msra.mxu0 0.0
  %1220 = vmatprep.subr.mxu0 0.0
  %1221 = vmatpush2.xpose.msra.mxu0 0.0
  %1222 = vmatprep.subr.mxu0 0.0
  %1223 = vmatpush2.xpose.msra.mxu0 0.0
  %1224 = vmatprep.subr.mxu0 0.0
  %1225 = vmatpush2.xpose.msra.mxu0 0.0
  %1226 = vmatprep.subr.mxu0 0.0
  %1227 = vmatpush2.xpose.msra.mxu0 0.0
  %1228 = vmatprep.subr.mxu0 0.0
  %1229 = vmatpush2.xpose.msra.mxu0 0.0
  %1230 = vmatprep.subr.mxu0 0.0
  %1231 = vmatpush2.xpose.msra.mxu0 0.0
  %1232 = vmatprep.subr.mxu0 0.0
  %1233 = vmatpush2.xpose.msra.mxu0 0.0
  %1234 = vmatprep.subr.mxu0 0.0
  %1235 = vmatpush2.xpose.msra.mxu0 0.0
  %1236 = vmatprep.mubr.f32.mxu0 0.0
  %1237 = vmatmul.mubr.f32.gmra.mxu0 %v1168
  %v1238 = vpop.f32.mrf.mxu0
  %v1239 = vadd.f32 %v114, %v1238
  %v1240 = vpop.f32.mrf.mxu0
  %1241 = vdwg.mxu0
  %v1242 = vsel %vm214, %v1239, -inf
  %1243 = vmax.xlane.f32.xlu0 %v1242
  %v1244 = vpop.xlane.xlu0 %1243
  %v1245 = vsub.f32 %v1239, %v1244
  %v1246 = vmul.f32 %v1245, 1.442695
  %v1247 = vpow.pop %v1246
  %v1248 = vsel %vm214, %v1247, 0.0
  %1249 = vadd.xlane.f32.xlu0 %v1248
  %v1250 = vpop.xlane.xlu0 %1249
  %v1251 = vrcp.pop %v1250
  %v1252 = vmul.f32 %v1247, %v1251
  %1253 = vrot.lane.b32.xlu0 %v204, 64
  %v1254 = vpop.permute.xlu0 %1253
  %v1257 = vsel %vm214, %v1252, 0
  %1259 = vmatprep.subr.mxu0 0.0
  %1260 = vmatpush1.msra.mxu0 0.0
  %1261 = vmatprep.subr.mxu0 0.0
  %1262 = vmatpush1.msra.mxu0 0.0
  %1263 = vmatprep.subr.mxu0 0.0
  %1264 = vmatpush1.msra.mxu0 0.0
  %1265 = vmatprep.subr.mxu0 0.0
  %1266 = vmatpush1.msra.mxu0 0.0
  %1267 = vmatprep.subr.mxu0 0.0
  %1268 = vmatpush1.msra.mxu0 0.0
  %1269 = vmatprep.subr.mxu0 0.0
  %1270 = vmatpush1.msra.mxu0 0.0
  %1271 = vmatprep.subr.mxu0 0.0
  %1272 = vmatpush1.msra.mxu0 0.0
  %1273 = vmatprep.subr.mxu0 0.0
  %1274 = vmatpush1.msra.mxu0 0.0
  %1275 = vmatprep.subr.mxu0 0.0
  %1276 = vmatpush1.msra.mxu0 0.0
  %1277 = vmatprep.subr.mxu0 0.0
  %1278 = vmatpush1.msra.mxu0 0.0
  %1279 = vmatprep.subr.mxu0 0.0
  %1280 = vmatpush1.msra.mxu0 0.0
  %1281 = vmatprep.subr.mxu0 0.0
  %1282 = vmatpush1.msra.mxu0 0.0
  %1283 = vmatprep.subr.mxu0 0.0
  %1284 = vmatpush1.msra.mxu0 0.0
  %1285 = vmatprep.subr.mxu0 0.0
  %1286 = vmatpush1.msra.mxu0 0.0
  %1287 = vmatprep.subr.mxu0 0.0
  %1288 = vmatpush1.msra.mxu0 0.0
  %1289 = vmatprep.subr.mxu0 0.0
  %1290 = vmatpush1.msra.mxu0 %v1254
  %1291 = vmatprep.subr.mxu0 0.0
  %1292 = vmatpush2.msra.mxu0 0.0
  %1293 = vmatprep.subr.mxu0 0.0
  %1294 = vmatpush2.msra.mxu0 0.0
  %1295 = vmatprep.subr.mxu0 0.0
  %1296 = vmatpush2.msra.mxu0 0.0
  %1297 = vmatprep.subr.mxu0 0.0
  %1298 = vmatpush2.msra.mxu0 0.0
  %1299 = vmatprep.subr.mxu0 0.0
  %1300 = vmatpush2.msra.mxu0 0.0
  %1301 = vmatprep.subr.mxu0 0.0
  %1302 = vmatpush2.msra.mxu0 0.0
  %1303 = vmatprep.subr.mxu0 0.0
  %1304 = vmatpush2.msra.mxu0 0.0
  %1305 = vmatprep.subr.mxu0 0.0
  %1306 = vmatpush2.msra.mxu0 0.0
  %1307 = vmatprep.subr.mxu0 0.0
  %1308 = vmatpush2.msra.mxu0 0.0
  %1309 = vmatprep.subr.mxu0 0.0
  %1310 = vmatpush2.msra.mxu0 0.0
  %1311 = vmatprep.subr.mxu0 0.0
  %1312 = vmatpush2.msra.mxu0 0.0
  %1313 = vmatprep.subr.mxu0 0.0
  %1314 = vmatpush2.msra.mxu0 0.0
  %1315 = vmatprep.subr.mxu0 0.0
  %1316 = vmatpush2.msra.mxu0 0.0
  %1317 = vmatprep.subr.mxu0 0.0
  %1318 = vmatpush2.msra.mxu0 0.0
  %1319 = vmatprep.subr.mxu0 0.0
  %1320 = vmatpush2.msra.mxu0 0.0
  %1321 = vmatprep.subr.mxu0 0.0
  %1322 = vmatpush2.msra.mxu0 0.0
  %1323 = vmatprep.mubr.f32.mxu0 0.0
  %1324 = vmatmul.mubr.f32.gmra.mxu0 %v1257
  %v1325 = vpop.f32.mrf.mxu0
  %v1326 = vadd.f32 0.0, %v1325
  %v1327 = vpop.f32.mrf.mxu0
  %1328 = vdwg.mxu0
  %1329 = vrot.lane.b32.xlu0 %v204, 120
  %v1330 = vpop.permute.xlu0 %1329
  %1331 = vrot.lane.b32.xlu0 %v204, 88
  %v1332 = vpop.permute.xlu0 %1331
  %v1333 = vsel %vm214, %v1330, 0
  %v1335 = vsel %vm214, %v1332, 0
  %1337 = vmatprep.subr.mxu0 0.0
  %1338 = vmatpush1.xpose.msra.mxu0 0.0
  %1339 = vmatprep.subr.mxu0 0.0
  %1340 = vmatpush1.xpose.msra.mxu0 0.0
  %1341 = vmatprep.subr.mxu0 0.0
  %1342 = vmatpush1.xpose.msra.mxu0 0.0
  %1343 = vmatprep.subr.mxu0 0.0
  %1344 = vmatpush1.xpose.msra.mxu0 0.0
  %1345 = vmatprep.subr.mxu0 0.0
  %1346 = vmatpush1.xpose.msra.mxu0 0.0
  %1347 = vmatprep.subr.mxu0 0.0
  %1348 = vmatpush1.xpose.msra.mxu0 0.0
  %1349 = vmatprep.subr.mxu0 0.0
  %1350 = vmatpush1.xpose.msra.mxu0 0.0
  %1351 = vmatprep.subr.mxu0 0.0
  %1352 = vmatpush1.xpose.msra.mxu0 0.0
  %1353 = vmatprep.subr.mxu0 0.0
  %1354 = vmatpush1.xpose.msra.mxu0 0.0
  %1355 = vmatprep.subr.mxu0 0.0
  %1356 = vmatpush1.xpose.msra.mxu0 0.0
  %1357 = vmatprep.subr.mxu0 0.0
  %1358 = vmatpush1.xpose.msra.mxu0 0.0
  %1359 = vmatprep.subr.mxu0 0.0
  %1360 = vmatpush1.xpose.msra.mxu0 0.0
  %1361 = vmatprep.subr.mxu0 0.0
  %1362 = vmatpush1.xpose.msra.mxu0 0.0
  %1363 = vmatprep.subr.mxu0 0.0
  %1364 = vmatpush1.xpose.msra.mxu0 0.0
  %1365 = vmatprep.subr.mxu0 0.0
  %1366 = vmatpush1.xpose.msra.mxu0 0.0
  %1367 = vmatprep.subr.mxu0 0.0
  %1368 = vmatpush1.xpose.msra.mxu0 %v1335
  %1369 = vmatprep.subr.mxu0 0.0
  %1370 = vmatpush2.xpose.msra.mxu0 0.0
  %1371 = vmatprep.subr.mxu0 0.0
  %1372 = vmatpush2.xpose.msra.mxu0 0.0
  %1373 = vmatprep.subr.mxu0 0.0
  %1374 = vmatpush2.xpose.msra.mxu0 0.0
  %1375 = vmatprep.subr.mxu0 0.0
  %1376 = vmatpush2.xpose.msra.mxu0 0.0
  %1377 = vmatprep.subr.mxu0 0.0
  %1378 = vmatpush2.xpose.msra.mxu0 0.0
  %1379 = vmatprep.subr.mxu0 0.0
  %1380 = vmatpush2.xpose.msra.mxu0 0.0
  %1381 = vmatprep.subr.mxu0 0.0
  %1382 = vmatpush2.xpose.msra.mxu0 0.0
  %1383 = vmatprep.subr.mxu0 0.0
  %1384 = vmatpush2.xpose.msra.mxu0 0.0
  %1385 = vmatprep.subr.mxu0 0.0
  %1386 = vmatpush2.xpose.msra.mxu0 0.0
  %1387 = vmatprep.subr.mxu0 0.0
  %1388 = vmatpush2.xpose.msra.mxu0 0.0
  %1389 = vmatprep.subr.mxu0 0.0
  %1390 = vmatpush2.xpose.msra.mxu0 0.0
  %1391 = vmatprep.subr.mxu0 0.0
  %1392 = vmatpush2.xpose.msra.mxu0 0.0
  %1393 = vmatprep.subr.mxu0 0.0
  %1394 = vmatpush2.xpose.msra.mxu0 0.0
  %1395 = vmatprep.subr.mxu0 0.0
  %1396 = vmatpush2.xpose.msra.mxu0 0.0
  %1397 = vmatprep.subr.mxu0 0.0
  %1398 = vmatpush2.xpose.msra.mxu0 0.0
  %1399 = vmatprep.subr.mxu0 0.0
  %1400 = vmatpush2.xpose.msra.mxu0 0.0
  %1401 = vmatprep.mubr.f32.mxu0 0.0
  %1402 = vmatmul.mubr.f32.gmra.mxu0 %v1333
  %v1403 = vpop.f32.mrf.mxu0
  %v1404 = vadd.f32 %v114, %v1403
  %v1405 = vpop.f32.mrf.mxu0
  %1406 = vdwg.mxu0
  %v1407 = vsel %vm214, %v1404, -inf
  %1408 = vmax.xlane.f32.xlu0 %v1407
  %v1409 = vpop.xlane.xlu0 %1408
  %v1410 = vsub.f32 %v1404, %v1409
  %v1411 = vmul.f32 %v1410, 1.442695
  %v1412 = vpow.pop %v1411
  %v1413 = vsel %vm214, %v1412, 0.0
  %1414 = vadd.xlane.f32.xlu0 %v1413
  %v1415 = vpop.xlane.xlu0 %1414
  %v1416 = vrcp.pop %v1415
  %v1417 = vmul.f32 %v1412, %v1416
  %1418 = vrot.lane.b32.xlu0 %v204, 56
  %v1419 = vpop.permute.xlu0 %1418
  %v1422 = vsel %vm214, %v1417, 0
  %1424 = vmatprep.subr.mxu0 0.0
  %1425 = vmatpush1.msra.mxu0 0.0
  %1426 = vmatprep.subr.mxu0 0.0
  %1427 = vmatpush1.msra.mxu0 0.0
  %1428 = vmatprep.subr.mxu0 0.0
  %1429 = vmatpush1.msra.mxu0 0.0
  %1430 = vmatprep.subr.mxu0 0.0
  %1431 = vmatpush1.msra.mxu0 0.0
  %1432 = vmatprep.subr.mxu0 0.0
  %1433 = vmatpush1.msra.mxu0 0.0
  %1434 = vmatprep.subr.mxu0 0.0
  %1435 = vmatpush1.msra.mxu0 0.0
  %1436 = vmatprep.subr.mxu0 0.0
  %1437 = vmatpush1.msra.mxu0 0.0
  %1438 = vmatprep.subr.mxu0 0.0
  %1439 = vmatpush1.msra.mxu0 0.0
  %1440 = vmatprep.subr.mxu0 0.0
  %1441 = vmatpush1.msra.mxu0 0.0
  %1442 = vmatprep.subr.mxu0 0.0
  %1443 = vmatpush1.msra.mxu0 0.0
  %1444 = vmatprep.subr.mxu0 0.0
  %1445 = vmatpush1.msra.mxu0 0.0
  %1446 = vmatprep.subr.mxu0 0.0
  %1447 = vmatpush1.msra.mxu0 0.0
  %1448 = vmatprep.subr.mxu0 0.0
  %1449 = vmatpush1.msra.mxu0 0.0
  %1450 = vmatprep.subr.mxu0 0.0
  %1451 = vmatpush1.msra.mxu0 0.0
  %1452 = vmatprep.subr.mxu0 0.0
  %1453 = vmatpush1.msra.mxu0 0.0
  %1454 = vmatprep.subr.mxu0 0.0
  %1455 = vmatpush1.msra.mxu0 %v1419
  %1456 = vmatprep.subr.mxu0 0.0
  %1457 = vmatpush2.msra.mxu0 0.0
  %1458 = vmatprep.subr.mxu0 0.0
  %1459 = vmatpush2.msra.mxu0 0.0
  %1460 = vmatprep.subr.mxu0 0.0
  %1461 = vmatpush2.msra.mxu0 0.0
  %1462 = vmatprep.subr.mxu0 0.0
  %1463 = vmatpush2.msra.mxu0 0.0
  %1464 = vmatprep.subr.mxu0 0.0
  %1465 = vmatpush2.msra.mxu0 0.0
  %1466 = vmatprep.subr.mxu0 0.0
  %1467 = vmatpush2.msra.mxu0 0.0
  %1468 = vmatprep.subr.mxu0 0.0
  %1469 = vmatpush2.msra.mxu0 0.0
  %1470 = vmatprep.subr.mxu0 0.0
  %1471 = vmatpush2.msra.mxu0 0.0
  %1472 = vmatprep.subr.mxu0 0.0
  %1473 = vmatpush2.msra.mxu0 0.0
  %1474 = vmatprep.subr.mxu0 0.0
  %1475 = vmatpush2.msra.mxu0 0.0
  %1476 = vmatprep.subr.mxu0 0.0
  %1477 = vmatpush2.msra.mxu0 0.0
  %1478 = vmatprep.subr.mxu0 0.0
  %1479 = vmatpush2.msra.mxu0 0.0
  %1480 = vmatprep.subr.mxu0 0.0
  %1481 = vmatpush2.msra.mxu0 0.0
  %1482 = vmatprep.subr.mxu0 0.0
  %1483 = vmatpush2.msra.mxu0 0.0
  %1484 = vmatprep.subr.mxu0 0.0
  %1485 = vmatpush2.msra.mxu0 0.0
  %1486 = vmatprep.subr.mxu0 0.0
  %1487 = vmatpush2.msra.mxu0 0.0
  %1488 = vmatprep.mubr.f32.mxu0 0.0
  %1489 = vmatmul.mubr.f32.gmra.mxu0 %v1422
  %v1490 = vpop.f32.mrf.mxu0
  %v1491 = vadd.f32 0.0, %v1490
  %v1492 = vpop.f32.mrf.mxu0
  %1493 = vdwg.mxu0
  %v1495 = vsel %vm214, %v1491, 0
  %1497 = vmatprep.subr.mxu0 0.0
  %1498 = vmatpush1.msra.mxu0 0.0
  %1499 = vmatprep.subr.mxu0 0.0
  %1500 = vmatpush1.msra.mxu0 0.0
  %1501 = vmatprep.subr.mxu0 0.0
  %1502 = vmatpush1.msra.mxu0 0.0
  %1503 = vmatprep.subr.mxu0 0.0
  %1504 = vmatpush1.msra.mxu0 0.0
  %1505 = vmatprep.subr.mxu0 0.0
  %1506 = vmatpush1.msra.mxu0 0.0
  %1507 = vmatprep.subr.mxu0 0.0
  %1508 = vmatpush1.msra.mxu0 0.0
  %1509 = vmatprep.subr.mxu0 0.0
  %1510 = vmatpush1.msra.mxu0 0.0
  %1511 = vmatprep.subr.mxu0 0.0
  %1512 = vmatpush1.msra.mxu0 0.0
  %1513 = vmatprep.subr.mxu0 0.0
  %1514 = vmatpush1.msra.mxu0 0.0
  %1515 = vmatprep.subr.mxu0 0.0
  %1516 = vmatpush1.msra.mxu0 0.0
  %1517 = vmatprep.subr.mxu0 0.0
  %1518 = vmatpush1.msra.mxu0 0.0
  %1519 = vmatprep.subr.mxu0 0.0
  %1520 = vmatpush1.msra.mxu0 0.0
  %1521 = vmatprep.subr.mxu0 0.0
  %1522 = vmatpush1.msra.mxu0 0.0
  %1523 = vmatprep.subr.mxu0 0.0
  %1524 = vmatpush1.msra.mxu0 0.0
  %1525 = vmatprep.subr.mxu0 0.0
  %1526 = vmatpush1.msra.mxu0 0.0
  %1527 = vmatprep.subr.mxu0 0.0
  %1528 = vmatpush1.msra.mxu0 %v208
  %1529 = vmatprep.subr.mxu0 0.0
  %1530 = vmatpush2.msra.mxu0 0.0
  %1531 = vmatprep.subr.mxu0 0.0
  %1532 = vmatpush2.msra.mxu0 0.0
  %1533 = vmatprep.subr.mxu0 0.0
  %1534 = vmatpush2.msra.mxu0 0.0
  %1535 = vmatprep.subr.mxu0 0.0
  %1536 = vmatpush2.msra.mxu0 0.0
  %1537 = vmatprep.subr.mxu0 0.0
  %1538 = vmatpush2.msra.mxu0 0.0
  %1539 = vmatprep.subr.mxu0 0.0
  %1540 = vmatpush2.msra.mxu0 0.0
  %1541 = vmatprep.subr.mxu0 0.0
  %1542 = vmatpush2.msra.mxu0 0.0
  %1543 = vmatprep.subr.mxu0 0.0
  %1544 = vmatpush2.msra.mxu0 0.0
  %1545 = vmatprep.subr.mxu0 0.0
  %1546 = vmatpush2.msra.mxu0 0.0
  %1547 = vmatprep.subr.mxu0 0.0
  %1548 = vmatpush2.msra.mxu0 0.0
  %1549 = vmatprep.subr.mxu0 0.0
  %1550 = vmatpush2.msra.mxu0 0.0
  %1551 = vmatprep.subr.mxu0 0.0
  %1552 = vmatpush2.msra.mxu0 0.0
  %1553 = vmatprep.subr.mxu0 0.0
  %1554 = vmatpush2.msra.mxu0 0.0
  %1555 = vmatprep.subr.mxu0 0.0
  %1556 = vmatpush2.msra.mxu0 0.0
  %1557 = vmatprep.subr.mxu0 0.0
  %1558 = vmatpush2.msra.mxu0 0.0
  %1559 = vmatprep.subr.mxu0 0.0
  %1560 = vmatpush2.msra.mxu0 0.0
  %1561 = vmatprep.mubr.f32.mxu0 0.0
  %1562 = vmatmul.mubr.f32.gmra.mxu0 %v1495
  %v1563 = vpop.f32.mrf.mxu0
  %v1564 = vadd.f32 0.0, %v1563
  %v1565 = vpop.f32.mrf.mxu0
  %1566 = vdwg.mxu0
  %v1568 = vsel %vm214, %v1326, 0
  %1570 = vmatprep.subr.mxu0 0.0
  %1571 = vmatpush1.msra.mxu0 0.0
  %1572 = vmatprep.subr.mxu0 0.0
  %1573 = vmatpush1.msra.mxu0 0.0
  %1574 = vmatprep.subr.mxu0 0.0
  %1575 = vmatpush1.msra.mxu0 0.0
  %1576 = vmatprep.subr.mxu0 0.0
  %1577 = vmatpush1.msra.mxu0 0.0
  %1578 = vmatprep.subr.mxu0 0.0
  %1579 = vmatpush1.msra.mxu0 0.0
  %1580 = vmatprep.subr.mxu0 0.0
  %1581 = vmatpush1.msra.mxu0 0.0
  %1582 = vmatprep.subr.mxu0 0.0
  %1583 = vmatpush1.msra.mxu0 0.0
  %1584 = vmatprep.subr.mxu0 0.0
  %1585 = vmatpush1.msra.mxu0 0.0
  %1586 = vmatprep.subr.mxu0 0.0
  %1587 = vmatpush1.msra.mxu0 0.0
  %1588 = vmatprep.subr.mxu0 0.0
  %1589 = vmatpush1.msra.mxu0 0.0
  %1590 = vmatprep.subr.mxu0 0.0
  %1591 = vmatpush1.msra.mxu0 0.0
  %1592 = vmatprep.subr.mxu0 0.0
  %1593 = vmatpush1.msra.mxu0 0.0
  %1594 = vmatprep.subr.mxu0 0.0
  %1595 = vmatpush1.msra.mxu0 0.0
  %1596 = vmatprep.subr.mxu0 0.0
  %1597 = vmatpush1.msra.mxu0 0.0
  %1598 = vmatprep.subr.mxu0 0.0
  %1599 = vmatpush1.msra.mxu0 0.0
  %1600 = vmatprep.subr.mxu0 0.0
  %1601 = vmatpush1.msra.mxu0 %v207
  %1602 = vmatprep.subr.mxu0 0.0
  %1603 = vmatpush2.msra.mxu0 0.0
  %1604 = vmatprep.subr.mxu0 0.0
  %1605 = vmatpush2.msra.mxu0 0.0
  %1606 = vmatprep.subr.mxu0 0.0
  %1607 = vmatpush2.msra.mxu0 0.0
  %1608 = vmatprep.subr.mxu0 0.0
  %1609 = vmatpush2.msra.mxu0 0.0
  %1610 = vmatprep.subr.mxu0 0.0
  %1611 = vmatpush2.msra.mxu0 0.0
  %1612 = vmatprep.subr.mxu0 0.0
  %1613 = vmatpush2.msra.mxu0 0.0
  %1614 = vmatprep.subr.mxu0 0.0
  %1615 = vmatpush2.msra.mxu0 0.0
  %1616 = vmatprep.subr.mxu0 0.0
  %1617 = vmatpush2.msra.mxu0 0.0
  %1618 = vmatprep.subr.mxu0 0.0
  %1619 = vmatpush2.msra.mxu0 0.0
  %1620 = vmatprep.subr.mxu0 0.0
  %1621 = vmatpush2.msra.mxu0 0.0
  %1622 = vmatprep.subr.mxu0 0.0
  %1623 = vmatpush2.msra.mxu0 0.0
  %1624 = vmatprep.subr.mxu0 0.0
  %1625 = vmatpush2.msra.mxu0 0.0
  %1626 = vmatprep.subr.mxu0 0.0
  %1627 = vmatpush2.msra.mxu0 0.0
  %1628 = vmatprep.subr.mxu0 0.0
  %1629 = vmatpush2.msra.mxu0 0.0
  %1630 = vmatprep.subr.mxu0 0.0
  %1631 = vmatpush2.msra.mxu0 0.0
  %1632 = vmatprep.subr.mxu0 0.0
  %1633 = vmatpush2.msra.mxu0 0.0
  %1634 = vmatprep.mubr.f32.mxu0 0.0
  %1635 = vmatmul.mubr.f32.gmra.mxu0 %v1568
  %v1636 = vpop.f32.mrf.mxu0
  %v1637 = vadd.f32 %v1564, %v1636
  %v1638 = vpop.f32.mrf.mxu0
  %1639 = vdwg.mxu0
  %1640 = vrot.lane.b32.xlu0 %v204, 112
  %v1641 = vpop.permute.xlu0 %1640
  %1642 = vrot.lane.b32.xlu0 %v204, 80
  %v1643 = vpop.permute.xlu0 %1642
  %v1644 = vsel %vm214, %v1641, 0
  %v1646 = vsel %vm214, %v1643, 0
  %1648 = vmatprep.subr.mxu0 0.0
  %1649 = vmatpush1.xpose.msra.mxu0 0.0
  %1650 = vmatprep.subr.mxu0 0.0
  %1651 = vmatpush1.xpose.msra.mxu0 0.0
  %1652 = vmatprep.subr.mxu0 0.0
  %1653 = vmatpush1.xpose.msra.mxu0 0.0
  %1654 = vmatprep.subr.mxu0 0.0
  %1655 = vmatpush1.xpose.msra.mxu0 0.0
  %1656 = vmatprep.subr.mxu0 0.0
  %1657 = vmatpush1.xpose.msra.mxu0 0.0
  %1658 = vmatprep.subr.mxu0 0.0
  %1659 = vmatpush1.xpose.msra.mxu0 0.0
  %1660 = vmatprep.subr.mxu0 0.0
  %1661 = vmatpush1.xpose.msra.mxu0 0.0
  %1662 = vmatprep.subr.mxu0 0.0
  %1663 = vmatpush1.xpose.msra.mxu0 0.0
  %1664 = vmatprep.subr.mxu0 0.0
  %1665 = vmatpush1.xpose.msra.mxu0 0.0
  %1666 = vmatprep.subr.mxu0 0.0
  %1667 = vmatpush1.xpose.msra.mxu0 0.0
  %1668 = vmatprep.subr.mxu0 0.0
  %1669 = vmatpush1.xpose.msra.mxu0 0.0
  %1670 = vmatprep.subr.mxu0 0.0
  %1671 = vmatpush1.xpose.msra.mxu0 0.0
  %1672 = vmatprep.subr.mxu0 0.0
  %1673 = vmatpush1.xpose.msra.mxu0 0.0
  %1674 = vmatprep.subr.mxu0 0.0
  %1675 = vmatpush1.xpose.msra.mxu0 0.0
  %1676 = vmatprep.subr.mxu0 0.0
  %1677 = vmatpush1.xpose.msra.mxu0 0.0
  %1678 = vmatprep.subr.mxu0 0.0
  %1679 = vmatpush1.xpose.msra.mxu0 %v1646
  %1680 = vmatprep.subr.mxu0 0.0
  %1681 = vmatpush2.xpose.msra.mxu0 0.0
  %1682 = vmatprep.subr.mxu0 0.0
  %1683 = vmatpush2.xpose.msra.mxu0 0.0
  %1684 = vmatprep.subr.mxu0 0.0
  %1685 = vmatpush2.xpose.msra.mxu0 0.0
  %1686 = vmatprep.subr.mxu0 0.0
  %1687 = vmatpush2.xpose.msra.mxu0 0.0
  %1688 = vmatprep.subr.mxu0 0.0
  %1689 = vmatpush2.xpose.msra.mxu0 0.0
  %1690 = vmatprep.subr.mxu0 0.0
  %1691 = vmatpush2.xpose.msra.mxu0 0.0
  %1692 = vmatprep.subr.mxu0 0.0
  %1693 = vmatpush2.xpose.msra.mxu0 0.0
  %1694 = vmatprep.subr.mxu0 0.0
  %1695 = vmatpush2.xpose.msra.mxu0 0.0
  %1696 = vmatprep.subr.mxu0 0.0
  %1697 = vmatpush2.xpose.msra.mxu0 0.0
  %1698 = vmatprep.subr.mxu0 0.0
  %1699 = vmatpush2.xpose.msra.mxu0 0.0
  %1700 = vmatprep.subr.mxu0 0.0
  %1701 = vmatpush2.xpose.msra.mxu0 0.0
  %1702 = vmatprep.subr.mxu0 0.0
  %1703 = vmatpush2.xpose.msra.mxu0 0.0
  %1704 = vmatprep.subr.mxu0 0.0
  %1705 = vmatpush2.xpose.msra.mxu0 0.0
  %1706 = vmatprep.subr.mxu0 0.0
  %1707 = vmatpush2.xpose.msra.mxu0 0.0
  %1708 = vmatprep.subr.mxu0 0.0
  %1709 = vmatpush2.xpose.msra.mxu0 0.0
  %1710 = vmatprep.subr.mxu0 0.0
  %1711 = vmatpush2.xpose.msra.mxu0 0.0
  %1712 = vmatprep.mubr.f32.mxu0 0.0
  %1713 = vmatmul.mubr.f32.gmra.mxu0 %v1644
  %v1714 = vpop.f32.mrf.mxu0
  %v1715 = vadd.f32 %v114, %v1714
  %v1716 = vpop.f32.mrf.mxu0
  %1717 = vdwg.mxu0
  %v1718 = vsel %vm214, %v1715, -inf
  %1719 = vmax.xlane.f32.xlu0 %v1718
  %v1720 = vpop.xlane.xlu0 %1719
  %v1721 = vsub.f32 %v1715, %v1720
  %v1722 = vmul.f32 %v1721, 1.442695
  %v1723 = vpow.pop %v1722
  %v1724 = vsel %vm214, %v1723, 0.0
  %1725 = vadd.xlane.f32.xlu0 %v1724
  %v1726 = vpop.xlane.xlu0 %1725
  %v1727 = vrcp.pop %v1726
  %v1728 = vmul.f32 %v1723, %v1727
  %1729 = vrot.lane.b32.xlu0 %v204, 48
  %v1730 = vpop.permute.xlu0 %1729
  %v1733 = vsel %vm214, %v1728, 0
  %1735 = vmatprep.subr.mxu0 0.0
  %1736 = vmatpush1.msra.mxu0 0.0
  %1737 = vmatprep.subr.mxu0 0.0
  %1738 = vmatpush1.msra.mxu0 0.0
  %1739 = vmatprep.subr.mxu0 0.0
  %1740 = vmatpush1.msra.mxu0 0.0
  %1741 = vmatprep.subr.mxu0 0.0
  %1742 = vmatpush1.msra.mxu0 0.0
  %1743 = vmatprep.subr.mxu0 0.0
  %1744 = vmatpush1.msra.mxu0 0.0
  %1745 = vmatprep.subr.mxu0 0.0
  %1746 = vmatpush1.msra.mxu0 0.0
  %1747 = vmatprep.subr.mxu0 0.0
  %1748 = vmatpush1.msra.mxu0 0.0
  %1749 = vmatprep.subr.mxu0 0.0
  %1750 = vmatpush1.msra.mxu0 0.0
  %1751 = vmatprep.subr.mxu0 0.0
  %1752 = vmatpush1.msra.mxu0 0.0
  %1753 = vmatprep.subr.mxu0 0.0
  %1754 = vmatpush1.msra.mxu0 0.0
  %1755 = vmatprep.subr.mxu0 0.0
  %1756 = vmatpush1.msra.mxu0 0.0
  %1757 = vmatprep.subr.mxu0 0.0
  %1758 = vmatpush1.msra.mxu0 0.0
  %1759 = vmatprep.subr.mxu0 0.0
  %1760 = vmatpush1.msra.mxu0 0.0
  %1761 = vmatprep.subr.mxu0 0.0
  %1762 = vmatpush1.msra.mxu0 0.0
  %1763 = vmatprep.subr.mxu0 0.0
  %1764 = vmatpush1.msra.mxu0 0.0
  %1765 = vmatprep.subr.mxu0 0.0
  %1766 = vmatpush1.msra.mxu0 %v1730
  %1767 = vmatprep.subr.mxu0 0.0
  %1768 = vmatpush2.msra.mxu0 0.0
  %1769 = vmatprep.subr.mxu0 0.0
  %1770 = vmatpush2.msra.mxu0 0.0
  %1771 = vmatprep.subr.mxu0 0.0
  %1772 = vmatpush2.msra.mxu0 0.0
  %1773 = vmatprep.subr.mxu0 0.0
  %1774 = vmatpush2.msra.mxu0 0.0
  %1775 = vmatprep.subr.mxu0 0.0
  %1776 = vmatpush2.msra.mxu0 0.0
  %1777 = vmatprep.subr.mxu0 0.0
  %1778 = vmatpush2.msra.mxu0 0.0
  %1779 = vmatprep.subr.mxu0 0.0
  %1780 = vmatpush2.msra.mxu0 0.0
  %1781 = vmatprep.subr.mxu0 0.0
  %1782 = vmatpush2.msra.mxu0 0.0
  %1783 = vmatprep.subr.mxu0 0.0
  %1784 = vmatpush2.msra.mxu0 0.0
  %1785 = vmatprep.subr.mxu0 0.0
  %1786 = vmatpush2.msra.mxu0 0.0
  %1787 = vmatprep.subr.mxu0 0.0
  %1788 = vmatpush2.msra.mxu0 0.0
  %1789 = vmatprep.subr.mxu0 0.0
  %1790 = vmatpush2.msra.mxu0 0.0
  %1791 = vmatprep.subr.mxu0 0.0
  %1792 = vmatpush2.msra.mxu0 0.0
  %1793 = vmatprep.subr.mxu0 0.0
  %1794 = vmatpush2.msra.mxu0 0.0
  %1795 = vmatprep.subr.mxu0 0.0
  %1796 = vmatpush2.msra.mxu0 0.0
  %1797 = vmatprep.subr.mxu0 0.0
  %1798 = vmatpush2.msra.mxu0 0.0
  %1799 = vmatprep.mubr.f32.mxu0 0.0
  %1800 = vmatmul.mubr.f32.gmra.mxu0 %v1733
  %v1801 = vpop.f32.mrf.mxu0
  %v1802 = vadd.f32 0.0, %v1801
  %v1803 = vpop.f32.mrf.mxu0
  %1804 = vdwg.mxu0
  %v1806 = vsel %vm214, %v1802, 0
  %1808 = vmatprep.subr.mxu0 0.0
  %1809 = vmatpush1.msra.mxu0 0.0
  %1810 = vmatprep.subr.mxu0 0.0
  %1811 = vmatpush1.msra.mxu0 0.0
  %1812 = vmatprep.subr.mxu0 0.0
  %1813 = vmatpush1.msra.mxu0 0.0
  %1814 = vmatprep.subr.mxu0 0.0
  %1815 = vmatpush1.msra.mxu0 0.0
  %1816 = vmatprep.subr.mxu0 0.0
  %1817 = vmatpush1.msra.mxu0 0.0
  %1818 = vmatprep.subr.mxu0 0.0
  %1819 = vmatpush1.msra.mxu0 0.0
  %1820 = vmatprep.subr.mxu0 0.0
  %1821 = vmatpush1.msra.mxu0 0.0
  %1822 = vmatprep.subr.mxu0 0.0
  %1823 = vmatpush1.msra.mxu0 0.0
  %1824 = vmatprep.subr.mxu0 0.0
  %1825 = vmatpush1.msra.mxu0 0.0
  %1826 = vmatprep.subr.mxu0 0.0
  %1827 = vmatpush1.msra.mxu0 0.0
  %1828 = vmatprep.subr.mxu0 0.0
  %1829 = vmatpush1.msra.mxu0 0.0
  %1830 = vmatprep.subr.mxu0 0.0
  %1831 = vmatpush1.msra.mxu0 0.0
  %1832 = vmatprep.subr.mxu0 0.0
  %1833 = vmatpush1.msra.mxu0 0.0
  %1834 = vmatprep.subr.mxu0 0.0
  %1835 = vmatpush1.msra.mxu0 0.0
  %1836 = vmatprep.subr.mxu0 0.0
  %1837 = vmatpush1.msra.mxu0 0.0
  %1838 = vmatprep.subr.mxu0 0.0
  %1839 = vmatpush1.msra.mxu0 %v209
  %1840 = vmatprep.subr.mxu0 0.0
  %1841 = vmatpush2.msra.mxu0 0.0
  %1842 = vmatprep.subr.mxu0 0.0
  %1843 = vmatpush2.msra.mxu0 0.0
  %1844 = vmatprep.subr.mxu0 0.0
  %1845 = vmatpush2.msra.mxu0 0.0
  %1846 = vmatprep.subr.mxu0 0.0
  %1847 = vmatpush2.msra.mxu0 0.0
  %1848 = vmatprep.subr.mxu0 0.0
  %1849 = vmatpush2.msra.mxu0 0.0
  %1850 = vmatprep.subr.mxu0 0.0
  %1851 = vmatpush2.msra.mxu0 0.0
  %1852 = vmatprep.subr.mxu0 0.0
  %1853 = vmatpush2.msra.mxu0 0.0
  %1854 = vmatprep.subr.mxu0 0.0
  %1855 = vmatpush2.msra.mxu0 0.0
  %1856 = vmatprep.subr.mxu0 0.0
  %1857 = vmatpush2.msra.mxu0 0.0
  %1858 = vmatprep.subr.mxu0 0.0
  %1859 = vmatpush2.msra.mxu0 0.0
  %1860 = vmatprep.subr.mxu0 0.0
  %1861 = vmatpush2.msra.mxu0 0.0
  %1862 = vmatprep.subr.mxu0 0.0
  %1863 = vmatpush2.msra.mxu0 0.0
  %1864 = vmatprep.subr.mxu0 0.0
  %1865 = vmatpush2.msra.mxu0 0.0
  %1866 = vmatprep.subr.mxu0 0.0
  %1867 = vmatpush2.msra.mxu0 0.0
  %1868 = vmatprep.subr.mxu0 0.0
  %1869 = vmatpush2.msra.mxu0 0.0
  %1870 = vmatprep.subr.mxu0 0.0
  %1871 = vmatpush2.msra.mxu0 0.0
  %1872 = vmatprep.mubr.f32.mxu0 0.0
  %1873 = vmatmul.mubr.f32.gmra.mxu0 %v1806
  %v1874 = vpop.f32.mrf.mxu0
  %v1875 = vadd.f32 0.0, %v1874
  %v1876 = vpop.f32.mrf.mxu0
  %1877 = vdwg.mxu0
  %v1878 = vadd.f32 %v1637, %v1875
  %1879 = vrot.lane.b32.xlu0 %v204, 104
  %v1880 = vpop.permute.xlu0 %1879
  %1881 = vrot.lane.b32.xlu0 %v204, 72
  %v1882 = vpop.permute.xlu0 %1881
  %v1883 = vsel %vm214, %v1880, 0
  %v1885 = vsel %vm214, %v1882, 0
  %1887 = vmatprep.subr.mxu0 0.0
  %1888 = vmatpush1.xpose.msra.mxu0 0.0
  %1889 = vmatprep.subr.mxu0 0.0
  %1890 = vmatpush1.xpose.msra.mxu0 0.0
  %1891 = vmatprep.subr.mxu0 0.0
  %1892 = vmatpush1.xpose.msra.mxu0 0.0
  %1893 = vmatprep.subr.mxu0 0.0
  %1894 = vmatpush1.xpose.msra.mxu0 0.0
  %1895 = vmatprep.subr.mxu0 0.0
  %1896 = vmatpush1.xpose.msra.mxu0 0.0
  %1897 = vmatprep.subr.mxu0 0.0
  %1898 = vmatpush1.xpose.msra.mxu0 0.0
  %1899 = vmatprep.subr.mxu0 0.0
  %1900 = vmatpush1.xpose.msra.mxu0 0.0
  %1901 = vmatprep.subr.mxu0 0.0
  %1902 = vmatpush1.xpose.msra.mxu0 0.0
  %1903 = vmatprep.subr.mxu0 0.0
  %1904 = vmatpush1.xpose.msra.mxu0 0.0
  %1905 = vmatprep.subr.mxu0 0.0
  %1906 = vmatpush1.xpose.msra.mxu0 0.0
  %1907 = vmatprep.subr.mxu0 0.0
  %1908 = vmatpush1.xpose.msra.mxu0 0.0
  %1909 = vmatprep.subr.mxu0 0.0
  %1910 = vmatpush1.xpose.msra.mxu0 0.0
  %1911 = vmatprep.subr.mxu0 0.0
  %1912 = vmatpush1.xpose.msra.mxu0 0.0
  %1913 = vmatprep.subr.mxu0 0.0
  %1914 = vmatpush1.xpose.msra.mxu0 0.0
  %1915 = vmatprep.subr.mxu0 0.0
  %1916 = vmatpush1.xpose.msra.mxu0 0.0
  %1917 = vmatprep.subr.mxu0 0.0
  %1918 = vmatpush1.xpose.msra.mxu0 %v1885
  %1919 = vmatprep.subr.mxu0 0.0
  %1920 = vmatpush2.xpose.msra.mxu0 0.0
  %1921 = vmatprep.subr.mxu0 0.0
  %1922 = vmatpush2.xpose.msra.mxu0 0.0
  %1923 = vmatprep.subr.mxu0 0.0
  %1924 = vmatpush2.xpose.msra.mxu0 0.0
  %1925 = vmatprep.subr.mxu0 0.0
  %1926 = vmatpush2.xpose.msra.mxu0 0.0
  %1927 = vmatprep.subr.mxu0 0.0
  %1928 = vmatpush2.xpose.msra.mxu0 0.0
  %1929 = vmatprep.subr.mxu0 0.0
  %1930 = vmatpush2.xpose.msra.mxu0 0.0
  %1931 = vmatprep.subr.mxu0 0.0
  %1932 = vmatpush2.xpose.msra.mxu0 0.0
  %1933 = vmatprep.subr.mxu0 0.0
  %1934 = vmatpush2.xpose.msra.mxu0 0.0
  %1935 = vmatprep.subr.mxu0 0.0
  %1936 = vmatpush2.xpose.msra.mxu0 0.0
  %1937 = vmatprep.subr.mxu0 0.0
  %1938 = vmatpush2.xpose.msra.mxu0 0.0
  %1939 = vmatprep.subr.mxu0 0.0
  %1940 = vmatpush2.xpose.msra.mxu0 0.0
  %1941 = vmatprep.subr.mxu0 0.0
  %1942 = vmatpush2.xpose.msra.mxu0 0.0
  %1943 = vmatprep.subr.mxu0 0.0
  %1944 = vmatpush2.xpose.msra.mxu0 0.0
  %1945 = vmatprep.subr.mxu0 0.0
  %1946 = vmatpush2.xpose.msra.mxu0 0.0
  %1947 = vmatprep.subr.mxu0 0.0
  %1948 = vmatpush2.xpose.msra.mxu0 0.0
  %1949 = vmatprep.subr.mxu0 0.0
  %1950 = vmatpush2.xpose.msra.mxu0 0.0
  %1951 = vmatprep.mubr.f32.mxu0 0.0
  %1952 = vmatmul.mubr.f32.gmra.mxu0 %v1883
  %v1953 = vpop.f32.mrf.mxu0
  %v1954 = vadd.f32 %v114, %v1953
  %v1955 = vpop.f32.mrf.mxu0
  %1956 = vdwg.mxu0
  %v1957 = vsel %vm214, %v1954, -inf
  %1958 = vmax.xlane.f32.xlu0 %v1957
  %v1959 = vpop.xlane.xlu0 %1958
  %v1960 = vsub.f32 %v1954, %v1959
  %v1961 = vmul.f32 %v1960, 1.442695
  %v1962 = vpow.pop %v1961
  %v1963 = vsel %vm214, %v1962, 0.0
  %1964 = vadd.xlane.f32.xlu0 %v1963
  %v1965 = vpop.xlane.xlu0 %1964
  %v1966 = vrcp.pop %v1965
  %v1967 = vmul.f32 %v1962, %v1966
  %1968 = vrot.lane.b32.xlu0 %v204, 40
  %v1969 = vpop.permute.xlu0 %1968
  %v1972 = vsel %vm214, %v1967, 0
  %1974 = vmatprep.subr.mxu0 0.0
  %1975 = vmatpush1.msra.mxu0 0.0
  %1976 = vmatprep.subr.mxu0 0.0
  %1977 = vmatpush1.msra.mxu0 0.0
  %1978 = vmatprep.subr.mxu0 0.0
  %1979 = vmatpush1.msra.mxu0 0.0
  %1980 = vmatprep.subr.mxu0 0.0
  %1981 = vmatpush1.msra.mxu0 0.0
  %1982 = vmatprep.subr.mxu0 0.0
  %1983 = vmatpush1.msra.mxu0 0.0
  %1984 = vmatprep.subr.mxu0 0.0
  %1985 = vmatpush1.msra.mxu0 0.0
  %1986 = vmatprep.subr.mxu0 0.0
  %1987 = vmatpush1.msra.mxu0 0.0
  %1988 = vmatprep.subr.mxu0 0.0
  %1989 = vmatpush1.msra.mxu0 0.0
  %1990 = vmatprep.subr.mxu0 0.0
  %1991 = vmatpush1.msra.mxu0 0.0
  %1992 = vmatprep.subr.mxu0 0.0
  %1993 = vmatpush1.msra.mxu0 0.0
  %1994 = vmatprep.subr.mxu0 0.0
  %1995 = vmatpush1.msra.mxu0 0.0
  %1996 = vmatprep.subr.mxu0 0.0
  %1997 = vmatpush1.msra.mxu0 0.0
  %1998 = vmatprep.subr.mxu0 0.0
  %1999 = vmatpush1.msra.mxu0 0.0
  %2000 = vmatprep.subr.mxu0 0.0
  %2001 = vmatpush1.msra.mxu0 0.0
  %2002 = vmatprep.subr.mxu0 0.0
  %2003 = vmatpush1.msra.mxu0 0.0
  %2004 = vmatprep.subr.mxu0 0.0
  %2005 = vmatpush1.msra.mxu0 %v1969
  %2006 = vmatprep.subr.mxu0 0.0
  %2007 = vmatpush2.msra.mxu0 0.0
  %2008 = vmatprep.subr.mxu0 0.0
  %2009 = vmatpush2.msra.mxu0 0.0
  %2010 = vmatprep.subr.mxu0 0.0
  %2011 = vmatpush2.msra.mxu0 0.0
  %2012 = vmatprep.subr.mxu0 0.0
  %2013 = vmatpush2.msra.mxu0 0.0
  %2014 = vmatprep.subr.mxu0 0.0
  %2015 = vmatpush2.msra.mxu0 0.0
  %2016 = vmatprep.subr.mxu0 0.0
  %2017 = vmatpush2.msra.mxu0 0.0
  %2018 = vmatprep.subr.mxu0 0.0
  %2019 = vmatpush2.msra.mxu0 0.0
  %2020 = vmatprep.subr.mxu0 0.0
  %2021 = vmatpush2.msra.mxu0 0.0
  %2022 = vmatprep.subr.mxu0 0.0
  %2023 = vmatpush2.msra.mxu0 0.0
  %2024 = vmatprep.subr.mxu0 0.0
  %2025 = vmatpush2.msra.mxu0 0.0
  %2026 = vmatprep.subr.mxu0 0.0
  %2027 = vmatpush2.msra.mxu0 0.0
  %2028 = vmatprep.subr.mxu0 0.0
  %2029 = vmatpush2.msra.mxu0 0.0
  %2030 = vmatprep.subr.mxu0 0.0
  %2031 = vmatpush2.msra.mxu0 0.0
  %2032 = vmatprep.subr.mxu0 0.0
  %2033 = vmatpush2.msra.mxu0 0.0
  %2034 = vmatprep.subr.mxu0 0.0
  %2035 = vmatpush2.msra.mxu0 0.0
  %2036 = vmatprep.subr.mxu0 0.0
  %2037 = vmatpush2.msra.mxu0 0.0
  %2038 = vmatprep.mubr.f32.mxu0 0.0
  %2039 = vmatmul.mubr.f32.gmra.mxu0 %v1972
  %v2040 = vpop.f32.mrf.mxu0
  %v2041 = vadd.f32 0.0, %v2040
  %v2042 = vpop.f32.mrf.mxu0
  %2043 = vdwg.mxu0
  %v2045 = vsel %vm214, %v2041, 0
  %2047 = vmatprep.subr.mxu0 0.0
  %2048 = vmatpush1.msra.mxu0 0.0
  %2049 = vmatprep.subr.mxu0 0.0
  %2050 = vmatpush1.msra.mxu0 0.0
  %2051 = vmatprep.subr.mxu0 0.0
  %2052 = vmatpush1.msra.mxu0 0.0
  %2053 = vmatprep.subr.mxu0 0.0
  %2054 = vmatpush1.msra.mxu0 0.0
  %2055 = vmatprep.subr.mxu0 0.0
  %2056 = vmatpush1.msra.mxu0 0.0
  %2057 = vmatprep.subr.mxu0 0.0
  %2058 = vmatpush1.msra.mxu0 0.0
  %2059 = vmatprep.subr.mxu0 0.0
  %2060 = vmatpush1.msra.mxu0 0.0
  %2061 = vmatprep.subr.mxu0 0.0
  %2062 = vmatpush1.msra.mxu0 0.0
  %2063 = vmatprep.subr.mxu0 0.0
  %2064 = vmatpush1.msra.mxu0 0.0
  %2065 = vmatprep.subr.mxu0 0.0
  %2066 = vmatpush1.msra.mxu0 0.0
  %2067 = vmatprep.subr.mxu0 0.0
  %2068 = vmatpush1.msra.mxu0 0.0
  %2069 = vmatprep.subr.mxu0 0.0
  %2070 = vmatpush1.msra.mxu0 0.0
  %2071 = vmatprep.subr.mxu0 0.0
  %2072 = vmatpush1.msra.mxu0 0.0
  %2073 = vmatprep.subr.mxu0 0.0
  %2074 = vmatpush1.msra.mxu0 0.0
  %2075 = vmatprep.subr.mxu0 0.0
  %2076 = vmatpush1.msra.mxu0 0.0
  %2077 = vmatprep.subr.mxu0 0.0
  %2078 = vmatpush1.msra.mxu0 %v210
  %2079 = vmatprep.subr.mxu0 0.0
  %2080 = vmatpush2.msra.mxu0 0.0
  %2081 = vmatprep.subr.mxu0 0.0
  %2082 = vmatpush2.msra.mxu0 0.0
  %2083 = vmatprep.subr.mxu0 0.0
  %2084 = vmatpush2.msra.mxu0 0.0
  %2085 = vmatprep.subr.mxu0 0.0
  %2086 = vmatpush2.msra.mxu0 0.0
  %2087 = vmatprep.subr.mxu0 0.0
  %2088 = vmatpush2.msra.mxu0 0.0
  %2089 = vmatprep.subr.mxu0 0.0
  %2090 = vmatpush2.msra.mxu0 0.0
  %2091 = vmatprep.subr.mxu0 0.0
  %2092 = vmatpush2.msra.mxu0 0.0
  %2093 = vmatprep.subr.mxu0 0.0
  %2094 = vmatpush2.msra.mxu0 0.0
  %2095 = vmatprep.subr.mxu0 0.0
  %2096 = vmatpush2.msra.mxu0 0.0
  %2097 = vmatprep.subr.mxu0 0.0
  %2098 = vmatpush2.msra.mxu0 0.0
  %2099 = vmatprep.subr.mxu0 0.0
  %2100 = vmatpush2.msra.mxu0 0.0
  %2101 = vmatprep.subr.mxu0 0.0
  %2102 = vmatpush2.msra.mxu0 0.0
  %2103 = vmatprep.subr.mxu0 0.0
  %2104 = vmatpush2.msra.mxu0 0.0
  %2105 = vmatprep.subr.mxu0 0.0
  %2106 = vmatpush2.msra.mxu0 0.0
  %2107 = vmatprep.subr.mxu0 0.0
  %2108 = vmatpush2.msra.mxu0 0.0
  %2109 = vmatprep.subr.mxu0 0.0
  %2110 = vmatpush2.msra.mxu0 0.0
  %2111 = vmatprep.mubr.f32.mxu0 0.0
  %2112 = vmatmul.mubr.f32.gmra.mxu0 %v2045
  %v2113 = vpop.f32.mrf.mxu0
  %v2114 = vadd.f32 0.0, %v2113
  %v2115 = vpop.f32.mrf.mxu0
  %2116 = vdwg.mxu0
  %v2117 = vadd.f32 %v1878, %v2114
  %v2118 = vld [vmem:[%s7] sm:$0x1]
  %v2120 = vlaneseq
  %v2121 = vshrl.u32 %v2120, 7
  %v2122 = vsub.s32 0, %v2121
  %v2123 = vrot.slane %v2118, %v2122
  %v2125 = vadd.f32 %v1164, %v2123
  %v2126 = vadd.f32 %v2117, %v2123
  %v2127 = vadd.f32 %v2125, %v111
  %v2128 = vadd.f32 %v2126, %v112
  %v2129 = vld [vmem:[%s8] sm:$0x1]
  %v2130 = vld [vmem:[%s9] sm:$0x1]
  %v2131 = vsel %vm69, %v2127, 0.0
  %2132 = vadd.xlane.f32.xlu0 %v2131
  %v2133 = vpop.xlane.xlu0 %2132
  %v2134 = vsel %vm69, %v2128, 0.0
  %2135 = vadd.xlane.f32.xlu0 %v2134
  %v2136 = vpop.xlane.xlu0 %2135
  %v2137 = vmul.f32 %v2133, %v76
  %v2138 = vmul.f32 %v2136, %v76
  %v2139 = vsub.f32 %v2127, %v2137
  %v2140 = vsub.f32 %v2128, %v2138
  %v2141 = vmul.f32 %v2139, %v2139
  %v2142 = vmul.f32 %v2140, %v2140
  %v2143 = vsel %vm69, %v2141, 0.0
  %2144 = vadd.xlane.f32.xlu0 %v2143
  %v2145 = vpop.xlane.xlu0 %2144
  %v2146 = vsel %vm69, %v2142, 0.0
  %2147 = vadd.xlane.f32.xlu0 %v2146
  %v2148 = vpop.xlane.xlu0 %2147
  %v2149 = vmul.f32 %v2145, %v76
  %v2150 = vmul.f32 %v2148, %v76
  %v2151 = vadd.f32 %v2149, 1e-12
  %v2152 = vadd.f32 %v2150, 1e-12
  %v2153 = vrsqrt.pop %v2151
  %v2154 = vrsqrt.pop %v2152
  %v2155 = vmul.f32 %v2139, %v2153
  %v2156 = vmul.f32 %v2140, %v2154
  %v2158 = vlaneseq
  %v2159 = vshrl.u32 %v2158, 7
  %v2160 = vsub.s32 0, %v2159
  %v2161 = vrot.slane %v2129, %v2160
  %v2163 = vmul.f32 %v2155, %v2161
  %v2164 = vmul.f32 %v2156, %v2161
  %v2166 = vlaneseq
  %v2167 = vshrl.u32 %v2166, 7
  %v2168 = vsub.s32 0, %v2167
  %v2169 = vrot.slane %v2130, %v2168
  %v2171 = vadd.f32 %v2163, %v2169
  %v2172 = vadd.f32 %v2164, %v2169
  %v2173 = vld [vmem:[%s10] sm:$0xff]
  %v2174 = vld [vmem:[%s10 + $0x8] sm:$0xff]
  %v2175 = vld [vmem:[%s10 + $0x10] sm:$0xff]
  %v2176 = vld [vmem:[%s10 + $0x18] sm:$0xff]
  %v2177 = vld [vmem:[%s11] sm:$0x1]
  %v2179 = vlaneseq
  %v2180 = vshrl.u32 %v2179, 7
  %v2181 = vsub.s32 0, %v2180
  %v2182 = vrot.slane %v2177, %v2181
  %v2185 = vsel %vm69, %v2171, 0
  %v2188 = vsel %vm69, %v2172, 0
  %2190 = vmatprep.subr.mxu0 0.0
  %2191 = vmatpush1.msra.mxu0 0.0
  %2192 = vmatprep.subr.mxu0 0.0
  %2193 = vmatpush1.msra.mxu0 0.0
  %2194 = vmatprep.subr.mxu0 0.0
  %2195 = vmatpush1.msra.mxu0 0.0
  %2196 = vmatprep.subr.mxu0 0.0
  %2197 = vmatpush1.msra.mxu0 0.0
  %2198 = vmatprep.subr.mxu0 0.0
  %2199 = vmatpush1.msra.mxu0 0.0
  %2200 = vmatprep.subr.mxu0 0.0
  %2201 = vmatpush1.msra.mxu0 0.0
  %2202 = vmatprep.subr.mxu0 0.0
  %2203 = vmatpush1.msra.mxu0 0.0
  %2204 = vmatprep.subr.mxu0 0.0
  %2205 = vmatpush1.msra.mxu0 0.0
  %2206 = vmatprep.subr.mxu0 0.0
  %2207 = vmatpush1.msra.mxu0 0.0
  %2208 = vmatprep.subr.mxu0 0.0
  %2209 = vmatpush1.msra.mxu0 0.0
  %2210 = vmatprep.subr.mxu0 0.0
  %2211 = vmatpush1.msra.mxu0 0.0
  %2212 = vmatprep.subr.mxu0 0.0
  %2213 = vmatpush1.msra.mxu0 0.0
  %2214 = vmatprep.subr.mxu0 0.0
  %2215 = vmatpush1.msra.mxu0 %v2176
  %2216 = vmatprep.subr.mxu0 0.0
  %2217 = vmatpush1.msra.mxu0 %v2175
  %2218 = vmatprep.subr.mxu0 0.0
  %2219 = vmatpush1.msra.mxu0 %v2174
  %2220 = vmatprep.subr.mxu0 0.0
  %2221 = vmatpush1.msra.mxu0 %v2173
  %2222 = vmatprep.subr.mxu0 0.0
  %2223 = vmatpush2.msra.mxu0 0.0
  %2224 = vmatprep.subr.mxu0 0.0
  %2225 = vmatpush2.msra.mxu0 0.0
  %2226 = vmatprep.subr.mxu0 0.0
  %2227 = vmatpush2.msra.mxu0 0.0
  %2228 = vmatprep.subr.mxu0 0.0
  %2229 = vmatpush2.msra.mxu0 0.0
  %2230 = vmatprep.subr.mxu0 0.0
  %2231 = vmatpush2.msra.mxu0 0.0
  %2232 = vmatprep.subr.mxu0 0.0
  %2233 = vmatpush2.msra.mxu0 0.0
  %2234 = vmatprep.subr.mxu0 0.0
  %2235 = vmatpush2.msra.mxu0 0.0
  %2236 = vmatprep.subr.mxu0 0.0
  %2237 = vmatpush2.msra.mxu0 0.0
  %2238 = vmatprep.subr.mxu0 0.0
  %2239 = vmatpush2.msra.mxu0 0.0
  %2240 = vmatprep.subr.mxu0 0.0
  %2241 = vmatpush2.msra.mxu0 0.0
  %2242 = vmatprep.subr.mxu0 0.0
  %2243 = vmatpush2.msra.mxu0 0.0
  %2244 = vmatprep.subr.mxu0 0.0
  %2245 = vmatpush2.msra.mxu0 0.0
  %2246 = vmatprep.subr.mxu0 0.0
  %2247 = vmatpush2.msra.mxu0 0.0
  %2248 = vmatprep.subr.mxu0 0.0
  %2249 = vmatpush2.msra.mxu0 0.0
  %2250 = vmatprep.subr.mxu0 0.0
  %2251 = vmatpush2.msra.mxu0 0.0
  %2252 = vmatprep.subr.mxu0 0.0
  %2253 = vmatpush2.msra.mxu0 0.0
  %2254 = vmatprep.mubr.f32.mxu0 0.0
  %2255 = vmatmul.mubr.f32.gmra.mxu0 %v2185
  %v2256 = vpop.f32.mrf.mxu0
  %v2257 = vadd.f32 %v2182, %v2256
  %v2258 = vpop.f32.mrf.mxu0
  %2259 = vmatprep.mubr.f32.mxu0 0.0
  %2260 = vmatmul.mubr.f32.gmra.mxu0 %v2188
  %v2261 = vpop.f32.mrf.mxu0
  %v2262 = vadd.f32 %v2182, %v2261
  %v2263 = vpop.f32.mrf.mxu0
  %2264 = vdwg.mxu0
  %v2265 = vmul.f32 %v2257, 0.5
  %v2266 = vmul.f32 %v2262, 0.5
  %v2267 = vmul.f32 %v2257, 0.044715
  %v2268 = vmul.f32 %v2262, 0.044715
  %v2269 = vmul.f32 %v2267, %v2257
  %v2270 = vmul.f32 %v2268, %v2262
  %v2271 = vmul.f32 %v2269, %v2257
  %v2272 = vmul.f32 %v2270, %v2262
  %v2273 = vadd.f32 %v2257, %v2271
  %v2274 = vadd.f32 %v2262, %v2272
  %v2275 = vmul.f32 %v2273, 0.7978846
  %v2276 = vmul.f32 %v2274, 0.7978846
  %v2277 = vtanh.pop %v2275
  %v2278 = vtanh.pop %v2276
  %v2279 = vadd.f32 %v2277, 1.0
  %v2280 = vadd.f32 %v2278, 1.0
  %v2281 = vmul.f32 %v2265, %v2279
  %v2282 = vmul.f32 %v2266, %v2280
  %v2283 = vld [vmem:[%s12] sm:$0xff]
  %v2284 = vld [vmem:[%s12 + $0x8] sm:$0xff]
  %v2285 = vld [vmem:[%s12 + $0x10] sm:$0xff]
  %v2286 = vld [vmem:[%s12 + $0x18] sm:$0xff]
  %v2287 = vld [vmem:[%s12 + $0x20] sm:$0xff]
  %v2288 = vld [vmem:[%s12 + $0x28] sm:$0xff]
  %v2289 = vld [vmem:[%s12 + $0x30] sm:$0xff]
  %v2290 = vld [vmem:[%s12 + $0x38] sm:$0xff]
  %v2291 = vld [vmem:[%s13] sm:$0x1]
  %v2293 = vlaneseq
  %v2294 = vshrl.u32 %v2293, 7
  %v2295 = vsub.s32 0, %v2294
  %v2296 = vrot.slane %v2291, %v2295
  %vm2298 = vcmask 523264
  %v2300 = vsel %vm2298, %v2281, 0
  %v2303 = vsel %vm2298, %v2282, 0
  %2305 = vmatprep.subr.mxu0 0.0
  %2306 = vmatpush1.msra.mxu0 0.0
  %2307 = vmatprep.subr.mxu0 0.0
  %2308 = vmatpush1.msra.mxu0 0.0
  %2309 = vmatprep.subr.mxu0 0.0
  %2310 = vmatpush1.msra.mxu0 0.0
  %2311 = vmatprep.subr.mxu0 0.0
  %2312 = vmatpush1.msra.mxu0 0.0
  %2313 = vmatprep.subr.mxu0 0.0
  %2314 = vmatpush1.msra.mxu0 0.0
  %2315 = vmatprep.subr.mxu0 0.0
  %2316 = vmatpush1.msra.mxu0 0.0
  %2317 = vmatprep.subr.mxu0 0.0
  %2318 = vmatpush1.msra.mxu0 0.0
  %2319 = vmatprep.subr.mxu0 0.0
  %2320 = vmatpush1.msra.mxu0 0.0
  %2321 = vmatprep.subr.mxu0 0.0
  %2322 = vmatpush1.msra.mxu0 %v2290
  %2323 = vmatprep.subr.mxu0 0.0
  %2324 = vmatpush1.msra.mxu0 %v2289
  %2325 = vmatprep.subr.mxu0 0.0
  %2326 = vmatpush1.msra.mxu0 %v2288
  %2327 = vmatprep.subr.mxu0 0.0
  %2328 = vmatpush1.msra.mxu0 %v2287
  %2329 = vmatprep.subr.mxu0 0.0
  %2330 = vmatpush1.msra.mxu0 %v2286
  %2331 = vmatprep.subr.mxu0 0.0
  %2332 = vmatpush1.msra.mxu0 %v2285
  %2333 = vmatprep.subr.mxu0 0.0
  %2334 = vmatpush1.msra.mxu0 %v2284
  %2335 = vmatprep.subr.mxu0 0.0
  %2336 = vmatpush1.msra.mxu0 %v2283
  %2337 = vmatprep.subr.mxu0 0.0
  %2338 = vmatpush2.msra.mxu0 0.0
  %2339 = vmatprep.subr.mxu0 0.0
  %2340 = vmatpush2.msra.mxu0 0.0
  %2341 = vmatprep.subr.mxu0 0.0
  %2342 = vmatpush2.msra.mxu0 0.0
  %2343 = vmatprep.subr.mxu0 0.0
  %2344 = vmatpush2.msra.mxu0 0.0
  %2345 = vmatprep.subr.mxu0 0.0
  %2346 = vmatpush2.msra.mxu0 0.0
  %2347 = vmatprep.subr.mxu0 0.0
  %2348 = vmatpush2.msra.mxu0 0.0
  %2349 = vmatprep.subr.mxu0 0.0
  %2350 = vmatpush2.msra.mxu0 0.0
  %2351 = vmatprep.subr.mxu0 0.0
  %2352 = vmatpush2.msra.mxu0 0.0
  %2353 = vmatprep.subr.mxu0 0.0
  %2354 = vmatpush2.msra.mxu0 0.0
  %2355 = vmatprep.subr.mxu0 0.0
  %2356 = vmatpush2.msra.mxu0 0.0
  %2357 = vmatprep.subr.mxu0 0.0
  %2358 = vmatpush2.msra.mxu0 0.0
  %2359 = vmatprep.subr.mxu0 0.0
  %2360 = vmatpush2.msra.mxu0 0.0
  %2361 = vmatprep.subr.mxu0 0.0
  %2362 = vmatpush2.msra.mxu0 0.0
  %2363 = vmatprep.subr.mxu0 0.0
  %2364 = vmatpush2.msra.mxu0 0.0
  %2365 = vmatprep.subr.mxu0 0.0
  %2366 = vmatpush2.msra.mxu0 0.0
  %2367 = vmatprep.subr.mxu0 0.0
  %2368 = vmatpush2.msra.mxu0 0.0
  %2369 = vmatprep.mubr.f32.mxu0 0.0
  %2370 = vmatmul.mubr.f32.gmra.mxu0 %v2300
  %v2371 = vpop.f32.mrf.mxu0
  %v2372 = vadd.f32 %v2296, %v2371
  %v2373 = vpop.f32.mrf.mxu0
  %2374 = vmatprep.mubr.f32.mxu0 0.0
  %2375 = vmatmul.mubr.f32.gmra.mxu0 %v2303
  %v2376 = vpop.f32.mrf.mxu0
  %v2377 = vadd.f32 %v2296, %v2376
  %v2378 = vpop.f32.mrf.mxu0
  %2379 = vdwg.mxu0
  %v2380 = vadd.f32 %v2372, %v2171
  %v2381 = vadd.f32 %v2377, %v2172
  %v2382 = vld [vmem:[%s14] sm:$0x1]
  %v2383 = vld [vmem:[%s15] sm:$0x1]
  %v2384 = vsel %vm69, %v2380, 0.0
  %2385 = vadd.xlane.f32.xlu0 %v2384
  %v2386 = vpop.xlane.xlu0 %2385
  %v2387 = vsel %vm69, %v2381, 0.0
  %2388 = vadd.xlane.f32.xlu0 %v2387
  %v2389 = vpop.xlane.xlu0 %2388
  %v2390 = vmul.f32 %v2386, %v76
  %v2391 = vmul.f32 %v2389, %v76
  %v2392 = vsub.f32 %v2380, %v2390
  %v2393 = vsub.f32 %v2381, %v2391
  %v2394 = vmul.f32 %v2392, %v2392
  %v2395 = vmul.f32 %v2393, %v2393
  %v2396 = vsel %vm69, %v2394, 0.0
  %2397 = vadd.xlane.f32.xlu0 %v2396
  %v2398 = vpop.xlane.xlu0 %2397
  %v2399 = vsel %vm69, %v2395, 0.0
  %2400 = vadd.xlane.f32.xlu0 %v2399
  %v2401 = vpop.xlane.xlu0 %2400
  %v2402 = vmul.f32 %v2398, %v76
  %v2403 = vmul.f32 %v2401, %v76
  %v2404 = vadd.f32 %v2402, 1e-12
  %v2405 = vadd.f32 %v2403, 1e-12
  %v2406 = vrsqrt.pop %v2404
  %v2407 = vrsqrt.pop %v2405
  %v2408 = vmul.f32 %v2392, %v2406
  %v2409 = vmul.f32 %v2393, %v2407
  %v2411 = vlaneseq
  %v2412 = vshrl.u32 %v2411, 7
  %v2413 = vsub.s32 0, %v2412
  %v2414 = vrot.slane %v2382, %v2413
  %v2416 = vmul.f32 %v2408, %v2414
  %v2417 = vmul.f32 %v2409, %v2414
  %v2419 = vlaneseq
  %v2420 = vshrl.u32 %v2419, 7
  %v2421 = vsub.s32 0, %v2420
  %v2422 = vrot.slane %v2383, %v2421
  %v2424 = vadd.f32 %v2416, %v2422
  %v2425 = vadd.f32 %v2417, %v2422
  %s2426 = scalar_lea.vmem %s4, 32
  %v2427 = vld [vmem:[%s2426] sm:$0xff]
  %v2428 = vld [vmem:[%s2426 + $0x8] sm:$0xff]
  %v2429 = vld [vmem:[%s2426 + $0x10] sm:$0xff]
  %v2430 = vld [vmem:[%s2426 + $0x18] sm:$0xff]
  %s2431 = scalar_lea.vmem %s5, 1
  %v2432 = vld [vmem:[%s2431] sm:$0x1]
  %v2434 = vlaneseq
  %v2435 = vshrl.u32 %v2434, 7
  %v2436 = vsub.s32 0, %v2435
  %v2437 = vrot.slane %v2432, %v2436
  %v2440 = vsel %vm69, %v2424, 0
  %v2443 = vsel %vm69, %v2425, 0
  %2445 = vmatprep.subr.mxu0 0.0
  %2446 = vmatpush1.msra.mxu0 0.0
  %2447 = vmatprep.subr.mxu0 0.0
  %2448 = vmatpush1.msra.mxu0 0.0
  %2449 = vmatprep.subr.mxu0 0.0
  %2450 = vmatpush1.msra.mxu0 0.0
  %2451 = vmatprep.subr.mxu0 0.0
  %2452 = vmatpush1.msra.mxu0 0.0
  %2453 = vmatprep.subr.mxu0 0.0
  %2454 = vmatpush1.msra.mxu0 0.0
  %2455 = vmatprep.subr.mxu0 0.0
  %2456 = vmatpush1.msra.mxu0 0.0
  %2457 = vmatprep.subr.mxu0 0.0
  %2458 = vmatpush1.msra.mxu0 0.0
  %2459 = vmatprep.subr.mxu0 0.0
  %2460 = vmatpush1.msra.mxu0 0.0
  %2461 = vmatprep.subr.mxu0 0.0
  %2462 = vmatpush1.msra.mxu0 0.0
  %2463 = vmatprep.subr.mxu0 0.0
  %2464 = vmatpush1.msra.mxu0 0.0
  %2465 = vmatprep.subr.mxu0 0.0
  %2466 = vmatpush1.msra.mxu0 0.0
  %2467 = vmatprep.subr.mxu0 0.0
  %2468 = vmatpush1.msra.mxu0 0.0
  %2469 = vmatprep.subr.mxu0 0.0
  %2470 = vmatpush1.msra.mxu0 %v2430
  %2471 = vmatprep.subr.mxu0 0.0
  %2472 = vmatpush1.msra.mxu0 %v2429
  %2473 = vmatprep.subr.mxu0 0.0
  %2474 = vmatpush1.msra.mxu0 %v2428
  %2475 = vmatprep.subr.mxu0 0.0
  %2476 = vmatpush1.msra.mxu0 %v2427
  %2477 = vmatprep.subr.mxu0 0.0
  %2478 = vmatpush2.msra.mxu0 0.0
  %2479 = vmatprep.subr.mxu0 0.0
  %2480 = vmatpush2.msra.mxu0 0.0
  %2481 = vmatprep.subr.mxu0 0.0
  %2482 = vmatpush2.msra.mxu0 0.0
  %2483 = vmatprep.subr.mxu0 0.0
  %2484 = vmatpush2.msra.mxu0 0.0
  %2485 = vmatprep.subr.mxu0 0.0
  %2486 = vmatpush2.msra.mxu0 0.0
  %2487 = vmatprep.subr.mxu0 0.0
  %2488 = vmatpush2.msra.mxu0 0.0
  %2489 = vmatprep.subr.mxu0 0.0
  %2490 = vmatpush2.msra.mxu0 0.0
  %2491 = vmatprep.subr.mxu0 0.0
  %2492 = vmatpush2.msra.mxu0 0.0
  %2493 = vmatprep.subr.mxu0 0.0
  %2494 = vmatpush2.msra.mxu0 0.0
  %2495 = vmatprep.subr.mxu0 0.0
  %2496 = vmatpush2.msra.mxu0 0.0
  %2497 = vmatprep.subr.mxu0 0.0
  %2498 = vmatpush2.msra.mxu0 0.0
  %2499 = vmatprep.subr.mxu0 0.0
  %2500 = vmatpush2.msra.mxu0 0.0
  %2501 = vmatprep.subr.mxu0 0.0
  %2502 = vmatpush2.msra.mxu0 0.0
  %2503 = vmatprep.subr.mxu0 0.0
  %2504 = vmatpush2.msra.mxu0 0.0
  %2505 = vmatprep.subr.mxu0 0.0
  %2506 = vmatpush2.msra.mxu0 0.0
  %2507 = vmatprep.subr.mxu0 0.0
  %2508 = vmatpush2.msra.mxu0 0.0
  %2509 = vmatprep.mubr.f32.mxu0 0.0
  %2510 = vmatmul.mubr.f32.gmra.mxu0 %v2440
  %v2511 = vpop.f32.mrf.mxu0
  %v2512 = vadd.f32 %v2437, %v2511
  %v2513 = vpop.f32.mrf.mxu0
  %2514 = vmatprep.mubr.f32.mxu0 0.0
  %2515 = vmatmul.mubr.f32.gmra.mxu0 %v2443
  %v2516 = vpop.f32.mrf.mxu0
  %v2517 = vadd.f32 %v2437, %v2516
  %v2518 = vpop.f32.mrf.mxu0
  %2519 = vdwg.mxu0
  %s2520 = scalar_lea.vmem %s6, 32
  %v2521 = vld [vmem:[%s2520] sm:$0xff]
  %v2522 = vld [vmem:[%s2520 + $0x8] sm:$0xff]
  %v2523 = vld [vmem:[%s2520 + $0x10] sm:$0xff]
  %v2524 = vld [vmem:[%s2520 + $0x18] sm:$0xff]
  %2526 = vrot.lane.b32.xlu0 %v2512, 96
  %v2527 = vpop.permute.xlu0 %2526
  %v2528 = vsel %vm214, %v2512, 0
  %v2530 = vsel %vm214, %v2527, 0
  %2532 = vmatprep.subr.mxu0 0.0
  %2533 = vmatpush1.xpose.msra.mxu0 0.0
  %2534 = vmatprep.subr.mxu0 0.0
  %2535 = vmatpush1.xpose.msra.mxu0 0.0
  %2536 = vmatprep.subr.mxu0 0.0
  %2537 = vmatpush1.xpose.msra.mxu0 0.0
  %2538 = vmatprep.subr.mxu0 0.0
  %2539 = vmatpush1.xpose.msra.mxu0 0.0
  %2540 = vmatprep.subr.mxu0 0.0
  %2541 = vmatpush1.xpose.msra.mxu0 0.0
  %2542 = vmatprep.subr.mxu0 0.0
  %2543 = vmatpush1.xpose.msra.mxu0 0.0
  %2544 = vmatprep.subr.mxu0 0.0
  %2545 = vmatpush1.xpose.msra.mxu0 0.0
  %2546 = vmatprep.subr.mxu0 0.0
  %2547 = vmatpush1.xpose.msra.mxu0 0.0
  %2548 = vmatprep.subr.mxu0 0.0
  %2549 = vmatpush1.xpose.msra.mxu0 0.0
  %2550 = vmatprep.subr.mxu0 0.0
  %2551 = vmatpush1.xpose.msra.mxu0 0.0
  %2552 = vmatprep.subr.mxu0 0.0
  %2553 = vmatpush1.xpose.msra.mxu0 0.0
  %2554 = vmatprep.subr.mxu0 0.0
  %2555 = vmatpush1.xpose.msra.mxu0 0.0
  %2556 = vmatprep.subr.mxu0 0.0
  %2557 = vmatpush1.xpose.msra.mxu0 0.0
  %2558 = vmatprep.subr.mxu0 0.0
  %2559 = vmatpush1.xpose.msra.mxu0 0.0
  %2560 = vmatprep.subr.mxu0 0.0
  %2561 = vmatpush1.xpose.msra.mxu0 0.0
  %2562 = vmatprep.subr.mxu0 0.0
  %2563 = vmatpush1.xpose.msra.mxu0 %v2530
  %2564 = vmatprep.subr.mxu0 0.0
  %2565 = vmatpush2.xpose.msra.mxu0 0.0
  %2566 = vmatprep.subr.mxu0 0.0
  %2567 = vmatpush2.xpose.msra.mxu0 0.0
  %2568 = vmatprep.subr.mxu0 0.0
  %2569 = vmatpush2.xpose.msra.mxu0 0.0
  %2570 = vmatprep.subr.mxu0 0.0
  %2571 = vmatpush2.xpose.msra.mxu0 0.0
  %2572 = vmatprep.subr.mxu0 0.0
  %2573 = vmatpush2.xpose.msra.mxu0 0.0
  %2574 = vmatprep.subr.mxu0 0.0
  %2575 = vmatpush2.xpose.msra.mxu0 0.0
  %2576 = vmatprep.subr.mxu0 0.0
  %2577 = vmatpush2.xpose.msra.mxu0 0.0
  %2578 = vmatprep.subr.mxu0 0.0
  %2579 = vmatpush2.xpose.msra.mxu0 0.0
  %2580 = vmatprep.subr.mxu0 0.0
  %2581 = vmatpush2.xpose.msra.mxu0 0.0
  %2582 = vmatprep.subr.mxu0 0.0
  %2583 = vmatpush2.xpose.msra.mxu0 0.0
  %2584 = vmatprep.subr.mxu0 0.0
  %2585 = vmatpush2.xpose.msra.mxu0 0.0
  %2586 = vmatprep.subr.mxu0 0.0
  %2587 = vmatpush2.xpose.msra.mxu0 0.0
  %2588 = vmatprep.subr.mxu0 0.0
  %2589 = vmatpush2.xpose.msra.mxu0 0.0
  %2590 = vmatprep.subr.mxu0 0.0
  %2591 = vmatpush2.xpose.msra.mxu0 0.0
  %2592 = vmatprep.subr.mxu0 0.0
  %2593 = vmatpush2.xpose.msra.mxu0 0.0
  %2594 = vmatprep.subr.mxu0 0.0
  %2595 = vmatpush2.xpose.msra.mxu0 0.0
  %2596 = vmatprep.mubr.f32.mxu0 0.0
  %2597 = vmatmul.mubr.f32.gmra.mxu0 %v2528
  %v2598 = vpop.f32.mrf.mxu0
  %v2599 = vadd.f32 %v113, %v2598
  %v2600 = vpop.f32.mrf.mxu0
  %2601 = vdwg.mxu0
  %v2602 = vsel %vm214, %v2599, -inf
  %2603 = vmax.xlane.f32.xlu0 %v2602
  %v2604 = vpop.xlane.xlu0 %2603
  %v2605 = vsub.f32 %v2599, %v2604
  %v2606 = vmul.f32 %v2605, 1.442695
  %v2607 = vpow.pop %v2606
  %v2608 = vsel %vm214, %v2607, 0.0
  %2609 = vadd.xlane.f32.xlu0 %v2608
  %v2610 = vpop.xlane.xlu0 %2609
  %v2611 = vrcp.pop %v2610
  %v2612 = vmul.f32 %v2607, %v2611
  %2613 = vrot.lane.b32.xlu0 %v2512, 64
  %v2614 = vpop.permute.xlu0 %2613
  %v2617 = vsel %vm214, %v2612, 0
  %2619 = vmatprep.subr.mxu0 0.0
  %2620 = vmatpush1.msra.mxu0 0.0
  %2621 = vmatprep.subr.mxu0 0.0
  %2622 = vmatpush1.msra.mxu0 0.0
  %2623 = vmatprep.subr.mxu0 0.0
  %2624 = vmatpush1.msra.mxu0 0.0
  %2625 = vmatprep.subr.mxu0 0.0
  %2626 = vmatpush1.msra.mxu0 0.0
  %2627 = vmatprep.subr.mxu0 0.0
  %2628 = vmatpush1.msra.mxu0 0.0
  %2629 = vmatprep.subr.mxu0 0.0
  %2630 = vmatpush1.msra.mxu0 0.0
  %2631 = vmatprep.subr.mxu0 0.0
  %2632 = vmatpush1.msra.mxu0 0.0
  %2633 = vmatprep.subr.mxu0 0.0
  %2634 = vmatpush1.msra.mxu0 0.0
  %2635 = vmatprep.subr.mxu0 0.0
  %2636 = vmatpush1.msra.mxu0 0.0
  %2637 = vmatprep.subr.mxu0 0.0
  %2638 = vmatpush1.msra.mxu0 0.0
  %2639 = vmatprep.subr.mxu0 0.0
  %2640 = vmatpush1.msra.mxu0 0.0
  %2641 = vmatprep.subr.mxu0 0.0
  %2642 = vmatpush1.msra.mxu0 0.0
  %2643 = vmatprep.subr.mxu0 0.0
  %2644 = vmatpush1.msra.mxu0 0.0
  %2645 = vmatprep.subr.mxu0 0.0
  %2646 = vmatpush1.msra.mxu0 0.0
  %2647 = vmatprep.subr.mxu0 0.0
  %2648 = vmatpush1.msra.mxu0 0.0
  %2649 = vmatprep.subr.mxu0 0.0
  %2650 = vmatpush1.msra.mxu0 %v2614
  %2651 = vmatprep.subr.mxu0 0.0
  %2652 = vmatpush2.msra.mxu0 0.0
  %2653 = vmatprep.subr.mxu0 0.0
  %2654 = vmatpush2.msra.mxu0 0.0
  %2655 = vmatprep.subr.mxu0 0.0
  %2656 = vmatpush2.msra.mxu0 0.0
  %2657 = vmatprep.subr.mxu0 0.0
  %2658 = vmatpush2.msra.mxu0 0.0
  %2659 = vmatprep.subr.mxu0 0.0
  %2660 = vmatpush2.msra.mxu0 0.0
  %2661 = vmatprep.subr.mxu0 0.0
  %2662 = vmatpush2.msra.mxu0 0.0
  %2663 = vmatprep.subr.mxu0 0.0
  %2664 = vmatpush2.msra.mxu0 0.0
  %2665 = vmatprep.subr.mxu0 0.0
  %2666 = vmatpush2.msra.mxu0 0.0
  %2667 = vmatprep.subr.mxu0 0.0
  %2668 = vmatpush2.msra.mxu0 0.0
  %2669 = vmatprep.subr.mxu0 0.0
  %2670 = vmatpush2.msra.mxu0 0.0
  %2671 = vmatprep.subr.mxu0 0.0
  %2672 = vmatpush2.msra.mxu0 0.0
  %2673 = vmatprep.subr.mxu0 0.0
  %2674 = vmatpush2.msra.mxu0 0.0
  %2675 = vmatprep.subr.mxu0 0.0
  %2676 = vmatpush2.msra.mxu0 0.0
  %2677 = vmatprep.subr.mxu0 0.0
  %2678 = vmatpush2.msra.mxu0 0.0
  %2679 = vmatprep.subr.mxu0 0.0
  %2680 = vmatpush2.msra.mxu0 0.0
  %2681 = vmatprep.subr.mxu0 0.0
  %2682 = vmatpush2.msra.mxu0 0.0
  %2683 = vmatprep.mubr.f32.mxu0 0.0
  %2684 = vmatmul.mubr.f32.gmra.mxu0 %v2617
  %v2685 = vpop.f32.mrf.mxu0
  %v2686 = vadd.f32 0.0, %v2685
  %v2687 = vpop.f32.mrf.mxu0
  %2688 = vdwg.mxu0
  %2689 = vrot.lane.b32.xlu0 %v2512, 120
  %v2690 = vpop.permute.xlu0 %2689
  %2691 = vrot.lane.b32.xlu0 %v2512, 88
  %v2692 = vpop.permute.xlu0 %2691
  %v2693 = vsel %vm214, %v2690, 0
  %v2695 = vsel %vm214, %v2692, 0
  %2697 = vmatprep.subr.mxu0 0.0
  %2698 = vmatpush1.xpose.msra.mxu0 0.0
  %2699 = vmatprep.subr.mxu0 0.0
  %2700 = vmatpush1.xpose.msra.mxu0 0.0
  %2701 = vmatprep.subr.mxu0 0.0
  %2702 = vmatpush1.xpose.msra.mxu0 0.0
  %2703 = vmatprep.subr.mxu0 0.0
  %2704 = vmatpush1.xpose.msra.mxu0 0.0
  %2705 = vmatprep.subr.mxu0 0.0
  %2706 = vmatpush1.xpose.msra.mxu0 0.0
  %2707 = vmatprep.subr.mxu0 0.0
  %2708 = vmatpush1.xpose.msra.mxu0 0.0
  %2709 = vmatprep.subr.mxu0 0.0
  %2710 = vmatpush1.xpose.msra.mxu0 0.0
  %2711 = vmatprep.subr.mxu0 0.0
  %2712 = vmatpush1.xpose.msra.mxu0 0.0
  %2713 = vmatprep.subr.mxu0 0.0
  %2714 = vmatpush1.xpose.msra.mxu0 0.0
  %2715 = vmatprep.subr.mxu0 0.0
  %2716 = vmatpush1.xpose.msra.mxu0 0.0
  %2717 = vmatprep.subr.mxu0 0.0
  %2718 = vmatpush1.xpose.msra.mxu0 0.0
  %2719 = vmatprep.subr.mxu0 0.0
  %2720 = vmatpush1.xpose.msra.mxu0 0.0
  %2721 = vmatprep.subr.mxu0 0.0
  %2722 = vmatpush1.xpose.msra.mxu0 0.0
  %2723 = vmatprep.subr.mxu0 0.0
  %2724 = vmatpush1.xpose.msra.mxu0 0.0
  %2725 = vmatprep.subr.mxu0 0.0
  %2726 = vmatpush1.xpose.msra.mxu0 0.0
  %2727 = vmatprep.subr.mxu0 0.0
  %2728 = vmatpush1.xpose.msra.mxu0 %v2695
  %2729 = vmatprep.subr.mxu0 0.0
  %2730 = vmatpush2.xpose.msra.mxu0 0.0
  %2731 = vmatprep.subr.mxu0 0.0
  %2732 = vmatpush2.xpose.msra.mxu0 0.0
  %2733 = vmatprep.subr.mxu0 0.0
  %2734 = vmatpush2.xpose.msra.mxu0 0.0
  %2735 = vmatprep.subr.mxu0 0.0
  %2736 = vmatpush2.xpose.msra.mxu0 0.0
  %2737 = vmatprep.subr.mxu0 0.0
  %2738 = vmatpush2.xpose.msra.mxu0 0.0
  %2739 = vmatprep.subr.mxu0 0.0
  %2740 = vmatpush2.xpose.msra.mxu0 0.0
  %2741 = vmatprep.subr.mxu0 0.0
  %2742 = vmatpush2.xpose.msra.mxu0 0.0
  %2743 = vmatprep.subr.mxu0 0.0
  %2744 = vmatpush2.xpose.msra.mxu0 0.0
  %2745 = vmatprep.subr.mxu0 0.0
  %2746 = vmatpush2.xpose.msra.mxu0 0.0
  %2747 = vmatprep.subr.mxu0 0.0
  %2748 = vmatpush2.xpose.msra.mxu0 0.0
  %2749 = vmatprep.subr.mxu0 0.0
  %2750 = vmatpush2.xpose.msra.mxu0 0.0
  %2751 = vmatprep.subr.mxu0 0.0
  %2752 = vmatpush2.xpose.msra.mxu0 0.0
  %2753 = vmatprep.subr.mxu0 0.0
  %2754 = vmatpush2.xpose.msra.mxu0 0.0
  %2755 = vmatprep.subr.mxu0 0.0
  %2756 = vmatpush2.xpose.msra.mxu0 0.0
  %2757 = vmatprep.subr.mxu0 0.0
  %2758 = vmatpush2.xpose.msra.mxu0 0.0
  %2759 = vmatprep.subr.mxu0 0.0
  %2760 = vmatpush2.xpose.msra.mxu0 0.0
  %2761 = vmatprep.mubr.f32.mxu0 0.0
  %2762 = vmatmul.mubr.f32.gmra.mxu0 %v2693
  %v2763 = vpop.f32.mrf.mxu0
  %v2764 = vadd.f32 %v113, %v2763
  %v2765 = vpop.f32.mrf.mxu0
  %2766 = vdwg.mxu0
  %v2767 = vsel %vm214, %v2764, -inf
  %2768 = vmax.xlane.f32.xlu0 %v2767
  %v2769 = vpop.xlane.xlu0 %2768
  %v2770 = vsub.f32 %v2764, %v2769
  %v2771 = vmul.f32 %v2770, 1.442695
  %v2772 = vpow.pop %v2771
  %v2773 = vsel %vm214, %v2772, 0.0
  %2774 = vadd.xlane.f32.xlu0 %v2773
  %v2775 = vpop.xlane.xlu0 %2774
  %v2776 = vrcp.pop %v2775
  %v2777 = vmul.f32 %v2772, %v2776
  %2778 = vrot.lane.b32.xlu0 %v2512, 56
  %v2779 = vpop.permute.xlu0 %2778
  %v2782 = vsel %vm214, %v2777, 0
  %2784 = vmatprep.subr.mxu0 0.0
  %2785 = vmatpush1.msra.mxu0 0.0
  %2786 = vmatprep.subr.mxu0 0.0
  %2787 = vmatpush1.msra.mxu0 0.0
  %2788 = vmatprep.subr.mxu0 0.0
  %2789 = vmatpush1.msra.mxu0 0.0
  %2790 = vmatprep.subr.mxu0 0.0
  %2791 = vmatpush1.msra.mxu0 0.0
  %2792 = vmatprep.subr.mxu0 0.0
  %2793 = vmatpush1.msra.mxu0 0.0
  %2794 = vmatprep.subr.mxu0 0.0
  %2795 = vmatpush1.msra.mxu0 0.0
  %2796 = vmatprep.subr.mxu0 0.0
  %2797 = vmatpush1.msra.mxu0 0.0
  %2798 = vmatprep.subr.mxu0 0.0
  %2799 = vmatpush1.msra.mxu0 0.0
  %2800 = vmatprep.subr.mxu0 0.0
  %2801 = vmatpush1.msra.mxu0 0.0
  %2802 = vmatprep.subr.mxu0 0.0
  %2803 = vmatpush1.msra.mxu0 0.0
  %2804 = vmatprep.subr.mxu0 0.0
  %2805 = vmatpush1.msra.mxu0 0.0
  %2806 = vmatprep.subr.mxu0 0.0
  %2807 = vmatpush1.msra.mxu0 0.0
  %2808 = vmatprep.subr.mxu0 0.0
  %2809 = vmatpush1.msra.mxu0 0.0
  %2810 = vmatprep.subr.mxu0 0.0
  %2811 = vmatpush1.msra.mxu0 0.0
  %2812 = vmatprep.subr.mxu0 0.0
  %2813 = vmatpush1.msra.mxu0 0.0
  %2814 = vmatprep.subr.mxu0 0.0
  %2815 = vmatpush1.msra.mxu0 %v2779
  %2816 = vmatprep.subr.mxu0 0.0
  %2817 = vmatpush2.msra.mxu0 0.0
  %2818 = vmatprep.subr.mxu0 0.0
  %2819 = vmatpush2.msra.mxu0 0.0
  %2820 = vmatprep.subr.mxu0 0.0
  %2821 = vmatpush2.msra.mxu0 0.0
  %2822 = vmatprep.subr.mxu0 0.0
  %2823 = vmatpush2.msra.mxu0 0.0
  %2824 = vmatprep.subr.mxu0 0.0
  %2825 = vmatpush2.msra.mxu0 0.0
  %2826 = vmatprep.subr.mxu0 0.0
  %2827 = vmatpush2.msra.mxu0 0.0
  %2828 = vmatprep.subr.mxu0 0.0
  %2829 = vmatpush2.msra.mxu0 0.0
  %2830 = vmatprep.subr.mxu0 0.0
  %2831 = vmatpush2.msra.mxu0 0.0
  %2832 = vmatprep.subr.mxu0 0.0
  %2833 = vmatpush2.msra.mxu0 0.0
  %2834 = vmatprep.subr.mxu0 0.0
  %2835 = vmatpush2.msra.mxu0 0.0
  %2836 = vmatprep.subr.mxu0 0.0
  %2837 = vmatpush2.msra.mxu0 0.0
  %2838 = vmatprep.subr.mxu0 0.0
  %2839 = vmatpush2.msra.mxu0 0.0
  %2840 = vmatprep.subr.mxu0 0.0
  %2841 = vmatpush2.msra.mxu0 0.0
  %2842 = vmatprep.subr.mxu0 0.0
  %2843 = vmatpush2.msra.mxu0 0.0
  %2844 = vmatprep.subr.mxu0 0.0
  %2845 = vmatpush2.msra.mxu0 0.0
  %2846 = vmatprep.subr.mxu0 0.0
  %2847 = vmatpush2.msra.mxu0 0.0
  %2848 = vmatprep.mubr.f32.mxu0 0.0
  %2849 = vmatmul.mubr.f32.gmra.mxu0 %v2782
  %v2850 = vpop.f32.mrf.mxu0
  %v2851 = vadd.f32 0.0, %v2850
  %v2852 = vpop.f32.mrf.mxu0
  %2853 = vdwg.mxu0
  %v2855 = vsel %vm214, %v2851, 0
  %2857 = vmatprep.subr.mxu0 0.0
  %2858 = vmatpush1.msra.mxu0 0.0
  %2859 = vmatprep.subr.mxu0 0.0
  %2860 = vmatpush1.msra.mxu0 0.0
  %2861 = vmatprep.subr.mxu0 0.0
  %2862 = vmatpush1.msra.mxu0 0.0
  %2863 = vmatprep.subr.mxu0 0.0
  %2864 = vmatpush1.msra.mxu0 0.0
  %2865 = vmatprep.subr.mxu0 0.0
  %2866 = vmatpush1.msra.mxu0 0.0
  %2867 = vmatprep.subr.mxu0 0.0
  %2868 = vmatpush1.msra.mxu0 0.0
  %2869 = vmatprep.subr.mxu0 0.0
  %2870 = vmatpush1.msra.mxu0 0.0
  %2871 = vmatprep.subr.mxu0 0.0
  %2872 = vmatpush1.msra.mxu0 0.0
  %2873 = vmatprep.subr.mxu0 0.0
  %2874 = vmatpush1.msra.mxu0 0.0
  %2875 = vmatprep.subr.mxu0 0.0
  %2876 = vmatpush1.msra.mxu0 0.0
  %2877 = vmatprep.subr.mxu0 0.0
  %2878 = vmatpush1.msra.mxu0 0.0
  %2879 = vmatprep.subr.mxu0 0.0
  %2880 = vmatpush1.msra.mxu0 0.0
  %2881 = vmatprep.subr.mxu0 0.0
  %2882 = vmatpush1.msra.mxu0 0.0
  %2883 = vmatprep.subr.mxu0 0.0
  %2884 = vmatpush1.msra.mxu0 0.0
  %2885 = vmatprep.subr.mxu0 0.0
  %2886 = vmatpush1.msra.mxu0 0.0
  %2887 = vmatprep.subr.mxu0 0.0
  %2888 = vmatpush1.msra.mxu0 %v2522
  %2889 = vmatprep.subr.mxu0 0.0
  %2890 = vmatpush2.msra.mxu0 0.0
  %2891 = vmatprep.subr.mxu0 0.0
  %2892 = vmatpush2.msra.mxu0 0.0
  %2893 = vmatprep.subr.mxu0 0.0
  %2894 = vmatpush2.msra.mxu0 0.0
  %2895 = vmatprep.subr.mxu0 0.0
  %2896 = vmatpush2.msra.mxu0 0.0
  %2897 = vmatprep.subr.mxu0 0.0
  %2898 = vmatpush2.msra.mxu0 0.0
  %2899 = vmatprep.subr.mxu0 0.0
  %2900 = vmatpush2.msra.mxu0 0.0
  %2901 = vmatprep.subr.mxu0 0.0
  %2902 = vmatpush2.msra.mxu0 0.0
  %2903 = vmatprep.subr.mxu0 0.0
  %2904 = vmatpush2.msra.mxu0 0.0
  %2905 = vmatprep.subr.mxu0 0.0
  %2906 = vmatpush2.msra.mxu0 0.0
  %2907 = vmatprep.subr.mxu0 0.0
  %2908 = vmatpush2.msra.mxu0 0.0
  %2909 = vmatprep.subr.mxu0 0.0
  %2910 = vmatpush2.msra.mxu0 0.0
  %2911 = vmatprep.subr.mxu0 0.0
  %2912 = vmatpush2.msra.mxu0 0.0
  %2913 = vmatprep.subr.mxu0 0.0
  %2914 = vmatpush2.msra.mxu0 0.0
  %2915 = vmatprep.subr.mxu0 0.0
  %2916 = vmatpush2.msra.mxu0 0.0
  %2917 = vmatprep.subr.mxu0 0.0
  %2918 = vmatpush2.msra.mxu0 0.0
  %2919 = vmatprep.subr.mxu0 0.0
  %2920 = vmatpush2.msra.mxu0 0.0
  %2921 = vmatprep.mubr.f32.mxu0 0.0
  %2922 = vmatmul.mubr.f32.gmra.mxu0 %v2855
  %v2923 = vpop.f32.mrf.mxu0
  %v2924 = vadd.f32 0.0, %v2923
  %v2925 = vpop.f32.mrf.mxu0
  %2926 = vdwg.mxu0
  %v2928 = vsel %vm214, %v2686, 0
  %2930 = vmatprep.subr.mxu0 0.0
  %2931 = vmatpush1.msra.mxu0 0.0
  %2932 = vmatprep.subr.mxu0 0.0
  %2933 = vmatpush1.msra.mxu0 0.0
  %2934 = vmatprep.subr.mxu0 0.0
  %2935 = vmatpush1.msra.mxu0 0.0
  %2936 = vmatprep.subr.mxu0 0.0
  %2937 = vmatpush1.msra.mxu0 0.0
  %2938 = vmatprep.subr.mxu0 0.0
  %2939 = vmatpush1.msra.mxu0 0.0
  %2940 = vmatprep.subr.mxu0 0.0
  %2941 = vmatpush1.msra.mxu0 0.0
  %2942 = vmatprep.subr.mxu0 0.0
  %2943 = vmatpush1.msra.mxu0 0.0
  %2944 = vmatprep.subr.mxu0 0.0
  %2945 = vmatpush1.msra.mxu0 0.0
  %2946 = vmatprep.subr.mxu0 0.0
  %2947 = vmatpush1.msra.mxu0 0.0
  %2948 = vmatprep.subr.mxu0 0.0
  %2949 = vmatpush1.msra.mxu0 0.0
  %2950 = vmatprep.subr.mxu0 0.0
  %2951 = vmatpush1.msra.mxu0 0.0
  %2952 = vmatprep.subr.mxu0 0.0
  %2953 = vmatpush1.msra.mxu0 0.0
  %2954 = vmatprep.subr.mxu0 0.0
  %2955 = vmatpush1.msra.mxu0 0.0
  %2956 = vmatprep.subr.mxu0 0.0
  %2957 = vmatpush1.msra.mxu0 0.0
  %2958 = vmatprep.subr.mxu0 0.0
  %2959 = vmatpush1.msra.mxu0 0.0
  %2960 = vmatprep.subr.mxu0 0.0
  %2961 = vmatpush1.msra.mxu0 %v2521
  %2962 = vmatprep.subr.mxu0 0.0
  %2963 = vmatpush2.msra.mxu0 0.0
  %2964 = vmatprep.subr.mxu0 0.0
  %2965 = vmatpush2.msra.mxu0 0.0
  %2966 = vmatprep.subr.mxu0 0.0
  %2967 = vmatpush2.msra.mxu0 0.0
  %2968 = vmatprep.subr.mxu0 0.0
  %2969 = vmatpush2.msra.mxu0 0.0
  %2970 = vmatprep.subr.mxu0 0.0
  %2971 = vmatpush2.msra.mxu0 0.0
  %2972 = vmatprep.subr.mxu0 0.0
  %2973 = vmatpush2.msra.mxu0 0.0
  %2974 = vmatprep.subr.mxu0 0.0
  %2975 = vmatpush2.msra.mxu0 0.0
  %2976 = vmatprep.subr.mxu0 0.0
  %2977 = vmatpush2.msra.mxu0 0.0
  %2978 = vmatprep.subr.mxu0 0.0
  %2979 = vmatpush2.msra.mxu0 0.0
  %2980 = vmatprep.subr.mxu0 0.0
  %2981 = vmatpush2.msra.mxu0 0.0
  %2982 = vmatprep.subr.mxu0 0.0
  %2983 = vmatpush2.msra.mxu0 0.0
  %2984 = vmatprep.subr.mxu0 0.0
  %2985 = vmatpush2.msra.mxu0 0.0
  %2986 = vmatprep.subr.mxu0 0.0
  %2987 = vmatpush2.msra.mxu0 0.0
  %2988 = vmatprep.subr.mxu0 0.0
  %2989 = vmatpush2.msra.mxu0 0.0
  %2990 = vmatprep.subr.mxu0 0.0
  %2991 = vmatpush2.msra.mxu0 0.0
  %2992 = vmatprep.subr.mxu0 0.0
  %2993 = vmatpush2.msra.mxu0 0.0
  %2994 = vmatprep.mubr.f32.mxu0 0.0
  %2995 = vmatmul.mubr.f32.gmra.mxu0 %v2928
  %v2996 = vpop.f32.mrf.mxu0
  %v2997 = vadd.f32 %v2924, %v2996
  %v2998 = vpop.f32.mrf.mxu0
  %2999 = vdwg.mxu0
  %3000 = vrot.lane.b32.xlu0 %v2512, 112
  %v3001 = vpop.permute.xlu0 %3000
  %3002 = vrot.lane.b32.xlu0 %v2512, 80
  %v3003 = vpop.permute.xlu0 %3002
  %v3004 = vsel %vm214, %v3001, 0
  %v3006 = vsel %vm214, %v3003, 0
  %3008 = vmatprep.subr.mxu0 0.0
  %3009 = vmatpush1.xpose.msra.mxu0 0.0
  %3010 = vmatprep.subr.mxu0 0.0
  %3011 = vmatpush1.xpose.msra.mxu0 0.0
  %3012 = vmatprep.subr.mxu0 0.0
  %3013 = vmatpush1.xpose.msra.mxu0 0.0
  %3014 = vmatprep.subr.mxu0 0.0
  %3015 = vmatpush1.xpose.msra.mxu0 0.0
  %3016 = vmatprep.subr.mxu0 0.0
  %3017 = vmatpush1.xpose.msra.mxu0 0.0
  %3018 = vmatprep.subr.mxu0 0.0
  %3019 = vmatpush1.xpose.msra.mxu0 0.0
  %3020 = vmatprep.subr.mxu0 0.0
  %3021 = vmatpush1.xpose.msra.mxu0 0.0
  %3022 = vmatprep.subr.mxu0 0.0
  %3023 = vmatpush1.xpose.msra.mxu0 0.0
  %3024 = vmatprep.subr.mxu0 0.0
  %3025 = vmatpush1.xpose.msra.mxu0 0.0
  %3026 = vmatprep.subr.mxu0 0.0
  %3027 = vmatpush1.xpose.msra.mxu0 0.0
  %3028 = vmatprep.subr.mxu0 0.0
  %3029 = vmatpush1.xpose.msra.mxu0 0.0
  %3030 = vmatprep.subr.mxu0 0.0
  %3031 = vmatpush1.xpose.msra.mxu0 0.0
  %3032 = vmatprep.subr.mxu0 0.0
  %3033 = vmatpush1.xpose.msra.mxu0 0.0
  %3034 = vmatprep.subr.mxu0 0.0
  %3035 = vmatpush1.xpose.msra.mxu0 0.0
  %3036 = vmatprep.subr.mxu0 0.0
  %3037 = vmatpush1.xpose.msra.mxu0 0.0
  %3038 = vmatprep.subr.mxu0 0.0
  %3039 = vmatpush1.xpose.msra.mxu0 %v3006
  %3040 = vmatprep.subr.mxu0 0.0
  %3041 = vmatpush2.xpose.msra.mxu0 0.0
  %3042 = vmatprep.subr.mxu0 0.0
  %3043 = vmatpush2.xpose.msra.mxu0 0.0
  %3044 = vmatprep.subr.mxu0 0.0
  %3045 = vmatpush2.xpose.msra.mxu0 0.0
  %3046 = vmatprep.subr.mxu0 0.0
  %3047 = vmatpush2.xpose.msra.mxu0 0.0
  %3048 = vmatprep.subr.mxu0 0.0
  %3049 = vmatpush2.xpose.msra.mxu0 0.0
  %3050 = vmatprep.subr.mxu0 0.0
  %3051 = vmatpush2.xpose.msra.mxu0 0.0
  %3052 = vmatprep.subr.mxu0 0.0
  %3053 = vmatpush2.xpose.msra.mxu0 0.0
  %3054 = vmatprep.subr.mxu0 0.0
  %3055 = vmatpush2.xpose.msra.mxu0 0.0
  %3056 = vmatprep.subr.mxu0 0.0
  %3057 = vmatpush2.xpose.msra.mxu0 0.0
  %3058 = vmatprep.subr.mxu0 0.0
  %3059 = vmatpush2.xpose.msra.mxu0 0.0
  %3060 = vmatprep.subr.mxu0 0.0
  %3061 = vmatpush2.xpose.msra.mxu0 0.0
  %3062 = vmatprep.subr.mxu0 0.0
  %3063 = vmatpush2.xpose.msra.mxu0 0.0
  %3064 = vmatprep.subr.mxu0 0.0
  %3065 = vmatpush2.xpose.msra.mxu0 0.0
  %3066 = vmatprep.subr.mxu0 0.0
  %3067 = vmatpush2.xpose.msra.mxu0 0.0
  %3068 = vmatprep.subr.mxu0 0.0
  %3069 = vmatpush2.xpose.msra.mxu0 0.0
  %3070 = vmatprep.subr.mxu0 0.0
  %3071 = vmatpush2.xpose.msra.mxu0 0.0
  %3072 = vmatprep.mubr.f32.mxu0 0.0
  %3073 = vmatmul.mubr.f32.gmra.mxu0 %v3004
  %v3074 = vpop.f32.mrf.mxu0
  %v3075 = vadd.f32 %v113, %v3074
  %v3076 = vpop.f32.mrf.mxu0
  %3077 = vdwg.mxu0
  %v3078 = vsel %vm214, %v3075, -inf
  %3079 = vmax.xlane.f32.xlu0 %v3078
  %v3080 = vpop.xlane.xlu0 %3079
  %v3081 = vsub.f32 %v3075, %v3080
  %v3082 = vmul.f32 %v3081, 1.442695
  %v3083 = vpow.pop %v3082
  %v3084 = vsel %vm214, %v3083, 0.0
  %3085 = vadd.xlane.f32.xlu0 %v3084
  %v3086 = vpop.xlane.xlu0 %3085
  %v3087 = vrcp.pop %v3086
  %v3088 = vmul.f32 %v3083, %v3087
  %3089 = vrot.lane.b32.xlu0 %v2512, 48
  %v3090 = vpop.permute.xlu0 %3089
  %v3093 = vsel %vm214, %v3088, 0
  %3095 = vmatprep.subr.mxu0 0.0
  %3096 = vmatpush1.msra.mxu0 0.0
  %3097 = vmatprep.subr.mxu0 0.0
  %3098 = vmatpush1.msra.mxu0 0.0
  %3099 = vmatprep.subr.mxu0 0.0
  %3100 = vmatpush1.msra.mxu0 0.0
  %3101 = vmatprep.subr.mxu0 0.0
  %3102 = vmatpush1.msra.mxu0 0.0
  %3103 = vmatprep.subr.mxu0 0.0
  %3104 = vmatpush1.msra.mxu0 0.0
  %3105 = vmatprep.subr.mxu0 0.0
  %3106 = vmatpush1.msra.mxu0 0.0
  %3107 = vmatprep.subr.mxu0 0.0
  %3108 = vmatpush1.msra.mxu0 0.0
  %3109 = vmatprep.subr.mxu0 0.0
  %3110 = vmatpush1.msra.mxu0 0.0
  %3111 = vmatprep.subr.mxu0 0.0
  %3112 = vmatpush1.msra.mxu0 0.0
  %3113 = vmatprep.subr.mxu0 0.0
  %3114 = vmatpush1.msra.mxu0 0.0
  %3115 = vmatprep.subr.mxu0 0.0
  %3116 = vmatpush1.msra.mxu0 0.0
  %3117 = vmatprep.subr.mxu0 0.0
  %3118 = vmatpush1.msra.mxu0 0.0
  %3119 = vmatprep.subr.mxu0 0.0
  %3120 = vmatpush1.msra.mxu0 0.0
  %3121 = vmatprep.subr.mxu0 0.0
  %3122 = vmatpush1.msra.mxu0 0.0
  %3123 = vmatprep.subr.mxu0 0.0
  %3124 = vmatpush1.msra.mxu0 0.0
  %3125 = vmatprep.subr.mxu0 0.0
  %3126 = vmatpush1.msra.mxu0 %v3090
  %3127 = vmatprep.subr.mxu0 0.0
  %3128 = vmatpush2.msra.mxu0 0.0
  %3129 = vmatprep.subr.mxu0 0.0
  %3130 = vmatpush2.msra.mxu0 0.0
  %3131 = vmatprep.subr.mxu0 0.0
  %3132 = vmatpush2.msra.mxu0 0.0
  %3133 = vmatprep.subr.mxu0 0.0
  %3134 = vmatpush2.msra.mxu0 0.0
  %3135 = vmatprep.subr.mxu0 0.0
  %3136 = vmatpush2.msra.mxu0 0.0
  %3137 = vmatprep.subr.mxu0 0.0
  %3138 = vmatpush2.msra.mxu0 0.0
  %3139 = vmatprep.subr.mxu0 0.0
  %3140 = vmatpush2.msra.mxu0 0.0
  %3141 = vmatprep.subr.mxu0 0.0
  %3142 = vmatpush2.msra.mxu0 0.0
  %3143 = vmatprep.subr.mxu0 0.0
  %3144 = vmatpush2.msra.mxu0 0.0
  %3145 = vmatprep.subr.mxu0 0.0
  %3146 = vmatpush2.msra.mxu0 0.0
  %3147 = vmatprep.subr.mxu0 0.0
  %3148 = vmatpush2.msra.mxu0 0.0
  %3149 = vmatprep.subr.mxu0 0.0
  %3150 = vmatpush2.msra.mxu0 0.0
  %3151 = vmatprep.subr.mxu0 0.0
  %3152 = vmatpush2.msra.mxu0 0.0
  %3153 = vmatprep.subr.mxu0 0.0
  %3154 = vmatpush2.msra.mxu0 0.0
  %3155 = vmatprep.subr.mxu0 0.0
  %3156 = vmatpush2.msra.mxu0 0.0
  %3157 = vmatprep.subr.mxu0 0.0
  %3158 = vmatpush2.msra.mxu0 0.0
  %3159 = vmatprep.mubr.f32.mxu0 0.0
  %3160 = vmatmul.mubr.f32.gmra.mxu0 %v3093
  %v3161 = vpop.f32.mrf.mxu0
  %v3162 = vadd.f32 0.0, %v3161
  %v3163 = vpop.f32.mrf.mxu0
  %3164 = vdwg.mxu0
  %v3166 = vsel %vm214, %v3162, 0
  %3168 = vmatprep.subr.mxu0 0.0
  %3169 = vmatpush1.msra.mxu0 0.0
  %3170 = vmatprep.subr.mxu0 0.0
  %3171 = vmatpush1.msra.mxu0 0.0
  %3172 = vmatprep.subr.mxu0 0.0
  %3173 = vmatpush1.msra.mxu0 0.0
  %3174 = vmatprep.subr.mxu0 0.0
  %3175 = vmatpush1.msra.mxu0 0.0
  %3176 = vmatprep.subr.mxu0 0.0
  %3177 = vmatpush1.msra.mxu0 0.0
  %3178 = vmatprep.subr.mxu0 0.0
  %3179 = vmatpush1.msra.mxu0 0.0
  %3180 = vmatprep.subr.mxu0 0.0
  %3181 = vmatpush1.msra.mxu0 0.0
  %3182 = vmatprep.subr.mxu0 0.0
  %3183 = vmatpush1.msra.mxu0 0.0
  %3184 = vmatprep.subr.mxu0 0.0
  %3185 = vmatpush1.msra.mxu0 0.0
  %3186 = vmatprep.subr.mxu0 0.0
  %3187 = vmatpush1.msra.mxu0 0.0
  %3188 = vmatprep.subr.mxu0 0.0
  %3189 = vmatpush1.msra.mxu0 0.0
  %3190 = vmatprep.subr.mxu0 0.0
  %3191 = vmatpush1.msra.mxu0 0.0
  %3192 = vmatprep.subr.mxu0 0.0
  %3193 = vmatpush1.msra.mxu0 0.0
  %3194 = vmatprep.subr.mxu0 0.0
  %3195 = vmatpush1.msra.mxu0 0.0
  %3196 = vmatprep.subr.mxu0 0.0
  %3197 = vmatpush1.msra.mxu0 0.0
  %3198 = vmatprep.subr.mxu0 0.0
  %3199 = vmatpush1.msra.mxu0 %v2523
  %3200 = vmatprep.subr.mxu0 0.0
  %3201 = vmatpush2.msra.mxu0 0.0
  %3202 = vmatprep.subr.mxu0 0.0
  %3203 = vmatpush2.msra.mxu0 0.0
  %3204 = vmatprep.subr.mxu0 0.0
  %3205 = vmatpush2.msra.mxu0 0.0
  %3206 = vmatprep.subr.mxu0 0.0
  %3207 = vmatpush2.msra.mxu0 0.0
  %3208 = vmatprep.subr.mxu0 0.0
  %3209 = vmatpush2.msra.mxu0 0.0
  %3210 = vmatprep.subr.mxu0 0.0
  %3211 = vmatpush2.msra.mxu0 0.0
  %3212 = vmatprep.subr.mxu0 0.0
  %3213 = vmatpush2.msra.mxu0 0.0
  %3214 = vmatprep.subr.mxu0 0.0
  %3215 = vmatpush2.msra.mxu0 0.0
  %3216 = vmatprep.subr.mxu0 0.0
  %3217 = vmatpush2.msra.mxu0 0.0
  %3218 = vmatprep.subr.mxu0 0.0
  %3219 = vmatpush2.msra.mxu0 0.0
  %3220 = vmatprep.subr.mxu0 0.0
  %3221 = vmatpush2.msra.mxu0 0.0
  %3222 = vmatprep.subr.mxu0 0.0
  %3223 = vmatpush2.msra.mxu0 0.0
  %3224 = vmatprep.subr.mxu0 0.0
  %3225 = vmatpush2.msra.mxu0 0.0
  %3226 = vmatprep.subr.mxu0 0.0
  %3227 = vmatpush2.msra.mxu0 0.0
  %3228 = vmatprep.subr.mxu0 0.0
  %3229 = vmatpush2.msra.mxu0 0.0
  %3230 = vmatprep.subr.mxu0 0.0
  %3231 = vmatpush2.msra.mxu0 0.0
  %3232 = vmatprep.mubr.f32.mxu0 0.0
  %3233 = vmatmul.mubr.f32.gmra.mxu0 %v3166
  %v3234 = vpop.f32.mrf.mxu0
  %v3235 = vadd.f32 0.0, %v3234
  %v3236 = vpop.f32.mrf.mxu0
  %3237 = vdwg.mxu0
  %v3238 = vadd.f32 %v2997, %v3235
  %3239 = vrot.lane.b32.xlu0 %v2512, 104
  %v3240 = vpop.permute.xlu0 %3239
  %3241 = vrot.lane.b32.xlu0 %v2512, 72
  %v3242 = vpop.permute.xlu0 %3241
  %v3243 = vsel %vm214, %v3240, 0
  %v3245 = vsel %vm214, %v3242, 0
  %3247 = vmatprep.subr.mxu0 0.0
  %3248 = vmatpush1.xpose.msra.mxu0 0.0
  %3249 = vmatprep.subr.mxu0 0.0
  %3250 = vmatpush1.xpose.msra.mxu0 0.0
  %3251 = vmatprep.subr.mxu0 0.0
  %3252 = vmatpush1.xpose.msra.mxu0 0.0
  %3253 = vmatprep.subr.mxu0 0.0
  %3254 = vmatpush1.xpose.msra.mxu0 0.0
  %3255 = vmatprep.subr.mxu0 0.0
  %3256 = vmatpush1.xpose.msra.mxu0 0.0
  %3257 = vmatprep.subr.mxu0 0.0
  %3258 = vmatpush1.xpose.msra.mxu0 0.0
  %3259 = vmatprep.subr.mxu0 0.0
  %3260 = vmatpush1.xpose.msra.mxu0 0.0
  %3261 = vmatprep.subr.mxu0 0.0
  %3262 = vmatpush1.xpose.msra.mxu0 0.0
  %3263 = vmatprep.subr.mxu0 0.0
  %3264 = vmatpush1.xpose.msra.mxu0 0.0
  %3265 = vmatprep.subr.mxu0 0.0
  %3266 = vmatpush1.xpose.msra.mxu0 0.0
  %3267 = vmatprep.subr.mxu0 0.0
  %3268 = vmatpush1.xpose.msra.mxu0 0.0
  %3269 = vmatprep.subr.mxu0 0.0
  %3270 = vmatpush1.xpose.msra.mxu0 0.0
  %3271 = vmatprep.subr.mxu0 0.0
  %3272 = vmatpush1.xpose.msra.mxu0 0.0
  %3273 = vmatprep.subr.mxu0 0.0
  %3274 = vmatpush1.xpose.msra.mxu0 0.0
  %3275 = vmatprep.subr.mxu0 0.0
  %3276 = vmatpush1.xpose.msra.mxu0 0.0
  %3277 = vmatprep.subr.mxu0 0.0
  %3278 = vmatpush1.xpose.msra.mxu0 %v3245
  %3279 = vmatprep.subr.mxu0 0.0
  %3280 = vmatpush2.xpose.msra.mxu0 0.0
  %3281 = vmatprep.subr.mxu0 0.0
  %3282 = vmatpush2.xpose.msra.mxu0 0.0
  %3283 = vmatprep.subr.mxu0 0.0
  %3284 = vmatpush2.xpose.msra.mxu0 0.0
  %3285 = vmatprep.subr.mxu0 0.0
  %3286 = vmatpush2.xpose.msra.mxu0 0.0
  %3287 = vmatprep.subr.mxu0 0.0
  %3288 = vmatpush2.xpose.msra.mxu0 0.0
  %3289 = vmatprep.subr.mxu0 0.0
  %3290 = vmatpush2.xpose.msra.mxu0 0.0
  %3291 = vmatprep.subr.mxu0 0.0
  %3292 = vmatpush2.xpose.msra.mxu0 0.0
  %3293 = vmatprep.subr.mxu0 0.0
  %3294 = vmatpush2.xpose.msra.mxu0 0.0
  %3295 = vmatprep.subr.mxu0 0.0
  %3296 = vmatpush2.xpose.msra.mxu0 0.0
  %3297 = vmatprep.subr.mxu0 0.0
  %3298 = vmatpush2.xpose.msra.mxu0 0.0
  %3299 = vmatprep.subr.mxu0 0.0
  %3300 = vmatpush2.xpose.msra.mxu0 0.0
  %3301 = vmatprep.subr.mxu0 0.0
  %3302 = vmatpush2.xpose.msra.mxu0 0.0
  %3303 = vmatprep.subr.mxu0 0.0
  %3304 = vmatpush2.xpose.msra.mxu0 0.0
  %3305 = vmatprep.subr.mxu0 0.0
  %3306 = vmatpush2.xpose.msra.mxu0 0.0
  %3307 = vmatprep.subr.mxu0 0.0
  %3308 = vmatpush2.xpose.msra.mxu0 0.0
  %3309 = vmatprep.subr.mxu0 0.0
  %3310 = vmatpush2.xpose.msra.mxu0 0.0
  %3311 = vmatprep.mubr.f32.mxu0 0.0
  %3312 = vmatmul.mubr.f32.gmra.mxu0 %v3243
  %v3313 = vpop.f32.mrf.mxu0
  %v3314 = vadd.f32 %v113, %v3313
  %v3315 = vpop.f32.mrf.mxu0
  %3316 = vdwg.mxu0
  %v3317 = vsel %vm214, %v3314, -inf
  %3318 = vmax.xlane.f32.xlu0 %v3317
  %v3319 = vpop.xlane.xlu0 %3318
  %v3320 = vsub.f32 %v3314, %v3319
  %v3321 = vmul.f32 %v3320, 1.442695
  %v3322 = vpow.pop %v3321
  %v3323 = vsel %vm214, %v3322, 0.0
  %3324 = vadd.xlane.f32.xlu0 %v3323
  %v3325 = vpop.xlane.xlu0 %3324
  %v3326 = vrcp.pop %v3325
  %v3327 = vmul.f32 %v3322, %v3326
  %3328 = vrot.lane.b32.xlu0 %v2512, 40
  %v3329 = vpop.permute.xlu0 %3328
  %v3332 = vsel %vm214, %v3327, 0
  %3334 = vmatprep.subr.mxu0 0.0
  %3335 = vmatpush1.msra.mxu0 0.0
  %3336 = vmatprep.subr.mxu0 0.0
  %3337 = vmatpush1.msra.mxu0 0.0
  %3338 = vmatprep.subr.mxu0 0.0
  %3339 = vmatpush1.msra.mxu0 0.0
  %3340 = vmatprep.subr.mxu0 0.0
  %3341 = vmatpush1.msra.mxu0 0.0
  %3342 = vmatprep.subr.mxu0 0.0
  %3343 = vmatpush1.msra.mxu0 0.0
  %3344 = vmatprep.subr.mxu0 0.0
  %3345 = vmatpush1.msra.mxu0 0.0
  %3346 = vmatprep.subr.mxu0 0.0
  %3347 = vmatpush1.msra.mxu0 0.0
  %3348 = vmatprep.subr.mxu0 0.0
  %3349 = vmatpush1.msra.mxu0 0.0
  %3350 = vmatprep.subr.mxu0 0.0
  %3351 = vmatpush1.msra.mxu0 0.0
  %3352 = vmatprep.subr.mxu0 0.0
  %3353 = vmatpush1.msra.mxu0 0.0
  %3354 = vmatprep.subr.mxu0 0.0
  %3355 = vmatpush1.msra.mxu0 0.0
  %3356 = vmatprep.subr.mxu0 0.0
  %3357 = vmatpush1.msra.mxu0 0.0
  %3358 = vmatprep.subr.mxu0 0.0
  %3359 = vmatpush1.msra.mxu0 0.0
  %3360 = vmatprep.subr.mxu0 0.0
  %3361 = vmatpush1.msra.mxu0 0.0
  %3362 = vmatprep.subr.mxu0 0.0
  %3363 = vmatpush1.msra.mxu0 0.0
  %3364 = vmatprep.subr.mxu0 0.0
  %3365 = vmatpush1.msra.mxu0 %v3329
  %3366 = vmatprep.subr.mxu0 0.0
  %3367 = vmatpush2.msra.mxu0 0.0
  %3368 = vmatprep.subr.mxu0 0.0
  %3369 = vmatpush2.msra.mxu0 0.0
  %3370 = vmatprep.subr.mxu0 0.0
  %3371 = vmatpush2.msra.mxu0 0.0
  %3372 = vmatprep.subr.mxu0 0.0
  %3373 = vmatpush2.msra.mxu0 0.0
  %3374 = vmatprep.subr.mxu0 0.0
  %3375 = vmatpush2.msra.mxu0 0.0
  %3376 = vmatprep.subr.mxu0 0.0
  %3377 = vmatpush2.msra.mxu0 0.0
  %3378 = vmatprep.subr.mxu0 0.0
  %3379 = vmatpush2.msra.mxu0 0.0
  %3380 = vmatprep.subr.mxu0 0.0
  %3381 = vmatpush2.msra.mxu0 0.0
  %3382 = vmatprep.subr.mxu0 0.0
  %3383 = vmatpush2.msra.mxu0 0.0
  %3384 = vmatprep.subr.mxu0 0.0
  %3385 = vmatpush2.msra.mxu0 0.0
  %3386 = vmatprep.subr.mxu0 0.0
  %3387 = vmatpush2.msra.mxu0 0.0
  %3388 = vmatprep.subr.mxu0 0.0
  %3389 = vmatpush2.msra.mxu0 0.0
  %3390 = vmatprep.subr.mxu0 0.0
  %3391 = vmatpush2.msra.mxu0 0.0
  %3392 = vmatprep.subr.mxu0 0.0
  %3393 = vmatpush2.msra.mxu0 0.0
  %3394 = vmatprep.subr.mxu0 0.0
  %3395 = vmatpush2.msra.mxu0 0.0
  %3396 = vmatprep.subr.mxu0 0.0
  %3397 = vmatpush2.msra.mxu0 0.0
  %3398 = vmatprep.mubr.f32.mxu0 0.0
  %3399 = vmatmul.mubr.f32.gmra.mxu0 %v3332
  %v3400 = vpop.f32.mrf.mxu0
  %v3401 = vadd.f32 0.0, %v3400
  %v3402 = vpop.f32.mrf.mxu0
  %3403 = vdwg.mxu0
  %v3405 = vsel %vm214, %v3401, 0
  %3407 = vmatprep.subr.mxu0 0.0
  %3408 = vmatpush1.msra.mxu0 0.0
  %3409 = vmatprep.subr.mxu0 0.0
  %3410 = vmatpush1.msra.mxu0 0.0
  %3411 = vmatprep.subr.mxu0 0.0
  %3412 = vmatpush1.msra.mxu0 0.0
  %3413 = vmatprep.subr.mxu0 0.0
  %3414 = vmatpush1.msra.mxu0 0.0
  %3415 = vmatprep.subr.mxu0 0.0
  %3416 = vmatpush1.msra.mxu0 0.0
  %3417 = vmatprep.subr.mxu0 0.0
  %3418 = vmatpush1.msra.mxu0 0.0
  %3419 = vmatprep.subr.mxu0 0.0
  %3420 = vmatpush1.msra.mxu0 0.0
  %3421 = vmatprep.subr.mxu0 0.0
  %3422 = vmatpush1.msra.mxu0 0.0
  %3423 = vmatprep.subr.mxu0 0.0
  %3424 = vmatpush1.msra.mxu0 0.0
  %3425 = vmatprep.subr.mxu0 0.0
  %3426 = vmatpush1.msra.mxu0 0.0
  %3427 = vmatprep.subr.mxu0 0.0
  %3428 = vmatpush1.msra.mxu0 0.0
  %3429 = vmatprep.subr.mxu0 0.0
  %3430 = vmatpush1.msra.mxu0 0.0
  %3431 = vmatprep.subr.mxu0 0.0
  %3432 = vmatpush1.msra.mxu0 0.0
  %3433 = vmatprep.subr.mxu0 0.0
  %3434 = vmatpush1.msra.mxu0 0.0
  %3435 = vmatprep.subr.mxu0 0.0
  %3436 = vmatpush1.msra.mxu0 0.0
  %3437 = vmatprep.subr.mxu0 0.0
  %3438 = vmatpush1.msra.mxu0 %v2524
  %3439 = vmatprep.subr.mxu0 0.0
  %3440 = vmatpush2.msra.mxu0 0.0
  %3441 = vmatprep.subr.mxu0 0.0
  %3442 = vmatpush2.msra.mxu0 0.0
  %3443 = vmatprep.subr.mxu0 0.0
  %3444 = vmatpush2.msra.mxu0 0.0
  %3445 = vmatprep.subr.mxu0 0.0
  %3446 = vmatpush2.msra.mxu0 0.0
  %3447 = vmatprep.subr.mxu0 0.0
  %3448 = vmatpush2.msra.mxu0 0.0
  %3449 = vmatprep.subr.mxu0 0.0
  %3450 = vmatpush2.msra.mxu0 0.0
  %3451 = vmatprep.subr.mxu0 0.0
  %3452 = vmatpush2.msra.mxu0 0.0
  %3453 = vmatprep.subr.mxu0 0.0
  %3454 = vmatpush2.msra.mxu0 0.0
  %3455 = vmatprep.subr.mxu0 0.0
  %3456 = vmatpush2.msra.mxu0 0.0
  %3457 = vmatprep.subr.mxu0 0.0
  %3458 = vmatpush2.msra.mxu0 0.0
  %3459 = vmatprep.subr.mxu0 0.0
  %3460 = vmatpush2.msra.mxu0 0.0
  %3461 = vmatprep.subr.mxu0 0.0
  %3462 = vmatpush2.msra.mxu0 0.0
  %3463 = vmatprep.subr.mxu0 0.0
  %3464 = vmatpush2.msra.mxu0 0.0
  %3465 = vmatprep.subr.mxu0 0.0
  %3466 = vmatpush2.msra.mxu0 0.0
  %3467 = vmatprep.subr.mxu0 0.0
  %3468 = vmatpush2.msra.mxu0 0.0
  %3469 = vmatprep.subr.mxu0 0.0
  %3470 = vmatpush2.msra.mxu0 0.0
  %3471 = vmatprep.mubr.f32.mxu0 0.0
  %3472 = vmatmul.mubr.f32.gmra.mxu0 %v3405
  %v3473 = vpop.f32.mrf.mxu0
  %v3474 = vadd.f32 0.0, %v3473
  %v3475 = vpop.f32.mrf.mxu0
  %3476 = vdwg.mxu0
  %v3477 = vadd.f32 %v3238, %v3474
  %3479 = vrot.lane.b32.xlu0 %v2517, 96
  %v3480 = vpop.permute.xlu0 %3479
  %v3481 = vsel %vm214, %v2517, 0
  %v3483 = vsel %vm214, %v3480, 0
  %3485 = vmatprep.subr.mxu0 0.0
  %3486 = vmatpush1.xpose.msra.mxu0 0.0
  %3487 = vmatprep.subr.mxu0 0.0
  %3488 = vmatpush1.xpose.msra.mxu0 0.0
  %3489 = vmatprep.subr.mxu0 0.0
  %3490 = vmatpush1.xpose.msra.mxu0 0.0
  %3491 = vmatprep.subr.mxu0 0.0
  %3492 = vmatpush1.xpose.msra.mxu0 0.0
  %3493 = vmatprep.subr.mxu0 0.0
  %3494 = vmatpush1.xpose.msra.mxu0 0.0
  %3495 = vmatprep.subr.mxu0 0.0
  %3496 = vmatpush1.xpose.msra.mxu0 0.0
  %3497 = vmatprep.subr.mxu0 0.0
  %3498 = vmatpush1.xpose.msra.mxu0 0.0
  %3499 = vmatprep.subr.mxu0 0.0
  %3500 = vmatpush1.xpose.msra.mxu0 0.0
  %3501 = vmatprep.subr.mxu0 0.0
  %3502 = vmatpush1.xpose.msra.mxu0 0.0
  %3503 = vmatprep.subr.mxu0 0.0
  %3504 = vmatpush1.xpose.msra.mxu0 0.0
  %3505 = vmatprep.subr.mxu0 0.0
  %3506 = vmatpush1.xpose.msra.mxu0 0.0
  %3507 = vmatprep.subr.mxu0 0.0
  %3508 = vmatpush1.xpose.msra.mxu0 0.0
  %3509 = vmatprep.subr.mxu0 0.0
  %3510 = vmatpush1.xpose.msra.mxu0 0.0
  %3511 = vmatprep.subr.mxu0 0.0
  %3512 = vmatpush1.xpose.msra.mxu0 0.0
  %3513 = vmatprep.subr.mxu0 0.0
  %3514 = vmatpush1.xpose.msra.mxu0 0.0
  %3515 = vmatprep.subr.mxu0 0.0
  %3516 = vmatpush1.xpose.msra.mxu0 %v3483
  %3517 = vmatprep.subr.mxu0 0.0
  %3518 = vmatpush2.xpose.msra.mxu0 0.0
  %3519 = vmatprep.subr.mxu0 0.0
  %3520 = vmatpush2.xpose.msra.mxu0 0.0
  %3521 = vmatprep.subr.mxu0 0.0
  %3522 = vmatpush2.xpose.msra.mxu0 0.0
  %3523 = vmatprep.subr.mxu0 0.0
  %3524 = vmatpush2.xpose.msra.mxu0 0.0
  %3525 = vmatprep.subr.mxu0 0.0
  %3526 = vmatpush2.xpose.msra.mxu0 0.0
  %3527 = vmatprep.subr.mxu0 0.0
  %3528 = vmatpush2.xpose.msra.mxu0 0.0
  %3529 = vmatprep.subr.mxu0 0.0
  %3530 = vmatpush2.xpose.msra.mxu0 0.0
  %3531 = vmatprep.subr.mxu0 0.0
  %3532 = vmatpush2.xpose.msra.mxu0 0.0
  %3533 = vmatprep.subr.mxu0 0.0
  %3534 = vmatpush2.xpose.msra.mxu0 0.0
  %3535 = vmatprep.subr.mxu0 0.0
  %3536 = vmatpush2.xpose.msra.mxu0 0.0
  %3537 = vmatprep.subr.mxu0 0.0
  %3538 = vmatpush2.xpose.msra.mxu0 0.0
  %3539 = vmatprep.subr.mxu0 0.0
  %3540 = vmatpush2.xpose.msra.mxu0 0.0
  %3541 = vmatprep.subr.mxu0 0.0
  %3542 = vmatpush2.xpose.msra.mxu0 0.0
  %3543 = vmatprep.subr.mxu0 0.0
  %3544 = vmatpush2.xpose.msra.mxu0 0.0
  %3545 = vmatprep.subr.mxu0 0.0
  %3546 = vmatpush2.xpose.msra.mxu0 0.0
  %3547 = vmatprep.subr.mxu0 0.0
  %3548 = vmatpush2.xpose.msra.mxu0 0.0
  %3549 = vmatprep.mubr.f32.mxu0 0.0
  %3550 = vmatmul.mubr.f32.gmra.mxu0 %v3481
  %v3551 = vpop.f32.mrf.mxu0
  %v3552 = vadd.f32 %v114, %v3551
  %v3553 = vpop.f32.mrf.mxu0
  %3554 = vdwg.mxu0
  %v3555 = vsel %vm214, %v3552, -inf
  %3556 = vmax.xlane.f32.xlu0 %v3555
  %v3557 = vpop.xlane.xlu0 %3556
  %v3558 = vsub.f32 %v3552, %v3557
  %v3559 = vmul.f32 %v3558, 1.442695
  %v3560 = vpow.pop %v3559
  %v3561 = vsel %vm214, %v3560, 0.0
  %3562 = vadd.xlane.f32.xlu0 %v3561
  %v3563 = vpop.xlane.xlu0 %3562
  %v3564 = vrcp.pop %v3563
  %v3565 = vmul.f32 %v3560, %v3564
  %3566 = vrot.lane.b32.xlu0 %v2517, 64
  %v3567 = vpop.permute.xlu0 %3566
  %v3570 = vsel %vm214, %v3565, 0
  %3572 = vmatprep.subr.mxu0 0.0
  %3573 = vmatpush1.msra.mxu0 0.0
  %3574 = vmatprep.subr.mxu0 0.0
  %3575 = vmatpush1.msra.mxu0 0.0
  %3576 = vmatprep.subr.mxu0 0.0
  %3577 = vmatpush1.msra.mxu0 0.0
  %3578 = vmatprep.subr.mxu0 0.0
  %3579 = vmatpush1.msra.mxu0 0.0
  %3580 = vmatprep.subr.mxu0 0.0
  %3581 = vmatpush1.msra.mxu0 0.0
  %3582 = vmatprep.subr.mxu0 0.0
  %3583 = vmatpush1.msra.mxu0 0.0
  %3584 = vmatprep.subr.mxu0 0.0
  %3585 = vmatpush1.msra.mxu0 0.0
  %3586 = vmatprep.subr.mxu0 0.0
  %3587 = vmatpush1.msra.mxu0 0.0
  %3588 = vmatprep.subr.mxu0 0.0
  %3589 = vmatpush1.msra.mxu0 0.0
  %3590 = vmatprep.subr.mxu0 0.0
  %3591 = vmatpush1.msra.mxu0 0.0
  %3592 = vmatprep.subr.mxu0 0.0
  %3593 = vmatpush1.msra.mxu0 0.0
  %3594 = vmatprep.subr.mxu0 0.0
  %3595 = vmatpush1.msra.mxu0 0.0
  %3596 = vmatprep.subr.mxu0 0.0
  %3597 = vmatpush1.msra.mxu0 0.0
  %3598 = vmatprep.subr.mxu0 0.0
  %3599 = vmatpush1.msra.mxu0 0.0
  %3600 = vmatprep.subr.mxu0 0.0
  %3601 = vmatpush1.msra.mxu0 0.0
  %3602 = vmatprep.subr.mxu0 0.0
  %3603 = vmatpush1.msra.mxu0 %v3567
  %3604 = vmatprep.subr.mxu0 0.0
  %3605 = vmatpush2.msra.mxu0 0.0
  %3606 = vmatprep.subr.mxu0 0.0
  %3607 = vmatpush2.msra.mxu0 0.0
  %3608 = vmatprep.subr.mxu0 0.0
  %3609 = vmatpush2.msra.mxu0 0.0
  %3610 = vmatprep.subr.mxu0 0.0
  %3611 = vmatpush2.msra.mxu0 0.0
  %3612 = vmatprep.subr.mxu0 0.0
  %3613 = vmatpush2.msra.mxu0 0.0
  %3614 = vmatprep.subr.mxu0 0.0
  %3615 = vmatpush2.msra.mxu0 0.0
  %3616 = vmatprep.subr.mxu0 0.0
  %3617 = vmatpush2.msra.mxu0 0.0
  %3618 = vmatprep.subr.mxu0 0.0
  %3619 = vmatpush2.msra.mxu0 0.0
  %3620 = vmatprep.subr.mxu0 0.0
  %3621 = vmatpush2.msra.mxu0 0.0
  %3622 = vmatprep.subr.mxu0 0.0
  %3623 = vmatpush2.msra.mxu0 0.0
  %3624 = vmatprep.subr.mxu0 0.0
  %3625 = vmatpush2.msra.mxu0 0.0
  %3626 = vmatprep.subr.mxu0 0.0
  %3627 = vmatpush2.msra.mxu0 0.0
  %3628 = vmatprep.subr.mxu0 0.0
  %3629 = vmatpush2.msra.mxu0 0.0
  %3630 = vmatprep.subr.mxu0 0.0
  %3631 = vmatpush2.msra.mxu0 0.0
  %3632 = vmatprep.subr.mxu0 0.0
  %3633 = vmatpush2.msra.mxu0 0.0
  %3634 = vmatprep.subr.mxu0 0.0
  %3635 = vmatpush2.msra.mxu0 0.0
  %3636 = vmatprep.mubr.f32.mxu0 0.0
  %3637 = vmatmul.mubr.f32.gmra.mxu0 %v3570
  %v3638 = vpop.f32.mrf.mxu0
  %v3639 = vadd.f32 0.0, %v3638
  %v3640 = vpop.f32.mrf.mxu0
  %3641 = vdwg.mxu0
  %3642 = vrot.lane.b32.xlu0 %v2517, 120
  %v3643 = vpop.permute.xlu0 %3642
  %3644 = vrot.lane.b32.xlu0 %v2517, 88
  %v3645 = vpop.permute.xlu0 %3644
  %v3646 = vsel %vm214, %v3643, 0
  %v3648 = vsel %vm214, %v3645, 0
  %3650 = vmatprep.subr.mxu0 0.0
  %3651 = vmatpush1.xpose.msra.mxu0 0.0
  %3652 = vmatprep.subr.mxu0 0.0
  %3653 = vmatpush1.xpose.msra.mxu0 0.0
  %3654 = vmatprep.subr.mxu0 0.0
  %3655 = vmatpush1.xpose.msra.mxu0 0.0
  %3656 = vmatprep.subr.mxu0 0.0
  %3657 = vmatpush1.xpose.msra.mxu0 0.0
  %3658 = vmatprep.subr.mxu0 0.0
  %3659 = vmatpush1.xpose.msra.mxu0 0.0
  %3660 = vmatprep.subr.mxu0 0.0
  %3661 = vmatpush1.xpose.msra.mxu0 0.0
  %3662 = vmatprep.subr.mxu0 0.0
  %3663 = vmatpush1.xpose.msra.mxu0 0.0
  %3664 = vmatprep.subr.mxu0 0.0
  %3665 = vmatpush1.xpose.msra.mxu0 0.0
  %3666 = vmatprep.subr.mxu0 0.0
  %3667 = vmatpush1.xpose.msra.mxu0 0.0
  %3668 = vmatprep.subr.mxu0 0.0
  %3669 = vmatpush1.xpose.msra.mxu0 0.0
  %3670 = vmatprep.subr.mxu0 0.0
  %3671 = vmatpush1.xpose.msra.mxu0 0.0
  %3672 = vmatprep.subr.mxu0 0.0
  %3673 = vmatpush1.xpose.msra.mxu0 0.0
  %3674 = vmatprep.subr.mxu0 0.0
  %3675 = vmatpush1.xpose.msra.mxu0 0.0
  %3676 = vmatprep.subr.mxu0 0.0
  %3677 = vmatpush1.xpose.msra.mxu0 0.0
  %3678 = vmatprep.subr.mxu0 0.0
  %3679 = vmatpush1.xpose.msra.mxu0 0.0
  %3680 = vmatprep.subr.mxu0 0.0
  %3681 = vmatpush1.xpose.msra.mxu0 %v3648
  %3682 = vmatprep.subr.mxu0 0.0
  %3683 = vmatpush2.xpose.msra.mxu0 0.0
  %3684 = vmatprep.subr.mxu0 0.0
  %3685 = vmatpush2.xpose.msra.mxu0 0.0
  %3686 = vmatprep.subr.mxu0 0.0
  %3687 = vmatpush2.xpose.msra.mxu0 0.0
  %3688 = vmatprep.subr.mxu0 0.0
  %3689 = vmatpush2.xpose.msra.mxu0 0.0
  %3690 = vmatprep.subr.mxu0 0.0
  %3691 = vmatpush2.xpose.msra.mxu0 0.0
  %3692 = vmatprep.subr.mxu0 0.0
  %3693 = vmatpush2.xpose.msra.mxu0 0.0
  %3694 = vmatprep.subr.mxu0 0.0
  %3695 = vmatpush2.xpose.msra.mxu0 0.0
  %3696 = vmatprep.subr.mxu0 0.0
  %3697 = vmatpush2.xpose.msra.mxu0 0.0
  %3698 = vmatprep.subr.mxu0 0.0
  %3699 = vmatpush2.xpose.msra.mxu0 0.0
  %3700 = vmatprep.subr.mxu0 0.0
  %3701 = vmatpush2.xpose.msra.mxu0 0.0
  %3702 = vmatprep.subr.mxu0 0.0
  %3703 = vmatpush2.xpose.msra.mxu0 0.0
  %3704 = vmatprep.subr.mxu0 0.0
  %3705 = vmatpush2.xpose.msra.mxu0 0.0
  %3706 = vmatprep.subr.mxu0 0.0
  %3707 = vmatpush2.xpose.msra.mxu0 0.0
  %3708 = vmatprep.subr.mxu0 0.0
  %3709 = vmatpush2.xpose.msra.mxu0 0.0
  %3710 = vmatprep.subr.mxu0 0.0
  %3711 = vmatpush2.xpose.msra.mxu0 0.0
  %3712 = vmatprep.subr.mxu0 0.0
  %3713 = vmatpush2.xpose.msra.mxu0 0.0
  %3714 = vmatprep.mubr.f32.mxu0 0.0
  %3715 = vmatmul.mubr.f32.gmra.mxu0 %v3646
  %v3716 = vpop.f32.mrf.mxu0
  %v3717 = vadd.f32 %v114, %v3716
  %v3718 = vpop.f32.mrf.mxu0
  %3719 = vdwg.mxu0
  %v3720 = vsel %vm214, %v3717, -inf
  %3721 = vmax.xlane.f32.xlu0 %v3720
  %v3722 = vpop.xlane.xlu0 %3721
  %v3723 = vsub.f32 %v3717, %v3722
  %v3724 = vmul.f32 %v3723, 1.442695
  %v3725 = vpow.pop %v3724
  %v3726 = vsel %vm214, %v3725, 0.0
  %3727 = vadd.xlane.f32.xlu0 %v3726
  %v3728 = vpop.xlane.xlu0 %3727
  %v3729 = vrcp.pop %v3728
  %v3730 = vmul.f32 %v3725, %v3729
  %3731 = vrot.lane.b32.xlu0 %v2517, 56
  %v3732 = vpop.permute.xlu0 %3731
  %v3735 = vsel %vm214, %v3730, 0
  %3737 = vmatprep.subr.mxu0 0.0
  %3738 = vmatpush1.msra.mxu0 0.0
  %3739 = vmatprep.subr.mxu0 0.0
  %3740 = vmatpush1.msra.mxu0 0.0
  %3741 = vmatprep.subr.mxu0 0.0
  %3742 = vmatpush1.msra.mxu0 0.0
  %3743 = vmatprep.subr.mxu0 0.0
  %3744 = vmatpush1.msra.mxu0 0.0
  %3745 = vmatprep.subr.mxu0 0.0
  %3746 = vmatpush1.msra.mxu0 0.0
  %3747 = vmatprep.subr.mxu0 0.0
  %3748 = vmatpush1.msra.mxu0 0.0
  %3749 = vmatprep.subr.mxu0 0.0
  %3750 = vmatpush1.msra.mxu0 0.0
  %3751 = vmatprep.subr.mxu0 0.0
  %3752 = vmatpush1.msra.mxu0 0.0
  %3753 = vmatprep.subr.mxu0 0.0
  %3754 = vmatpush1.msra.mxu0 0.0
  %3755 = vmatprep.subr.mxu0 0.0
  %3756 = vmatpush1.msra.mxu0 0.0
  %3757 = vmatprep.subr.mxu0 0.0
  %3758 = vmatpush1.msra.mxu0 0.0
  %3759 = vmatprep.subr.mxu0 0.0
  %3760 = vmatpush1.msra.mxu0 0.0
  %3761 = vmatprep.subr.mxu0 0.0
  %3762 = vmatpush1.msra.mxu0 0.0
  %3763 = vmatprep.subr.mxu0 0.0
  %3764 = vmatpush1.msra.mxu0 0.0
  %3765 = vmatprep.subr.mxu0 0.0
  %3766 = vmatpush1.msra.mxu0 0.0
  %3767 = vmatprep.subr.mxu0 0.0
  %3768 = vmatpush1.msra.mxu0 %v3732
  %3769 = vmatprep.subr.mxu0 0.0
  %3770 = vmatpush2.msra.mxu0 0.0
  %3771 = vmatprep.subr.mxu0 0.0
  %3772 = vmatpush2.msra.mxu0 0.0
  %3773 = vmatprep.subr.mxu0 0.0
  %3774 = vmatpush2.msra.mxu0 0.0
  %3775 = vmatprep.subr.mxu0 0.0
  %3776 = vmatpush2.msra.mxu0 0.0
  %3777 = vmatprep.subr.mxu0 0.0
  %3778 = vmatpush2.msra.mxu0 0.0
  %3779 = vmatprep.subr.mxu0 0.0
  %3780 = vmatpush2.msra.mxu0 0.0
  %3781 = vmatprep.subr.mxu0 0.0
  %3782 = vmatpush2.msra.mxu0 0.0
  %3783 = vmatprep.subr.mxu0 0.0
  %3784 = vmatpush2.msra.mxu0 0.0
  %3785 = vmatprep.subr.mxu0 0.0
  %3786 = vmatpush2.msra.mxu0 0.0
  %3787 = vmatprep.subr.mxu0 0.0
  %3788 = vmatpush2.msra.mxu0 0.0
  %3789 = vmatprep.subr.mxu0 0.0
  %3790 = vmatpush2.msra.mxu0 0.0
  %3791 = vmatprep.subr.mxu0 0.0
  %3792 = vmatpush2.msra.mxu0 0.0
  %3793 = vmatprep.subr.mxu0 0.0
  %3794 = vmatpush2.msra.mxu0 0.0
  %3795 = vmatprep.subr.mxu0 0.0
  %3796 = vmatpush2.msra.mxu0 0.0
  %3797 = vmatprep.subr.mxu0 0.0
  %3798 = vmatpush2.msra.mxu0 0.0
  %3799 = vmatprep.subr.mxu0 0.0
  %3800 = vmatpush2.msra.mxu0 0.0
  %3801 = vmatprep.mubr.f32.mxu0 0.0
  %3802 = vmatmul.mubr.f32.gmra.mxu0 %v3735
  %v3803 = vpop.f32.mrf.mxu0
  %v3804 = vadd.f32 0.0, %v3803
  %v3805 = vpop.f32.mrf.mxu0
  %3806 = vdwg.mxu0
  %v3808 = vsel %vm214, %v3804, 0
  %3810 = vmatprep.subr.mxu0 0.0
  %3811 = vmatpush1.msra.mxu0 0.0
  %3812 = vmatprep.subr.mxu0 0.0
  %3813 = vmatpush1.msra.mxu0 0.0
  %3814 = vmatprep.subr.mxu0 0.0
  %3815 = vmatpush1.msra.mxu0 0.0
  %3816 = vmatprep.subr.mxu0 0.0
  %3817 = vmatpush1.msra.mxu0 0.0
  %3818 = vmatprep.subr.mxu0 0.0
  %3819 = vmatpush1.msra.mxu0 0.0
  %3820 = vmatprep.subr.mxu0 0.0
  %3821 = vmatpush1.msra.mxu0 0.0
  %3822 = vmatprep.subr.mxu0 0.0
  %3823 = vmatpush1.msra.mxu0 0.0
  %3824 = vmatprep.subr.mxu0 0.0
  %3825 = vmatpush1.msra.mxu0 0.0
  %3826 = vmatprep.subr.mxu0 0.0
  %3827 = vmatpush1.msra.mxu0 0.0
  %3828 = vmatprep.subr.mxu0 0.0
  %3829 = vmatpush1.msra.mxu0 0.0
  %3830 = vmatprep.subr.mxu0 0.0
  %3831 = vmatpush1.msra.mxu0 0.0
  %3832 = vmatprep.subr.mxu0 0.0
  %3833 = vmatpush1.msra.mxu0 0.0
  %3834 = vmatprep.subr.mxu0 0.0
  %3835 = vmatpush1.msra.mxu0 0.0
  %3836 = vmatprep.subr.mxu0 0.0
  %3837 = vmatpush1.msra.mxu0 0.0
  %3838 = vmatprep.subr.mxu0 0.0
  %3839 = vmatpush1.msra.mxu0 0.0
  %3840 = vmatprep.subr.mxu0 0.0
  %3841 = vmatpush1.msra.mxu0 %v2522
  %3842 = vmatprep.subr.mxu0 0.0
  %3843 = vmatpush2.msra.mxu0 0.0
  %3844 = vmatprep.subr.mxu0 0.0
  %3845 = vmatpush2.msra.mxu0 0.0
  %3846 = vmatprep.subr.mxu0 0.0
  %3847 = vmatpush2.msra.mxu0 0.0
  %3848 = vmatprep.subr.mxu0 0.0
  %3849 = vmatpush2.msra.mxu0 0.0
  %3850 = vmatprep.subr.mxu0 0.0
  %3851 = vmatpush2.msra.mxu0 0.0
  %3852 = vmatprep.subr.mxu0 0.0
  %3853 = vmatpush2.msra.mxu0 0.0
  %3854 = vmatprep.subr.mxu0 0.0
  %3855 = vmatpush2.msra.mxu0 0.0
  %3856 = vmatprep.subr.mxu0 0.0
  %3857 = vmatpush2.msra.mxu0 0.0
  %3858 = vmatprep.subr.mxu0 0.0
  %3859 = vmatpush2.msra.mxu0 0.0
  %3860 = vmatprep.subr.mxu0 0.0
  %3861 = vmatpush2.msra.mxu0 0.0
  %3862 = vmatprep.subr.mxu0 0.0
  %3863 = vmatpush2.msra.mxu0 0.0
  %3864 = vmatprep.subr.mxu0 0.0
  %3865 = vmatpush2.msra.mxu0 0.0
  %3866 = vmatprep.subr.mxu0 0.0
  %3867 = vmatpush2.msra.mxu0 0.0
  %3868 = vmatprep.subr.mxu0 0.0
  %3869 = vmatpush2.msra.mxu0 0.0
  %3870 = vmatprep.subr.mxu0 0.0
  %3871 = vmatpush2.msra.mxu0 0.0
  %3872 = vmatprep.subr.mxu0 0.0
  %3873 = vmatpush2.msra.mxu0 0.0
  %3874 = vmatprep.mubr.f32.mxu0 0.0
  %3875 = vmatmul.mubr.f32.gmra.mxu0 %v3808
  %v3876 = vpop.f32.mrf.mxu0
  %v3877 = vadd.f32 0.0, %v3876
  %v3878 = vpop.f32.mrf.mxu0
  %3879 = vdwg.mxu0
  %v3881 = vsel %vm214, %v3639, 0
  %3883 = vmatprep.subr.mxu0 0.0
  %3884 = vmatpush1.msra.mxu0 0.0
  %3885 = vmatprep.subr.mxu0 0.0
  %3886 = vmatpush1.msra.mxu0 0.0
  %3887 = vmatprep.subr.mxu0 0.0
  %3888 = vmatpush1.msra.mxu0 0.0
  %3889 = vmatprep.subr.mxu0 0.0
  %3890 = vmatpush1.msra.mxu0 0.0
  %3891 = vmatprep.subr.mxu0 0.0
  %3892 = vmatpush1.msra.mxu0 0.0
  %3893 = vmatprep.subr.mxu0 0.0
  %3894 = vmatpush1.msra.mxu0 0.0
  %3895 = vmatprep.subr.mxu0 0.0
  %3896 = vmatpush1.msra.mxu0 0.0
  %3897 = vmatprep.subr.mxu0 0.0
  %3898 = vmatpush1.msra.mxu0 0.0
  %3899 = vmatprep.subr.mxu0 0.0
  %3900 = vmatpush1.msra.mxu0 0.0
  %3901 = vmatprep.subr.mxu0 0.0
  %3902 = vmatpush1.msra.mxu0 0.0
  %3903 = vmatprep.subr.mxu0 0.0
  %3904 = vmatpush1.msra.mxu0 0.0
  %3905 = vmatprep.subr.mxu0 0.0
  %3906 = vmatpush1.msra.mxu0 0.0
  %3907 = vmatprep.subr.mxu0 0.0
  %3908 = vmatpush1.msra.mxu0 0.0
  %3909 = vmatprep.subr.mxu0 0.0
  %3910 = vmatpush1.msra.mxu0 0.0
  %3911 = vmatprep.subr.mxu0 0.0
  %3912 = vmatpush1.msra.mxu0 0.0
  %3913 = vmatprep.subr.mxu0 0.0
  %3914 = vmatpush1.msra.mxu0 %v2521
  %3915 = vmatprep.subr.mxu0 0.0
  %3916 = vmatpush2.msra.mxu0 0.0
  %3917 = vmatprep.subr.mxu0 0.0
  %3918 = vmatpush2.msra.mxu0 0.0
  %3919 = vmatprep.subr.mxu0 0.0
  %3920 = vmatpush2.msra.mxu0 0.0
  %3921 = vmatprep.subr.mxu0 0.0
  %3922 = vmatpush2.msra.mxu0 0.0
  %3923 = vmatprep.subr.mxu0 0.0
  %3924 = vmatpush2.msra.mxu0 0.0
  %3925 = vmatprep.subr.mxu0 0.0
  %3926 = vmatpush2.msra.mxu0 0.0
  %3927 = vmatprep.subr.mxu0 0.0
  %3928 = vmatpush2.msra.mxu0 0.0
  %3929 = vmatprep.subr.mxu0 0.0
  %3930 = vmatpush2.msra.mxu0 0.0
  %3931 = vmatprep.subr.mxu0 0.0
  %3932 = vmatpush2.msra.mxu0 0.0
  %3933 = vmatprep.subr.mxu0 0.0
  %3934 = vmatpush2.msra.mxu0 0.0
  %3935 = vmatprep.subr.mxu0 0.0
  %3936 = vmatpush2.msra.mxu0 0.0
  %3937 = vmatprep.subr.mxu0 0.0
  %3938 = vmatpush2.msra.mxu0 0.0
  %3939 = vmatprep.subr.mxu0 0.0
  %3940 = vmatpush2.msra.mxu0 0.0
  %3941 = vmatprep.subr.mxu0 0.0
  %3942 = vmatpush2.msra.mxu0 0.0
  %3943 = vmatprep.subr.mxu0 0.0
  %3944 = vmatpush2.msra.mxu0 0.0
  %3945 = vmatprep.subr.mxu0 0.0
  %3946 = vmatpush2.msra.mxu0 0.0
  %3947 = vmatprep.mubr.f32.mxu0 0.0
  %3948 = vmatmul.mubr.f32.gmra.mxu0 %v3881
  %v3949 = vpop.f32.mrf.mxu0
  %v3950 = vadd.f32 %v3877, %v3949
  %v3951 = vpop.f32.mrf.mxu0
  %3952 = vdwg.mxu0
  %3953 = vrot.lane.b32.xlu0 %v2517, 112
  %v3954 = vpop.permute.xlu0 %3953
  %3955 = vrot.lane.b32.xlu0 %v2517, 80
  %v3956 = vpop.permute.xlu0 %3955
  %v3957 = vsel %vm214, %v3954, 0
  %v3959 = vsel %vm214, %v3956, 0
  %3961 = vmatprep.subr.mxu0 0.0
  %3962 = vmatpush1.xpose.msra.mxu0 0.0
  %3963 = vmatprep.subr.mxu0 0.0
  %3964 = vmatpush1.xpose.msra.mxu0 0.0
  %3965 = vmatprep.subr.mxu0 0.0
  %3966 = vmatpush1.xpose.msra.mxu0 0.0
  %3967 = vmatprep.subr.mxu0 0.0
  %3968 = vmatpush1.xpose.msra.mxu0 0.0
  %3969 = vmatprep.subr.mxu0 0.0
  %3970 = vmatpush1.xpose.msra.mxu0 0.0
  %3971 = vmatprep.subr.mxu0 0.0
  %3972 = vmatpush1.xpose.msra.mxu0 0.0
  %3973 = vmatprep.subr.mxu0 0.0
  %3974 = vmatpush1.xpose.msra.mxu0 0.0
  %3975 = vmatprep.subr.mxu0 0.0
  %3976 = vmatpush1.xpose.msra.mxu0 0.0
  %3977 = vmatprep.subr.mxu0 0.0
  %3978 = vmatpush1.xpose.msra.mxu0 0.0
  %3979 = vmatprep.subr.mxu0 0.0
  %3980 = vmatpush1.xpose.msra.mxu0 0.0
  %3981 = vmatprep.subr.mxu0 0.0
  %3982 = vmatpush1.xpose.msra.mxu0 0.0
  %3983 = vmatprep.subr.mxu0 0.0
  %3984 = vmatpush1.xpose.msra.mxu0 0.0
  %3985 = vmatprep.subr.mxu0 0.0
  %3986 = vmatpush1.xpose.msra.mxu0 0.0
  %3987 = vmatprep.subr.mxu0 0.0
  %3988 = vmatpush1.xpose.msra.mxu0 0.0
  %3989 = vmatprep.subr.mxu0 0.0
  %3990 = vmatpush1.xpose.msra.mxu0 0.0
  %3991 = vmatprep.subr.mxu0 0.0
  %3992 = vmatpush1.xpose.msra.mxu0 %v3959
  %3993 = vmatprep.subr.mxu0 0.0
  %3994 = vmatpush2.xpose.msra.mxu0 0.0
  %3995 = vmatprep.subr.mxu0 0.0
  %3996 = vmatpush2.xpose.msra.mxu0 0.0
  %3997 = vmatprep.subr.mxu0 0.0
  %3998 = vmatpush2.xpose.msra.mxu0 0.0
  %3999 = vmatprep.subr.mxu0 0.0
  %4000 = vmatpush2.xpose.msra.mxu0 0.0
  %4001 = vmatprep.subr.mxu0 0.0
  %4002 = vmatpush2.xpose.msra.mxu0 0.0
  %4003 = vmatprep.subr.mxu0 0.0
  %4004 = vmatpush2.xpose.msra.mxu0 0.0
  %4005 = vmatprep.subr.mxu0 0.0
  %4006 = vmatpush2.xpose.msra.mxu0 0.0
  %4007 = vmatprep.subr.mxu0 0.0
  %4008 = vmatpush2.xpose.msra.mxu0 0.0
  %4009 = vmatprep.subr.mxu0 0.0
  %4010 = vmatpush2.xpose.msra.mxu0 0.0
  %4011 = vmatprep.subr.mxu0 0.0
  %4012 = vmatpush2.xpose.msra.mxu0 0.0
  %4013 = vmatprep.subr.mxu0 0.0
  %4014 = vmatpush2.xpose.msra.mxu0 0.0
  %4015 = vmatprep.subr.mxu0 0.0
  %4016 = vmatpush2.xpose.msra.mxu0 0.0
  %4017 = vmatprep.subr.mxu0 0.0
  %4018 = vmatpush2.xpose.msra.mxu0 0.0
  %4019 = vmatprep.subr.mxu0 0.0
  %4020 = vmatpush2.xpose.msra.mxu0 0.0
  %4021 = vmatprep.subr.mxu0 0.0
  %4022 = vmatpush2.xpose.msra.mxu0 0.0
  %4023 = vmatprep.subr.mxu0 0.0
  %4024 = vmatpush2.xpose.msra.mxu0 0.0
  %4025 = vmatprep.mubr.f32.mxu0 0.0
  %4026 = vmatmul.mubr.f32.gmra.mxu0 %v3957
  %v4027 = vpop.f32.mrf.mxu0
  %v4028 = vadd.f32 %v114, %v4027
  %v4029 = vpop.f32.mrf.mxu0
  %4030 = vdwg.mxu0
  %v4031 = vsel %vm214, %v4028, -inf
  %4032 = vmax.xlane.f32.xlu0 %v4031
  %v4033 = vpop.xlane.xlu0 %4032
  %v4034 = vsub.f32 %v4028, %v4033
  %v4035 = vmul.f32 %v4034, 1.442695
  %v4036 = vpow.pop %v4035
  %v4037 = vsel %vm214, %v4036, 0.0
  %4038 = vadd.xlane.f32.xlu0 %v4037
  %v4039 = vpop.xlane.xlu0 %4038
  %v4040 = vrcp.pop %v4039
  %v4041 = vmul.f32 %v4036, %v4040
  %4042 = vrot.lane.b32.xlu0 %v2517, 48
  %v4043 = vpop.permute.xlu0 %4042
  %v4046 = vsel %vm214, %v4041, 0
  %4048 = vmatprep.subr.mxu0 0.0
  %4049 = vmatpush1.msra.mxu0 0.0
  %4050 = vmatprep.subr.mxu0 0.0
  %4051 = vmatpush1.msra.mxu0 0.0
  %4052 = vmatprep.subr.mxu0 0.0
  %4053 = vmatpush1.msra.mxu0 0.0
  %4054 = vmatprep.subr.mxu0 0.0
  %4055 = vmatpush1.msra.mxu0 0.0
  %4056 = vmatprep.subr.mxu0 0.0
  %4057 = vmatpush1.msra.mxu0 0.0
  %4058 = vmatprep.subr.mxu0 0.0
  %4059 = vmatpush1.msra.mxu0 0.0
  %4060 = vmatprep.subr.mxu0 0.0
  %4061 = vmatpush1.msra.mxu0 0.0
  %4062 = vmatprep.subr.mxu0 0.0
  %4063 = vmatpush1.msra.mxu0 0.0
  %4064 = vmatprep.subr.mxu0 0.0
  %4065 = vmatpush1.msra.mxu0 0.0
  %4066 = vmatprep.subr.mxu0 0.0
  %4067 = vmatpush1.msra.mxu0 0.0
  %4068 = vmatprep.subr.mxu0 0.0
  %4069 = vmatpush1.msra.mxu0 0.0
  %4070 = vmatprep.subr.mxu0 0.0
  %4071 = vmatpush1.msra.mxu0 0.0
  %4072 = vmatprep.subr.mxu0 0.0
  %4073 = vmatpush1.msra.mxu0 0.0
  %4074 = vmatprep.subr.mxu0 0.0
  %4075 = vmatpush1.msra.mxu0 0.0
  %4076 = vmatprep.subr.mxu0 0.0
  %4077 = vmatpush1.msra.mxu0 0.0
  %4078 = vmatprep.subr.mxu0 0.0
  %4079 = vmatpush1.msra.mxu0 %v4043
  %4080 = vmatprep.subr.mxu0 0.0
  %4081 = vmatpush2.msra.mxu0 0.0
  %4082 = vmatprep.subr.mxu0 0.0
  %4083 = vmatpush2.msra.mxu0 0.0
  %4084 = vmatprep.subr.mxu0 0.0
  %4085 = vmatpush2.msra.mxu0 0.0
  %4086 = vmatprep.subr.mxu0 0.0
  %4087 = vmatpush2.msra.mxu0 0.0
  %4088 = vmatprep.subr.mxu0 0.0
  %4089 = vmatpush2.msra.mxu0 0.0
  %4090 = vmatprep.subr.mxu0 0.0
  %4091 = vmatpush2.msra.mxu0 0.0
  %4092 = vmatprep.subr.mxu0 0.0
  %4093 = vmatpush2.msra.mxu0 0.0
  %4094 = vmatprep.subr.mxu0 0.0
  %4095 = vmatpush2.msra.mxu0 0.0
  %4096 = vmatprep.subr.mxu0 0.0
  %4097 = vmatpush2.msra.mxu0 0.0
  %4098 = vmatprep.subr.mxu0 0.0
  %4099 = vmatpush2.msra.mxu0 0.0
  %4100 = vmatprep.subr.mxu0 0.0
  %4101 = vmatpush2.msra.mxu0 0.0
  %4102 = vmatprep.subr.mxu0 0.0
  %4103 = vmatpush2.msra.mxu0 0.0
  %4104 = vmatprep.subr.mxu0 0.0
  %4105 = vmatpush2.msra.mxu0 0.0
  %4106 = vmatprep.subr.mxu0 0.0
  %4107 = vmatpush2.msra.mxu0 0.0
  %4108 = vmatprep.subr.mxu0 0.0
  %4109 = vmatpush2.msra.mxu0 0.0
  %4110 = vmatprep.subr.mxu0 0.0
  %4111 = vmatpush2.msra.mxu0 0.0
  %4112 = vmatprep.mubr.f32.mxu0 0.0
  %4113 = vmatmul.mubr.f32.gmra.mxu0 %v4046
  %v4114 = vpop.f32.mrf.mxu0
  %v4115 = vadd.f32 0.0, %v4114
  %v4116 = vpop.f32.mrf.mxu0
  %4117 = vdwg.mxu0
  %v4119 = vsel %vm214, %v4115, 0
  %4121 = vmatprep.subr.mxu0 0.0
  %4122 = vmatpush1.msra.mxu0 0.0
  %4123 = vmatprep.subr.mxu0 0.0
  %4124 = vmatpush1.msra.mxu0 0.0
  %4125 = vmatprep.subr.mxu0 0.0
  %4126 = vmatpush1.msra.mxu0 0.0
  %4127 = vmatprep.subr.mxu0 0.0
  %4128 = vmatpush1.msra.mxu0 0.0
  %4129 = vmatprep.subr.mxu0 0.0
  %4130 = vmatpush1.msra.mxu0 0.0
  %4131 = vmatprep.subr.mxu0 0.0
  %4132 = vmatpush1.msra.mxu0 0.0
  %4133 = vmatprep.subr.mxu0 0.0
  %4134 = vmatpush1.msra.mxu0 0.0
  %4135 = vmatprep.subr.mxu0 0.0
  %4136 = vmatpush1.msra.mxu0 0.0
  %4137 = vmatprep.subr.mxu0 0.0
  %4138 = vmatpush1.msra.mxu0 0.0
  %4139 = vmatprep.subr.mxu0 0.0
  %4140 = vmatpush1.msra.mxu0 0.0
  %4141 = vmatprep.subr.mxu0 0.0
  %4142 = vmatpush1.msra.mxu0 0.0
  %4143 = vmatprep.subr.mxu0 0.0
  %4144 = vmatpush1.msra.mxu0 0.0
  %4145 = vmatprep.subr.mxu0 0.0
  %4146 = vmatpush1.msra.mxu0 0.0
  %4147 = vmatprep.subr.mxu0 0.0
  %4148 = vmatpush1.msra.mxu0 0.0
  %4149 = vmatprep.subr.mxu0 0.0
  %4150 = vmatpush1.msra.mxu0 0.0
  %4151 = vmatprep.subr.mxu0 0.0
  %4152 = vmatpush1.msra.mxu0 %v2523
  %4153 = vmatprep.subr.mxu0 0.0
  %4154 = vmatpush2.msra.mxu0 0.0
  %4155 = vmatprep.subr.mxu0 0.0
  %4156 = vmatpush2.msra.mxu0 0.0
  %4157 = vmatprep.subr.mxu0 0.0
  %4158 = vmatpush2.msra.mxu0 0.0
  %4159 = vmatprep.subr.mxu0 0.0
  %4160 = vmatpush2.msra.mxu0 0.0
  %4161 = vmatprep.subr.mxu0 0.0
  %4162 = vmatpush2.msra.mxu0 0.0
  %4163 = vmatprep.subr.mxu0 0.0
  %4164 = vmatpush2.msra.mxu0 0.0
  %4165 = vmatprep.subr.mxu0 0.0
  %4166 = vmatpush2.msra.mxu0 0.0
  %4167 = vmatprep.subr.mxu0 0.0
  %4168 = vmatpush2.msra.mxu0 0.0
  %4169 = vmatprep.subr.mxu0 0.0
  %4170 = vmatpush2.msra.mxu0 0.0
  %4171 = vmatprep.subr.mxu0 0.0
  %4172 = vmatpush2.msra.mxu0 0.0
  %4173 = vmatprep.subr.mxu0 0.0
  %4174 = vmatpush2.msra.mxu0 0.0
  %4175 = vmatprep.subr.mxu0 0.0
  %4176 = vmatpush2.msra.mxu0 0.0
  %4177 = vmatprep.subr.mxu0 0.0
  %4178 = vmatpush2.msra.mxu0 0.0
  %4179 = vmatprep.subr.mxu0 0.0
  %4180 = vmatpush2.msra.mxu0 0.0
  %4181 = vmatprep.subr.mxu0 0.0
  %4182 = vmatpush2.msra.mxu0 0.0
  %4183 = vmatprep.subr.mxu0 0.0
  %4184 = vmatpush2.msra.mxu0 0.0
  %4185 = vmatprep.mubr.f32.mxu0 0.0
  %4186 = vmatmul.mubr.f32.gmra.mxu0 %v4119
  %v4187 = vpop.f32.mrf.mxu0
  %v4188 = vadd.f32 0.0, %v4187
  %v4189 = vpop.f32.mrf.mxu0
  %4190 = vdwg.mxu0
  %v4191 = vadd.f32 %v3950, %v4188
  %4192 = vrot.lane.b32.xlu0 %v2517, 104
  %v4193 = vpop.permute.xlu0 %4192
  %4194 = vrot.lane.b32.xlu0 %v2517, 72
  %v4195 = vpop.permute.xlu0 %4194
  %v4196 = vsel %vm214, %v4193, 0
  %v4198 = vsel %vm214, %v4195, 0
  %4200 = vmatprep.subr.mxu0 0.0
  %4201 = vmatpush1.xpose.msra.mxu0 0.0
  %4202 = vmatprep.subr.mxu0 0.0
  %4203 = vmatpush1.xpose.msra.mxu0 0.0
  %4204 = vmatprep.subr.mxu0 0.0
  %4205 = vmatpush1.xpose.msra.mxu0 0.0
  %4206 = vmatprep.subr.mxu0 0.0
  %4207 = vmatpush1.xpose.msra.mxu0 0.0
  %4208 = vmatprep.subr.mxu0 0.0
  %4209 = vmatpush1.xpose.msra.mxu0 0.0
  %4210 = vmatprep.subr.mxu0 0.0
  %4211 = vmatpush1.xpose.msra.mxu0 0.0
  %4212 = vmatprep.subr.mxu0 0.0
  %4213 = vmatpush1.xpose.msra.mxu0 0.0
  %4214 = vmatprep.subr.mxu0 0.0
  %4215 = vmatpush1.xpose.msra.mxu0 0.0
  %4216 = vmatprep.subr.mxu0 0.0
  %4217 = vmatpush1.xpose.msra.mxu0 0.0
  %4218 = vmatprep.subr.mxu0 0.0
  %4219 = vmatpush1.xpose.msra.mxu0 0.0
  %4220 = vmatprep.subr.mxu0 0.0
  %4221 = vmatpush1.xpose.msra.mxu0 0.0
  %4222 = vmatprep.subr.mxu0 0.0
  %4223 = vmatpush1.xpose.msra.mxu0 0.0
  %4224 = vmatprep.subr.mxu0 0.0
  %4225 = vmatpush1.xpose.msra.mxu0 0.0
  %4226 = vmatprep.subr.mxu0 0.0
  %4227 = vmatpush1.xpose.msra.mxu0 0.0
  %4228 = vmatprep.subr.mxu0 0.0
  %4229 = vmatpush1.xpose.msra.mxu0 0.0
  %4230 = vmatprep.subr.mxu0 0.0
  %4231 = vmatpush1.xpose.msra.mxu0 %v4198
  %4232 = vmatprep.subr.mxu0 0.0
  %4233 = vmatpush2.xpose.msra.mxu0 0.0
  %4234 = vmatprep.subr.mxu0 0.0
  %4235 = vmatpush2.xpose.msra.mxu0 0.0
  %4236 = vmatprep.subr.mxu0 0.0
  %4237 = vmatpush2.xpose.msra.mxu0 0.0
  %4238 = vmatprep.subr.mxu0 0.0
  %4239 = vmatpush2.xpose.msra.mxu0 0.0
  %4240 = vmatprep.subr.mxu0 0.0
  %4241 = vmatpush2.xpose.msra.mxu0 0.0
  %4242 = vmatprep.subr.mxu0 0.0
  %4243 = vmatpush2.xpose.msra.mxu0 0.0
  %4244 = vmatprep.subr.mxu0 0.0
  %4245 = vmatpush2.xpose.msra.mxu0 0.0
  %4246 = vmatprep.subr.mxu0 0.0
  %4247 = vmatpush2.xpose.msra.mxu0 0.0
  %4248 = vmatprep.subr.mxu0 0.0
  %4249 = vmatpush2.xpose.msra.mxu0 0.0
  %4250 = vmatprep.subr.mxu0 0.0
  %4251 = vmatpush2.xpose.msra.mxu0 0.0
  %4252 = vmatprep.subr.mxu0 0.0
  %4253 = vmatpush2.xpose.msra.mxu0 0.0
  %4254 = vmatprep.subr.mxu0 0.0
  %4255 = vmatpush2.xpose.msra.mxu0 0.0
  %4256 = vmatprep.subr.mxu0 0.0
  %4257 = vmatpush2.xpose.msra.mxu0 0.0
  %4258 = vmatprep.subr.mxu0 0.0
  %4259 = vmatpush2.xpose.msra.mxu0 0.0
  %4260 = vmatprep.subr.mxu0 0.0
  %4261 = vmatpush2.xpose.msra.mxu0 0.0
  %4262 = vmatprep.subr.mxu0 0.0
  %4263 = vmatpush2.xpose.msra.mxu0 0.0
  %4264 = vmatprep.mubr.f32.mxu0 0.0
  %4265 = vmatmul.mubr.f32.gmra.mxu0 %v4196
  %v4266 = vpop.f32.mrf.mxu0
  %v4267 = vadd.f32 %v114, %v4266
  %v4268 = vpop.f32.mrf.mxu0
  %4269 = vdwg.mxu0
  %v4270 = vsel %vm214, %v4267, -inf
  %4271 = vmax.xlane.f32.xlu0 %v4270
  %v4272 = vpop.xlane.xlu0 %4271
  %v4273 = vsub.f32 %v4267, %v4272
  %v4274 = vmul.f32 %v4273, 1.442695
  %v4275 = vpow.pop %v4274
  %v4276 = vsel %vm214, %v4275, 0.0
  %4277 = vadd.xlane.f32.xlu0 %v4276
  %v4278 = vpop.xlane.xlu0 %4277
  %v4279 = vrcp.pop %v4278
  %v4280 = vmul.f32 %v4275, %v4279
  %4281 = vrot.lane.b32.xlu0 %v2517, 40
  %v4282 = vpop.permute.xlu0 %4281
  %v4285 = vsel %vm214, %v4280, 0
  %4287 = vmatprep.subr.mxu0 0.0
  %4288 = vmatpush1.msra.mxu0 0.0
  %4289 = vmatprep.subr.mxu0 0.0
  %4290 = vmatpush1.msra.mxu0 0.0
  %4291 = vmatprep.subr.mxu0 0.0
  %4292 = vmatpush1.msra.mxu0 0.0
  %4293 = vmatprep.subr.mxu0 0.0
  %4294 = vmatpush1.msra.mxu0 0.0
  %4295 = vmatprep.subr.mxu0 0.0
  %4296 = vmatpush1.msra.mxu0 0.0
  %4297 = vmatprep.subr.mxu0 0.0
  %4298 = vmatpush1.msra.mxu0 0.0
  %4299 = vmatprep.subr.mxu0 0.0
  %4300 = vmatpush1.msra.mxu0 0.0
  %4301 = vmatprep.subr.mxu0 0.0
  %4302 = vmatpush1.msra.mxu0 0.0
  %4303 = vmatprep.subr.mxu0 0.0
  %4304 = vmatpush1.msra.mxu0 0.0
  %4305 = vmatprep.subr.mxu0 0.0
  %4306 = vmatpush1.msra.mxu0 0.0
  %4307 = vmatprep.subr.mxu0 0.0
  %4308 = vmatpush1.msra.mxu0 0.0
  %4309 = vmatprep.subr.mxu0 0.0
  %4310 = vmatpush1.msra.mxu0 0.0
  %4311 = vmatprep.subr.mxu0 0.0
  %4312 = vmatpush1.msra.mxu0 0.0
  %4313 = vmatprep.subr.mxu0 0.0
  %4314 = vmatpush1.msra.mxu0 0.0
  %4315 = vmatprep.subr.mxu0 0.0
  %4316 = vmatpush1.msra.mxu0 0.0
  %4317 = vmatprep.subr.mxu0 0.0
  %4318 = vmatpush1.msra.mxu0 %v4282
  %4319 = vmatprep.subr.mxu0 0.0
  %4320 = vmatpush2.msra.mxu0 0.0
  %4321 = vmatprep.subr.mxu0 0.0
  %4322 = vmatpush2.msra.mxu0 0.0
  %4323 = vmatprep.subr.mxu0 0.0
  %4324 = vmatpush2.msra.mxu0 0.0
  %4325 = vmatprep.subr.mxu0 0.0
  %4326 = vmatpush2.msra.mxu0 0.0
  %4327 = vmatprep.subr.mxu0 0.0
  %4328 = vmatpush2.msra.mxu0 0.0
  %4329 = vmatprep.subr.mxu0 0.0
  %4330 = vmatpush2.msra.mxu0 0.0
  %4331 = vmatprep.subr.mxu0 0.0
  %4332 = vmatpush2.msra.mxu0 0.0
  %4333 = vmatprep.subr.mxu0 0.0
  %4334 = vmatpush2.msra.mxu0 0.0
  %4335 = vmatprep.subr.mxu0 0.0
  %4336 = vmatpush2.msra.mxu0 0.0
  %4337 = vmatprep.subr.mxu0 0.0
  %4338 = vmatpush2.msra.mxu0 0.0
  %4339 = vmatprep.subr.mxu0 0.0
  %4340 = vmatpush2.msra.mxu0 0.0
  %4341 = vmatprep.subr.mxu0 0.0
  %4342 = vmatpush2.msra.mxu0 0.0
  %4343 = vmatprep.subr.mxu0 0.0
  %4344 = vmatpush2.msra.mxu0 0.0
  %4345 = vmatprep.subr.mxu0 0.0
  %4346 = vmatpush2.msra.mxu0 0.0
  %4347 = vmatprep.subr.mxu0 0.0
  %4348 = vmatpush2.msra.mxu0 0.0
  %4349 = vmatprep.subr.mxu0 0.0
  %4350 = vmatpush2.msra.mxu0 0.0
  %4351 = vmatprep.mubr.f32.mxu0 0.0
  %4352 = vmatmul.mubr.f32.gmra.mxu0 %v4285
  %v4353 = vpop.f32.mrf.mxu0
  %v4354 = vadd.f32 0.0, %v4353
  %v4355 = vpop.f32.mrf.mxu0
  %4356 = vdwg.mxu0
  %v4358 = vsel %vm214, %v4354, 0
  %4360 = vmatprep.subr.mxu0 0.0
  %4361 = vmatpush1.msra.mxu0 0.0
  %4362 = vmatprep.subr.mxu0 0.0
  %4363 = vmatpush1.msra.mxu0 0.0
  %4364 = vmatprep.subr.mxu0 0.0
  %4365 = vmatpush1.msra.mxu0 0.0
  %4366 = vmatprep.subr.mxu0 0.0
  %4367 = vmatpush1.msra.mxu0 0.0
  %4368 = vmatprep.subr.mxu0 0.0
  %4369 = vmatpush1.msra.mxu0 0.0
  %4370 = vmatprep.subr.mxu0 0.0
  %4371 = vmatpush1.msra.mxu0 0.0
  %4372 = vmatprep.subr.mxu0 0.0
  %4373 = vmatpush1.msra.mxu0 0.0
  %4374 = vmatprep.subr.mxu0 0.0
  %4375 = vmatpush1.msra.mxu0 0.0
  %4376 = vmatprep.subr.mxu0 0.0
  %4377 = vmatpush1.msra.mxu0 0.0
  %4378 = vmatprep.subr.mxu0 0.0
  %4379 = vmatpush1.msra.mxu0 0.0
  %4380 = vmatprep.subr.mxu0 0.0
  %4381 = vmatpush1.msra.mxu0 0.0
  %4382 = vmatprep.subr.mxu0 0.0
  %4383 = vmatpush1.msra.mxu0 0.0
  %4384 = vmatprep.subr.mxu0 0.0
  %4385 = vmatpush1.msra.mxu0 0.0
  %4386 = vmatprep.subr.mxu0 0.0
  %4387 = vmatpush1.msra.mxu0 0.0
  %4388 = vmatprep.subr.mxu0 0.0
  %4389 = vmatpush1.msra.mxu0 0.0
  %4390 = vmatprep.subr.mxu0 0.0
  %4391 = vmatpush1.msra.mxu0 %v2524
  %4392 = vmatprep.subr.mxu0 0.0
  %4393 = vmatpush2.msra.mxu0 0.0
  %4394 = vmatprep.subr.mxu0 0.0
  %4395 = vmatpush2.msra.mxu0 0.0
  %4396 = vmatprep.subr.mxu0 0.0
  %4397 = vmatpush2.msra.mxu0 0.0
  %4398 = vmatprep.subr.mxu0 0.0
  %4399 = vmatpush2.msra.mxu0 0.0
  %4400 = vmatprep.subr.mxu0 0.0
  %4401 = vmatpush2.msra.mxu0 0.0
  %4402 = vmatprep.subr.mxu0 0.0
  %4403 = vmatpush2.msra.mxu0 0.0
  %4404 = vmatprep.subr.mxu0 0.0
  %4405 = vmatpush2.msra.mxu0 0.0
  %4406 = vmatprep.subr.mxu0 0.0
  %4407 = vmatpush2.msra.mxu0 0.0
  %4408 = vmatprep.subr.mxu0 0.0
  %4409 = vmatpush2.msra.mxu0 0.0
  %4410 = vmatprep.subr.mxu0 0.0
  %4411 = vmatpush2.msra.mxu0 0.0
  %4412 = vmatprep.subr.mxu0 0.0
  %4413 = vmatpush2.msra.mxu0 0.0
  %4414 = vmatprep.subr.mxu0 0.0
  %4415 = vmatpush2.msra.mxu0 0.0
  %4416 = vmatprep.subr.mxu0 0.0
  %4417 = vmatpush2.msra.mxu0 0.0
  %4418 = vmatprep.subr.mxu0 0.0
  %4419 = vmatpush2.msra.mxu0 0.0
  %4420 = vmatprep.subr.mxu0 0.0
  %4421 = vmatpush2.msra.mxu0 0.0
  %4422 = vmatprep.subr.mxu0 0.0
  %4423 = vmatpush2.msra.mxu0 0.0
  %4424 = vmatprep.mubr.f32.mxu0 0.0
  %4425 = vmatmul.mubr.f32.gmra.mxu0 %v4358
  %v4426 = vpop.f32.mrf.mxu0
  %v4427 = vadd.f32 0.0, %v4426
  %v4428 = vpop.f32.mrf.mxu0
  %4429 = vdwg.mxu0
  %v4430 = vadd.f32 %v4191, %v4427
  %s4431 = scalar_lea.vmem %s7, 1
  %v4432 = vld [vmem:[%s4431] sm:$0x1]
  %v4434 = vlaneseq
  %v4435 = vshrl.u32 %v4434, 7
  %v4436 = vsub.s32 0, %v4435
  %v4437 = vrot.slane %v4432, %v4436
  %v4439 = vadd.f32 %v3477, %v4437
  %v4440 = vadd.f32 %v4430, %v4437
  %v4441 = vadd.f32 %v4439, %v2424
  %v4442 = vadd.f32 %v4440, %v2425
  %s4443 = scalar_lea.vmem %s8, 1
  %v4444 = vld [vmem:[%s4443] sm:$0x1]
  %s4445 = scalar_lea.vmem %s9, 1
  %v4446 = vld [vmem:[%s4445] sm:$0x1]
  %v4447 = vsel %vm69, %v4441, 0.0
  %4448 = vadd.xlane.f32.xlu0 %v4447
  %v4449 = vpop.xlane.xlu0 %4448
  %v4450 = vsel %vm69, %v4442, 0.0
  %4451 = vadd.xlane.f32.xlu0 %v4450
  %v4452 = vpop.xlane.xlu0 %4451
  %v4453 = vmul.f32 %v4449, %v76
  %v4454 = vmul.f32 %v4452, %v76
  %v4455 = vsub.f32 %v4441, %v4453
  %v4456 = vsub.f32 %v4442, %v4454
  %v4457 = vmul.f32 %v4455, %v4455
  %v4458 = vmul.f32 %v4456, %v4456
  %v4459 = vsel %vm69, %v4457, 0.0
  %4460 = vadd.xlane.f32.xlu0 %v4459
  %v4461 = vpop.xlane.xlu0 %4460
  %v4462 = vsel %vm69, %v4458, 0.0
  %4463 = vadd.xlane.f32.xlu0 %v4462
  %v4464 = vpop.xlane.xlu0 %4463
  %v4465 = vmul.f32 %v4461, %v76
  %v4466 = vmul.f32 %v4464, %v76
  %v4467 = vadd.f32 %v4465, 1e-12
  %v4468 = vadd.f32 %v4466, 1e-12
  %v4469 = vrsqrt.pop %v4467
  %v4470 = vrsqrt.pop %v4468
  %v4471 = vmul.f32 %v4455, %v4469
  %v4472 = vmul.f32 %v4456, %v4470
  %v4474 = vlaneseq
  %v4475 = vshrl.u32 %v4474, 7
  %v4476 = vsub.s32 0, %v4475
  %v4477 = vrot.slane %v4444, %v4476
  %v4479 = vmul.f32 %v4471, %v4477
  %v4480 = vmul.f32 %v4472, %v4477
  %v4482 = vlaneseq
  %v4483 = vshrl.u32 %v4482, 7
  %v4484 = vsub.s32 0, %v4483
  %v4485 = vrot.slane %v4446, %v4484
  %v4487 = vadd.f32 %v4479, %v4485
  %v4488 = vadd.f32 %v4480, %v4485
  %s4489 = scalar_lea.vmem %s10, 32
  %v4490 = vld [vmem:[%s4489] sm:$0xff]
  %v4491 = vld [vmem:[%s4489 + $0x8] sm:$0xff]
  %v4492 = vld [vmem:[%s4489 + $0x10] sm:$0xff]
  %v4493 = vld [vmem:[%s4489 + $0x18] sm:$0xff]
  %s4494 = scalar_lea.vmem %s11, 1
  %v4495 = vld [vmem:[%s4494] sm:$0x1]
  %v4497 = vlaneseq
  %v4498 = vshrl.u32 %v4497, 7
  %v4499 = vsub.s32 0, %v4498
  %v4500 = vrot.slane %v4495, %v4499
  %v4503 = vsel %vm69, %v4487, 0
  %v4506 = vsel %vm69, %v4488, 0
  %4508 = vmatprep.subr.mxu0 0.0
  %4509 = vmatpush1.msra.mxu0 0.0
  %4510 = vmatprep.subr.mxu0 0.0
  %4511 = vmatpush1.msra.mxu0 0.0
  %4512 = vmatprep.subr.mxu0 0.0
  %4513 = vmatpush1.msra.mxu0 0.0
  %4514 = vmatprep.subr.mxu0 0.0
  %4515 = vmatpush1.msra.mxu0 0.0
  %4516 = vmatprep.subr.mxu0 0.0
  %4517 = vmatpush1.msra.mxu0 0.0
  %4518 = vmatprep.subr.mxu0 0.0
  %4519 = vmatpush1.msra.mxu0 0.0
  %4520 = vmatprep.subr.mxu0 0.0
  %4521 = vmatpush1.msra.mxu0 0.0
  %4522 = vmatprep.subr.mxu0 0.0
  %4523 = vmatpush1.msra.mxu0 0.0
  %4524 = vmatprep.subr.mxu0 0.0
  %4525 = vmatpush1.msra.mxu0 0.0
  %4526 = vmatprep.subr.mxu0 0.0
  %4527 = vmatpush1.msra.mxu0 0.0
  %4528 = vmatprep.subr.mxu0 0.0
  %4529 = vmatpush1.msra.mxu0 0.0
  %4530 = vmatprep.subr.mxu0 0.0
  %4531 = vmatpush1.msra.mxu0 0.0
  %4532 = vmatprep.subr.mxu0 0.0
  %4533 = vmatpush1.msra.mxu0 %v4493
  %4534 = vmatprep.subr.mxu0 0.0
  %4535 = vmatpush1.msra.mxu0 %v4492
  %4536 = vmatprep.subr.mxu0 0.0
  %4537 = vmatpush1.msra.mxu0 %v4491
  %4538 = vmatprep.subr.mxu0 0.0
  %4539 = vmatpush1.msra.mxu0 %v4490
  %4540 = vmatprep.subr.mxu0 0.0
  %4541 = vmatpush2.msra.mxu0 0.0
  %4542 = vmatprep.subr.mxu0 0.0
  %4543 = vmatpush2.msra.mxu0 0.0
  %4544 = vmatprep.subr.mxu0 0.0
  %4545 = vmatpush2.msra.mxu0 0.0
  %4546 = vmatprep.subr.mxu0 0.0
  %4547 = vmatpush2.msra.mxu0 0.0
  %4548 = vmatprep.subr.mxu0 0.0
  %4549 = vmatpush2.msra.mxu0 0.0
  %4550 = vmatprep.subr.mxu0 0.0
  %4551 = vmatpush2.msra.mxu0 0.0
  %4552 = vmatprep.subr.mxu0 0.0
  %4553 = vmatpush2.msra.mxu0 0.0
  %4554 = vmatprep.subr.mxu0 0.0
  %4555 = vmatpush2.msra.mxu0 0.0
  %4556 = vmatprep.subr.mxu0 0.0
  %4557 = vmatpush2.msra.mxu0 0.0
  %4558 = vmatprep.subr.mxu0 0.0
  %4559 = vmatpush2.msra.mxu0 0.0
  %4560 = vmatprep.subr.mxu0 0.0
  %4561 = vmatpush2.msra.mxu0 0.0
  %4562 = vmatprep.subr.mxu0 0.0
  %4563 = vmatpush2.msra.mxu0 0.0
  %4564 = vmatprep.subr.mxu0 0.0
  %4565 = vmatpush2.msra.mxu0 0.0
  %4566 = vmatprep.subr.mxu0 0.0
  %4567 = vmatpush2.msra.mxu0 0.0
  %4568 = vmatprep.subr.mxu0 0.0
  %4569 = vmatpush2.msra.mxu0 0.0
  %4570 = vmatprep.subr.mxu0 0.0
  %4571 = vmatpush2.msra.mxu0 0.0
  %4572 = vmatprep.mubr.f32.mxu0 0.0
  %4573 = vmatmul.mubr.f32.gmra.mxu0 %v4503
  %v4574 = vpop.f32.mrf.mxu0
  %v4575 = vadd.f32 %v4500, %v4574
  %v4576 = vpop.f32.mrf.mxu0
  %4577 = vmatprep.mubr.f32.mxu0 0.0
  %4578 = vmatmul.mubr.f32.gmra.mxu0 %v4506
  %v4579 = vpop.f32.mrf.mxu0
  %v4580 = vadd.f32 %v4500, %v4579
  %v4581 = vpop.f32.mrf.mxu0
  %4582 = vdwg.mxu0
  %v4583 = vmul.f32 %v4575, 0.5
  %v4584 = vmul.f32 %v4580, 0.5
  %v4585 = vmul.f32 %v4575, 0.044715
  %v4586 = vmul.f32 %v4580, 0.044715
  %v4587 = vmul.f32 %v4585, %v4575
  %v4588 = vmul.f32 %v4586, %v4580
  %v4589 = vmul.f32 %v4587, %v4575
  %v4590 = vmul.f32 %v4588, %v4580
  %v4591 = vadd.f32 %v4575, %v4589
  %v4592 = vadd.f32 %v4580, %v4590
  %v4593 = vmul.f32 %v4591, 0.7978846
  %v4594 = vmul.f32 %v4592, 0.7978846
  %v4595 = vtanh.pop %v4593
  %v4596 = vtanh.pop %v4594
  %v4597 = vadd.f32 %v4595, 1.0
  %v4598 = vadd.f32 %v4596, 1.0
  %v4599 = vmul.f32 %v4583, %v4597
  %v4600 = vmul.f32 %v4584, %v4598
  %s4601 = scalar_lea.vmem %s12, 64
  %v4602 = vld [vmem:[%s4601] sm:$0xff]
  %v4603 = vld [vmem:[%s4601 + $0x8] sm:$0xff]
  %v4604 = vld [vmem:[%s4601 + $0x10] sm:$0xff]
  %v4605 = vld [vmem:[%s4601 + $0x18] sm:$0xff]
  %v4606 = vld [vmem:[%s4601 + $0x20] sm:$0xff]
  %v4607 = vld [vmem:[%s4601 + $0x28] sm:$0xff]
  %v4608 = vld [vmem:[%s4601 + $0x30] sm:$0xff]
  %v4609 = vld [vmem:[%s4601 + $0x38] sm:$0xff]
  %s4610 = scalar_lea.vmem %s13, 1
  %v4611 = vld [vmem:[%s4610] sm:$0x1]
  %v4613 = vlaneseq
  %v4614 = vshrl.u32 %v4613, 7
  %v4615 = vsub.s32 0, %v4614
  %v4616 = vrot.slane %v4611, %v4615
  %v4619 = vsel %vm2298, %v4599, 0
  %v4622 = vsel %vm2298, %v4600, 0
  %4624 = vmatprep.subr.mxu0 0.0
  %4625 = vmatpush1.msra.mxu0 0.0
  %4626 = vmatprep.subr.mxu0 0.0
  %4627 = vmatpush1.msra.mxu0 0.0
  %4628 = vmatprep.subr.mxu0 0.0
  %4629 = vmatpush1.msra.mxu0 0.0
  %4630 = vmatprep.subr.mxu0 0.0
  %4631 = vmatpush1.msra.mxu0 0.0
  %4632 = vmatprep.subr.mxu0 0.0
  %4633 = vmatpush1.msra.mxu0 0.0
  %4634 = vmatprep.subr.mxu0 0.0
  %4635 = vmatpush1.msra.mxu0 0.0
  %4636 = vmatprep.subr.mxu0 0.0
  %4637 = vmatpush1.msra.mxu0 0.0
  %4638 = vmatprep.subr.mxu0 0.0
  %4639 = vmatpush1.msra.mxu0 0.0
  %4640 = vmatprep.subr.mxu0 0.0
  %4641 = vmatpush1.msra.mxu0 %v4609
  %4642 = vmatprep.subr.mxu0 0.0
  %4643 = vmatpush1.msra.mxu0 %v4608
  %4644 = vmatprep.subr.mxu0 0.0
  %4645 = vmatpush1.msra.mxu0 %v4607
  %4646 = vmatprep.subr.mxu0 0.0
  %4647 = vmatpush1.msra.mxu0 %v4606
  %4648 = vmatprep.subr.mxu0 0.0
  %4649 = vmatpush1.msra.mxu0 %v4605
  %4650 = vmatprep.subr.mxu0 0.0
  %4651 = vmatpush1.msra.mxu0 %v4604
  %4652 = vmatprep.subr.mxu0 0.0
  %4653 = vmatpush1.msra.mxu0 %v4603
  %4654 = vmatprep.subr.mxu0 0.0
  %4655 = vmatpush1.msra.mxu0 %v4602
  %4656 = vmatprep.subr.mxu0 0.0
  %4657 = vmatpush2.msra.mxu0 0.0
  %4658 = vmatprep.subr.mxu0 0.0
  %4659 = vmatpush2.msra.mxu0 0.0
  %4660 = vmatprep.subr.mxu0 0.0
  %4661 = vmatpush2.msra.mxu0 0.0
  %4662 = vmatprep.subr.mxu0 0.0
  %4663 = vmatpush2.msra.mxu0 0.0
  %4664 = vmatprep.subr.mxu0 0.0
  %4665 = vmatpush2.msra.mxu0 0.0
  %4666 = vmatprep.subr.mxu0 0.0
  %4667 = vmatpush2.msra.mxu0 0.0
  %4668 = vmatprep.subr.mxu0 0.0
  %4669 = vmatpush2.msra.mxu0 0.0
  %4670 = vmatprep.subr.mxu0 0.0
  %4671 = vmatpush2.msra.mxu0 0.0
  %4672 = vmatprep.subr.mxu0 0.0
  %4673 = vmatpush2.msra.mxu0 0.0
  %4674 = vmatprep.subr.mxu0 0.0
  %4675 = vmatpush2.msra.mxu0 0.0
  %4676 = vmatprep.subr.mxu0 0.0
  %4677 = vmatpush2.msra.mxu0 0.0
  %4678 = vmatprep.subr.mxu0 0.0
  %4679 = vmatpush2.msra.mxu0 0.0
  %4680 = vmatprep.subr.mxu0 0.0
  %4681 = vmatpush2.msra.mxu0 0.0
  %4682 = vmatprep.subr.mxu0 0.0
  %4683 = vmatpush2.msra.mxu0 0.0
  %4684 = vmatprep.subr.mxu0 0.0
  %4685 = vmatpush2.msra.mxu0 0.0
  %4686 = vmatprep.subr.mxu0 0.0
  %4687 = vmatpush2.msra.mxu0 0.0
  %4688 = vmatprep.mubr.f32.mxu0 0.0
  %4689 = vmatmul.mubr.f32.gmra.mxu0 %v4619
  %v4690 = vpop.f32.mrf.mxu0
  %v4691 = vadd.f32 %v4616, %v4690
  %v4692 = vpop.f32.mrf.mxu0
  %4693 = vmatprep.mubr.f32.mxu0 0.0
  %4694 = vmatmul.mubr.f32.gmra.mxu0 %v4622
  %v4695 = vpop.f32.mrf.mxu0
  %v4696 = vadd.f32 %v4616, %v4695
  %v4697 = vpop.f32.mrf.mxu0
  %4698 = vdwg.mxu0
  %v4699 = vadd.f32 %v4691, %v4487
  %v4700 = vadd.f32 %v4696, %v4488
  %s4701 = scalar_lea.vmem %s14, 1
  %v4702 = vld [vmem:[%s4701] sm:$0x1]
  %s4703 = scalar_lea.vmem %s15, 1
  %v4704 = vld [vmem:[%s4703] sm:$0x1]
  %v4705 = vsel %vm69, %v4699, 0.0
  %4706 = vadd.xlane.f32.xlu0 %v4705
  %v4707 = vpop.xlane.xlu0 %4706
  %v4708 = vsel %vm69, %v4700, 0.0
  %4709 = vadd.xlane.f32.xlu0 %v4708
  %v4710 = vpop.xlane.xlu0 %4709
  %v4711 = vmul.f32 %v4707, %v76
  %v4712 = vmul.f32 %v4710, %v76
  %v4713 = vsub.f32 %v4699, %v4711
  %v4714 = vsub.f32 %v4700, %v4712
  %v4715 = vmul.f32 %v4713, %v4713
  %v4716 = vmul.f32 %v4714, %v4714
  %v4717 = vsel %vm69, %v4715, 0.0
  %4718 = vadd.xlane.f32.xlu0 %v4717
  %v4719 = vpop.xlane.xlu0 %4718
  %v4720 = vsel %vm69, %v4716, 0.0
  %4721 = vadd.xlane.f32.xlu0 %v4720
  %v4722 = vpop.xlane.xlu0 %4721
  %v4723 = vmul.f32 %v4719, %v76
  %v4724 = vmul.f32 %v4722, %v76
  %v4725 = vadd.f32 %v4723, 1e-12
  %v4726 = vadd.f32 %v4724, 1e-12
  %v4727 = vrsqrt.pop %v4725
  %v4728 = vrsqrt.pop %v4726
  %v4729 = vmul.f32 %v4713, %v4727
  %v4730 = vmul.f32 %v4714, %v4728
  %v4732 = vlaneseq
  %v4733 = vshrl.u32 %v4732, 7
  %v4734 = vsub.s32 0, %v4733
  %v4735 = vrot.slane %v4702, %v4734
  %v4737 = vmul.f32 %v4729, %v4735
  %v4738 = vmul.f32 %v4730, %v4735
  %v4740 = vlaneseq
  %v4741 = vshrl.u32 %v4740, 7
  %v4742 = vsub.s32 0, %v4741
  %v4743 = vrot.slane %v4704, %v4742
  %v4745 = vadd.f32 %v4737, %v4743
  %v4746 = vadd.f32 %v4738, %v4743
  %v4747 = vlaneseq
  %v4748 = vshrl.u32 %v4747, 7
  %v4749 = vlaneseq
  %v4750 = vand.u32 %v4749, 127
  %v4751 = vmul.u32 %v4748, 8
  %vm4752 = vcmp.eq.s32.totalorder %v4750, %v4751
  %v4753 = vsel %vm4752, 1, 0
  %v4754 = vcvt.s32.f32 %v4753
  %vm4755 = vcmask 130048
  %v4757 = vsel %vm4755, %v4754, 0
  %4759 = vmatprep.subr.mxu0 0.0
  %4760 = vmatpush1.msra.mxu0 0.0
  %4761 = vmatprep.subr.mxu0 0.0
  %4762 = vmatpush1.msra.mxu0 0.0
  %4763 = vmatprep.subr.mxu0 0.0
  %4764 = vmatpush1.msra.mxu0 0.0
  %4765 = vmatprep.subr.mxu0 0.0
  %4766 = vmatpush1.msra.mxu0 0.0
  %4767 = vmatprep.subr.mxu0 0.0
  %4768 = vmatpush1.msra.mxu0 0.0
  %4769 = vmatprep.subr.mxu0 0.0
  %4770 = vmatpush1.msra.mxu0 0.0
  %4771 = vmatprep.subr.mxu0 0.0
  %4772 = vmatpush1.msra.mxu0 0.0
  %4773 = vmatprep.subr.mxu0 0.0
  %4774 = vmatpush1.msra.mxu0 0.0
  %4775 = vmatprep.subr.mxu0 0.0
  %4776 = vmatpush1.msra.mxu0 0.0
  %4777 = vmatprep.subr.mxu0 0.0
  %4778 = vmatpush1.msra.mxu0 0.0
  %4779 = vmatprep.subr.mxu0 0.0
  %4780 = vmatpush1.msra.mxu0 0.0
  %4781 = vmatprep.subr.mxu0 0.0
  %4782 = vmatpush1.msra.mxu0 0.0
  %4783 = vmatprep.subr.mxu0 0.0
  %4784 = vmatpush1.msra.mxu0 0.0
  %4785 = vmatprep.subr.mxu0 0.0
  %4786 = vmatpush1.msra.mxu0 0.0
  %4787 = vmatprep.subr.mxu0 0.0
  %4788 = vmatpush1.msra.mxu0 %v4746
  %4789 = vmatprep.subr.mxu0 0.0
  %4790 = vmatpush1.msra.mxu0 %v4745
  %4791 = vmatprep.subr.mxu0 0.0
  %4792 = vmatpush2.msra.mxu0 0.0
  %4793 = vmatprep.subr.mxu0 0.0
  %4794 = vmatpush2.msra.mxu0 0.0
  %4795 = vmatprep.subr.mxu0 0.0
  %4796 = vmatpush2.msra.mxu0 0.0
  %4797 = vmatprep.subr.mxu0 0.0
  %4798 = vmatpush2.msra.mxu0 0.0
  %4799 = vmatprep.subr.mxu0 0.0
  %4800 = vmatpush2.msra.mxu0 0.0
  %4801 = vmatprep.subr.mxu0 0.0
  %4802 = vmatpush2.msra.mxu0 0.0
  %4803 = vmatprep.subr.mxu0 0.0
  %4804 = vmatpush2.msra.mxu0 0.0
  %4805 = vmatprep.subr.mxu0 0.0
  %4806 = vmatpush2.msra.mxu0 0.0
  %4807 = vmatprep.subr.mxu0 0.0
  %4808 = vmatpush2.msra.mxu0 0.0
  %4809 = vmatprep.subr.mxu0 0.0
  %4810 = vmatpush2.msra.mxu0 0.0
  %4811 = vmatprep.subr.mxu0 0.0
  %4812 = vmatpush2.msra.mxu0 0.0
  %4813 = vmatprep.subr.mxu0 0.0
  %4814 = vmatpush2.msra.mxu0 0.0
  %4815 = vmatprep.subr.mxu0 0.0
  %4816 = vmatpush2.msra.mxu0 0.0
  %4817 = vmatprep.subr.mxu0 0.0
  %4818 = vmatpush2.msra.mxu0 0.0
  %4819 = vmatprep.subr.mxu0 0.0
  %4820 = vmatpush2.msra.mxu0 0.0
  %4821 = vmatprep.subr.mxu0 0.0
  %4822 = vmatpush2.msra.mxu0 0.0
  %4823 = vmatprep.mubr.f32.mxu0 0.0
  %4824 = vmatmul.mubr.f32.gmra.mxu0 %v4757
  %v4825 = vpop.f32.mrf.mxu0
  %v4826 = vadd.f32 0.0, %v4825
  %v4827 = vpop.f32.mrf.mxu0
  %4828 = vdwg.mxu0
  %v4829 = vld [vmem:[%s16] sm:$0xff]
  %v4830 = vld [vmem:[%s16 + $0x8] sm:$0xff]
  %v4831 = vld [vmem:[%s16 + $0x10] sm:$0xff]
  %v4832 = vld [vmem:[%s16 + $0x18] sm:$0xff]
  %v4833 = vld [vmem:[%s17] sm:$0x1]
  %v4835 = vlaneseq
  %v4836 = vshrl.u32 %v4835, 7
  %v4837 = vsub.s32 0, %v4836
  %v4838 = vrot.slane %v4833, %v4837
  %v4841 = vsel %vm69, %v4826, 0
  %4843 = vmatprep.subr.mxu0 0.0
  %4844 = vmatpush1.msra.mxu0 0.0
  %4845 = vmatprep.subr.mxu0 0.0
  %4846 = vmatpush1.msra.mxu0 0.0
  %4847 = vmatprep.subr.mxu0 0.0
  %4848 = vmatpush1.msra.mxu0 0.0
  %4849 = vmatprep.subr.mxu0 0.0
  %4850 = vmatpush1.msra.mxu0 0.0
  %4851 = vmatprep.subr.mxu0 0.0
  %4852 = vmatpush1.msra.mxu0 0.0
  %4853 = vmatprep.subr.mxu0 0.0
  %4854 = vmatpush1.msra.mxu0 0.0
  %4855 = vmatprep.subr.mxu0 0.0
  %4856 = vmatpush1.msra.mxu0 0.0
  %4857 = vmatprep.subr.mxu0 0.0
  %4858 = vmatpush1.msra.mxu0 0.0
  %4859 = vmatprep.subr.mxu0 0.0
  %4860 = vmatpush1.msra.mxu0 0.0
  %4861 = vmatprep.subr.mxu0 0.0
  %4862 = vmatpush1.msra.mxu0 0.0
  %4863 = vmatprep.subr.mxu0 0.0
  %4864 = vmatpush1.msra.mxu0 0.0
  %4865 = vmatprep.subr.mxu0 0.0
  %4866 = vmatpush1.msra.mxu0 0.0
  %4867 = vmatprep.subr.mxu0 0.0
  %4868 = vmatpush1.msra.mxu0 %v4832
  %4869 = vmatprep.subr.mxu0 0.0
  %4870 = vmatpush1.msra.mxu0 %v4831
  %4871 = vmatprep.subr.mxu0 0.0
  %4872 = vmatpush1.msra.mxu0 %v4830
  %4873 = vmatprep.subr.mxu0 0.0
  %4874 = vmatpush1.msra.mxu0 %v4829
  %4875 = vmatprep.subr.mxu0 0.0
  %4876 = vmatpush2.msra.mxu0 0.0
  %4877 = vmatprep.subr.mxu0 0.0
  %4878 = vmatpush2.msra.mxu0 0.0
  %4879 = vmatprep.subr.mxu0 0.0
  %4880 = vmatpush2.msra.mxu0 0.0
  %4881 = vmatprep.subr.mxu0 0.0
  %4882 = vmatpush2.msra.mxu0 0.0
  %4883 = vmatprep.subr.mxu0 0.0
  %4884 = vmatpush2.msra.mxu0 0.0
  %4885 = vmatprep.subr.mxu0 0.0
  %4886 = vmatpush2.msra.mxu0 0.0
  %4887 = vmatprep.subr.mxu0 0.0
  %4888 = vmatpush2.msra.mxu0 0.0
  %4889 = vmatprep.subr.mxu0 0.0
  %4890 = vmatpush2.msra.mxu0 0.0
  %4891 = vmatprep.subr.mxu0 0.0
  %4892 = vmatpush2.msra.mxu0 0.0
  %4893 = vmatprep.subr.mxu0 0.0
  %4894 = vmatpush2.msra.mxu0 0.0
  %4895 = vmatprep.subr.mxu0 0.0
  %4896 = vmatpush2.msra.mxu0 0.0
  %4897 = vmatprep.subr.mxu0 0.0
  %4898 = vmatpush2.msra.mxu0 0.0
  %4899 = vmatprep.subr.mxu0 0.0
  %4900 = vmatpush2.msra.mxu0 0.0
  %4901 = vmatprep.subr.mxu0 0.0
  %4902 = vmatpush2.msra.mxu0 0.0
  %4903 = vmatprep.subr.mxu0 0.0
  %4904 = vmatpush2.msra.mxu0 0.0
  %4905 = vmatprep.subr.mxu0 0.0
  %4906 = vmatpush2.msra.mxu0 0.0
  %4907 = vmatprep.mubr.f32.mxu0 0.0
  %4908 = vmatmul.mubr.f32.gmra.mxu0 %v4841
  %v4909 = vpop.f32.mrf.mxu0
  %v4910 = vadd.f32 %v4838, %v4909
  %v4911 = vpop.f32.mrf.mxu0
  %4912 = vdwg.mxu0
  %v4913 = vtanh.pop %v4910
  %v4914 = vld [vmem:[%s18] sm:$0xff]
  %v4915 = vld [vmem:[%s18 + $0x8] sm:$0xff]
  %v4916 = vld [vmem:[%s18 + $0x10] sm:$0xff]
  %v4917 = vld [vmem:[%s18 + $0x18] sm:$0xff]
  %v4918 = vld [vmem:[%s19] sm:$0x1]
  %v4920 = vlaneseq
  %v4921 = vshrl.u32 %v4920, 7
  %v4922 = vsub.s32 0, %v4921
  %v4923 = vrot.slane %v4918, %v4922
  %v4926 = vsel %vm69, %v4745, 0
  %v4929 = vsel %vm69, %v4746, 0
  %4931 = vmatprep.subr.mxu0 0.0
  %4932 = vmatpush1.msra.mxu0 0.0
  %4933 = vmatprep.subr.mxu0 0.0
  %4934 = vmatpush1.msra.mxu0 0.0
  %4935 = vmatprep.subr.mxu0 0.0
  %4936 = vmatpush1.msra.mxu0 0.0
  %4937 = vmatprep.subr.mxu0 0.0
  %4938 = vmatpush1.msra.mxu0 0.0
  %4939 = vmatprep.subr.mxu0 0.0
  %4940 = vmatpush1.msra.mxu0 0.0
  %4941 = vmatprep.subr.mxu0 0.0
  %4942 = vmatpush1.msra.mxu0 0.0
  %4943 = vmatprep.subr.mxu0 0.0
  %4944 = vmatpush1.msra.mxu0 0.0
  %4945 = vmatprep.subr.mxu0 0.0
  %4946 = vmatpush1.msra.mxu0 0.0
  %4947 = vmatprep.subr.mxu0 0.0
  %4948 = vmatpush1.msra.mxu0 0.0
  %4949 = vmatprep.subr.mxu0 0.0
  %4950 = vmatpush1.msra.mxu0 0.0
  %4951 = vmatprep.subr.mxu0 0.0
  %4952 = vmatpush1.msra.mxu0 0.0
  %4953 = vmatprep.subr.mxu0 0.0
  %4954 = vmatpush1.msra.mxu0 0.0
  %4955 = vmatprep.subr.mxu0 0.0
  %4956 = vmatpush1.msra.mxu0 %v4917
  %4957 = vmatprep.subr.mxu0 0.0
  %4958 = vmatpush1.msra.mxu0 %v4916
  %4959 = vmatprep.subr.mxu0 0.0
  %4960 = vmatpush1.msra.mxu0 %v4915
  %4961 = vmatprep.subr.mxu0 0.0
  %4962 = vmatpush1.msra.mxu0 %v4914
  %4963 = vmatprep.subr.mxu0 0.0
  %4964 = vmatpush2.msra.mxu0 0.0
  %4965 = vmatprep.subr.mxu0 0.0
  %4966 = vmatpush2.msra.mxu0 0.0
  %4967 = vmatprep.subr.mxu0 0.0
  %4968 = vmatpush2.msra.mxu0 0.0
  %4969 = vmatprep.subr.mxu0 0.0
  %4970 = vmatpush2.msra.mxu0 0.0
  %4971 = vmatprep.subr.mxu0 0.0
  %4972 = vmatpush2.msra.mxu0 0.0
  %4973 = vmatprep.subr.mxu0 0.0
  %4974 = vmatpush2.msra.mxu0 0.0
  %4975 = vmatprep.subr.mxu0 0.0
  %4976 = vmatpush2.msra.mxu0 0.0
  %4977 = vmatprep.subr.mxu0 0.0
  %4978 = vmatpush2.msra.mxu0 0.0
  %4979 = vmatprep.subr.mxu0 0.0
  %4980 = vmatpush2.msra.mxu0 0.0
  %4981 = vmatprep.subr.mxu0 0.0
  %4982 = vmatpush2.msra.mxu0 0.0
  %4983 = vmatprep.subr.mxu0 0.0
  %4984 = vmatpush2.msra.mxu0 0.0
  %4985 = vmatprep.subr.mxu0 0.0
  %4986 = vmatpush2.msra.mxu0 0.0
  %4987 = vmatprep.subr.mxu0 0.0
  %4988 = vmatpush2.msra.mxu0 0.0
  %4989 = vmatprep.subr.mxu0 0.0
  %4990 = vmatpush2.msra.mxu0 0.0
  %4991 = vmatprep.subr.mxu0 0.0
  %4992 = vmatpush2.msra.mxu0 0.0
  %4993 = vmatprep.subr.mxu0 0.0
  %4994 = vmatpush2.msra.mxu0 0.0
  %4995 = vmatprep.mubr.f32.mxu0 0.0
  %4996 = vmatmul.mubr.f32.gmra.mxu0 %v4926
  %v4997 = vpop.f32.mrf.mxu0
  %v4998 = vadd.f32 %v4923, %v4997
  %v4999 = vpop.f32.mrf.mxu0
  %5000 = vmatprep.mubr.f32.mxu0 0.0
  %5001 = vmatmul.mubr.f32.gmra.mxu0 %v4929
  %v5002 = vpop.f32.mrf.mxu0
  %v5003 = vadd.f32 %v4923, %v5002
  %v5004 = vpop.f32.mrf.mxu0
  %5005 = vdwg.mxu0
  %5006 = vst [vmem:[%s20] sm:$0xff] %v4998
  %5007 = vst [vmem:[%s20 + $0x8] sm:$0xff] %v5003
  %v5009 = vsel %vm69, %v4913, 0
  %5011 = vmatprep.subr.mxu0 0.0
  %5012 = vmatpush1.msra.mxu0 0.0
  %5013 = vmatprep.subr.mxu0 0.0
  %5014 = vmatpush1.msra.mxu0 0.0
  %5015 = vmatprep.subr.mxu0 0.0
  %5016 = vmatpush1.msra.mxu0 0.0
  %5017 = vmatprep.subr.mxu0 0.0
  %5018 = vmatpush1.msra.mxu0 0.0
  %5019 = vmatprep.subr.mxu0 0.0
  %5020 = vmatpush1.msra.mxu0 0.0
  %5021 = vmatprep.subr.mxu0 0.0
  %5022 = vmatpush1.msra.mxu0 0.0
  %5023 = vmatprep.subr.mxu0 0.0
  %5024 = vmatpush1.msra.mxu0 0.0
  %5025 = vmatprep.subr.mxu0 0.0
  %5026 = vmatpush1.msra.mxu0 0.0
  %5027 = vmatprep.subr.mxu0 0.0
  %5028 = vmatpush1.msra.mxu0 0.0
  %5029 = vmatprep.subr.mxu0 0.0
  %5030 = vmatpush1.msra.mxu0 0.0
  %5031 = vmatprep.subr.mxu0 0.0
  %5032 = vmatpush1.msra.mxu0 0.0
  %5033 = vmatprep.subr.mxu0 0.0
  %5034 = vmatpush1.msra.mxu0 0.0
  %5035 = vmatprep.subr.mxu0 0.0
  %5036 = vmatpush1.msra.mxu0 %v4917
  %5037 = vmatprep.subr.mxu0 0.0
  %5038 = vmatpush1.msra.mxu0 %v4916
  %5039 = vmatprep.subr.mxu0 0.0
  %5040 = vmatpush1.msra.mxu0 %v4915
  %5041 = vmatprep.subr.mxu0 0.0
  %5042 = vmatpush1.msra.mxu0 %v4914
  %5043 = vmatprep.subr.mxu0 0.0
  %5044 = vmatpush2.msra.mxu0 0.0
  %5045 = vmatprep.subr.mxu0 0.0
  %5046 = vmatpush2.msra.mxu0 0.0
  %5047 = vmatprep.subr.mxu0 0.0
  %5048 = vmatpush2.msra.mxu0 0.0
  %5049 = vmatprep.subr.mxu0 0.0
  %5050 = vmatpush2.msra.mxu0 0.0
  %5051 = vmatprep.subr.mxu0 0.0
  %5052 = vmatpush2.msra.mxu0 0.0
  %5053 = vmatprep.subr.mxu0 0.0
  %5054 = vmatpush2.msra.mxu0 0.0
  %5055 = vmatprep.subr.mxu0 0.0
  %5056 = vmatpush2.msra.mxu0 0.0
  %5057 = vmatprep.subr.mxu0 0.0
  %5058 = vmatpush2.msra.mxu0 0.0
  %5059 = vmatprep.subr.mxu0 0.0
  %5060 = vmatpush2.msra.mxu0 0.0
  %5061 = vmatprep.subr.mxu0 0.0
  %5062 = vmatpush2.msra.mxu0 0.0
  %5063 = vmatprep.subr.mxu0 0.0
  %5064 = vmatpush2.msra.mxu0 0.0
  %5065 = vmatprep.subr.mxu0 0.0
  %5066 = vmatpush2.msra.mxu0 0.0
  %5067 = vmatprep.subr.mxu0 0.0
  %5068 = vmatpush2.msra.mxu0 0.0
  %5069 = vmatprep.subr.mxu0 0.0
  %5070 = vmatpush2.msra.mxu0 0.0
  %5071 = vmatprep.subr.mxu0 0.0
  %5072 = vmatpush2.msra.mxu0 0.0
  %5073 = vmatprep.subr.mxu0 0.0
  %5074 = vmatpush2.msra.mxu0 0.0
  %5075 = vmatprep.mubr.f32.mxu0 0.0
  %5076 = vmatmul.mubr.f32.gmra.mxu0 %v5009
  %v5077 = vpop.f32.mrf.mxu0
  %v5078 = vadd.f32 %v4923, %v5077
  %v5079 = vpop.f32.mrf.mxu0
  %5080 = vdwg.mxu0
  %5081 = vst [vmem:[%s20 + $0x10] sm:$0x3] %v5078
  // Predicated region
  $region82: #{word_bert_forward.1} parent=0 // pred_check
    _
  $region83: #{word_bert_forward.1} parent=0 // pred_check_branch
    %5083 = sbr.rel (0) target = $region85
  $region84: #{word_bert_forward.1} parent=0 // pred_region
    _
  $region85: #{word_bert_forward.1} parent=0 // pred_fallthru
    _
  // Predicated region
  $region86: #{word_bert_forward.1} parent=0 // pred_check
    _
  $region87: #{word_bert_forward.1} parent=0 // pred_check_branch
    %5085 = sbr.rel (0) target = $region89
  $region88: #{word_bert_forward.1} parent=0 // pred_region
    _
  $region89: #{word_bert_forward.1} parent=0 // pred_fallthru
    _

</llo_original>
